<compile_context>
chip_gen: v6e
topology: v6e:2x2x1
jax: 0.10.0
libtpu: 0.0.40
codegen_flags: <defaults>
</compile_context>

<pallas_src>
import functools

import jax
import jax.numpy as jnp
from jax import lax
from jax.experimental import pallas as pl
from jax.experimental.pallas import tpu as pltpu


# ----------------------------------------------------------------------------
# Fused attention block kernel:
#   out = LayerNorm( xq + Wo @ MHA( Wq xq, Wk xkv, Wv xkv ) + bo )
# One grid step per batch element; weights stay VMEM-resident (constant index
# maps).  Heads are handled with static ref-window slices of VMEM scratch.
# ----------------------------------------------------------------------------
def _attn_block_kernel(xq_ref, xkv_ref,
                       wq_ref, bq_ref, wk_ref, bk_ref, wv_ref, bv_ref,
                       wo_ref, bo_ref, g_ref, b_ref, o_ref,
                       q_scr, k_scr, v_scr, a_scr, *, n_heads, eps):
    cdt = q_scr.dtype                       # compute/storage dtype (f32 or bf16)
    xq = xq_ref[0]                          # [L, D]
    xkv = xkv_ref[0]                        # [S, D]

    # Fused Q/K/V projections (full-width MXU matmuls, f32 accumulate).
    q_scr[...] = (jnp.dot(xq, wq_ref[...], preferred_element_type=jnp.float32)
                  + bq_ref[...]).astype(cdt)
    k_scr[...] = (jnp.dot(xkv, wk_ref[...], preferred_element_type=jnp.float32)
                  + bk_ref[...]).astype(cdt)
    v_scr[...] = (jnp.dot(xkv, wv_ref[...], preferred_element_type=jnp.float32)
                  + bv_ref[...]).astype(cdt)

    d = xq.shape[-1]
    e = d // n_heads
    scale = 1.0 / (e ** 0.5)

    # Per-head scaled-dot-product attention; heads sliced via static VMEM
    # ref windows (no transposes, K consumed untransposed via dot_general).
    for h in range(n_heads):
        lo, hi = h * e, (h + 1) * e
        qh = q_scr[:, lo:hi]                # [L, E]
        kh = k_scr[:, lo:hi]                # [S, E]
        vh = v_scr[:, lo:hi]                # [S, E]
        s = lax.dot_general(qh, kh, (((1,), (1,)), ((), ())),
                            preferred_element_type=jnp.float32) * scale   # [L, S]
        m = jnp.max(s, axis=-1, keepdims=True)
        p = jnp.exp(s - m)
        l_sum = jnp.sum(p, axis=-1, keepdims=True)
        oh = jnp.dot(p.astype(cdt), vh, preferred_element_type=jnp.float32)  # [L, E]
        oh = oh * pl.reciprocal(l_sum, approx=True)   # normalize [L,E], not [L,S]
        a_scr[:, lo:hi] = oh.astype(cdt)

    # Output projection + residual add + LayerNorm (LN math in f32).
    proj = (jnp.dot(a_scr[...], wo_ref[...], preferred_element_type=jnp.float32)
            + bo_ref[...])
    z = xq.astype(jnp.float32) + proj
    mu = jnp.mean(z, axis=-1, keepdims=True)
    var = jnp.mean((z - mu) ** 2, axis=-1, keepdims=True)
    zn = (z - mu) * lax.rsqrt(var + eps)
    o_ref[0] = (zn * g_ref[...].astype(jnp.float32)
                + b_ref[...].astype(jnp.float32)).astype(o_ref.dtype)


def fused_attention_block(xq, xkv, p, gamma, beta, n_heads, eps=1e-5):
    """LayerNorm(xq + AttentionLayer(xq, xkv, xkv)).  xq: [B,L,D], xkv: [B,S,D]."""
    b, l, d = xq.shape
    s = xkv.shape[1]
    assert d % n_heads == 0
    cdt = xq.dtype
    itemsize = jnp.dtype(cdt).itemsize

    flops = int(b * (4 * l * d * d + 4 * s * d * d + 4 * l * s * d))
    transcendentals = int(b * n_heads * l * s)
    bytes_accessed = int(itemsize * (2 * b * l * d + b * s * d + 4 * d * d + 6 * d))

    wspec = pl.BlockSpec((d, d), lambda i: (0, 0))     # VMEM-resident weights
    vspec = pl.BlockSpec((1, d), lambda i: (0, 0))     # biases / LN params

    return pl.pallas_call(
        functools.partial(_attn_block_kernel, n_heads=n_heads, eps=eps),
        grid=(b,),
        in_specs=[
            pl.BlockSpec((1, l, d), lambda i: (i, 0, 0)),   # query source / residual
            pl.BlockSpec((1, s, d), lambda i: (i, 0, 0)),   # key/value source
            wspec, vspec,                                   # wq, bq
            wspec, vspec,                                   # wk, bk
            wspec, vspec,                                   # wv, bv
            wspec, vspec,                                   # wo, bo
            vspec, vspec,                                   # ln gamma, beta
        ],
        out_specs=pl.BlockSpec((1, l, d), lambda i: (i, 0, 0)),
        out_shape=jax.ShapeDtypeStruct((b, l, d), cdt),
        scratch_shapes=[
            pltpu.VMEM((l, d), cdt),   # Q
            pltpu.VMEM((s, d), cdt),   # K
            pltpu.VMEM((s, d), cdt),   # V
            pltpu.VMEM((l, d), cdt),   # attention output (pre out-projection)
        ],
        compiler_params=pltpu.CompilerParams(dimension_semantics=("parallel",)),
        cost_estimate=pl.CostEstimate(flops=flops,
                                      transcendentals=transcendentals,
                                      bytes_accessed=bytes_accessed),
    )(xq, xkv, p["wq"], p["bq"], p["wk"], p["bk"], p["wv"], p["bv"],
      p["wo"], p["bo"], gamma, beta)


# ----------------------------------------------------------------------------
# Fused FFN (conv1 k=1 -> relu -> conv2 k=1) + residual + LayerNorm, row-tiled.
# ----------------------------------------------------------------------------
def _ffn_ln_kernel(x_ref, w1_ref, b1_ref, w2_ref, b2_ref, g_ref, be_ref, o_ref,
                   *, eps):
    x = x_ref[...]                                               # [TM, D]
    h = jnp.dot(x, w1_ref[...], preferred_element_type=jnp.float32) + b1_ref[...]
    h = jnp.maximum(h, 0.0).astype(x.dtype)                      # relu
    y = jnp.dot(h, w2_ref[...], preferred_element_type=jnp.float32) + b2_ref[...]
    z = x.astype(jnp.float32) + y
    mu = jnp.mean(z, axis=-1, keepdims=True)
    var = jnp.mean((z - mu) ** 2, axis=-1, keepdims=True)
    zn = (z - mu) * lax.rsqrt(var + eps)
    o_ref[...] = (zn * g_ref[...].astype(jnp.float32)
                  + be_ref[...].astype(jnp.float32)).astype(o_ref.dtype)


def ffn_residual_layernorm(x, w1, b1, w2, b2, gamma, beta, eps=1e-5,
                           block_rows=256):
    """x: [N, D] -> LayerNorm(x + relu(x@W1+b1)@W2+b2).  Row-tiled grid."""
    n, d = x.shape
    f = w1.shape[1]
    tm = min(block_rows, n)
    itemsize = jnp.dtype(x.dtype).itemsize

    flops = int(4 * n * d * f)
    bytes_accessed = int(itemsize * (2 * n * d + 2 * d * f + f + 3 * d))

    const2 = lambda i: (0, 0)
    return pl.pallas_call(
        functools.partial(_ffn_ln_kernel, eps=eps),
        grid=(pl.cdiv(n, tm),),
        in_specs=[
            pl.BlockSpec((tm, d), lambda i: (i, 0)),
            pl.BlockSpec((d, f), const2),     # W1 (VMEM-resident)
            pl.BlockSpec((1, f), const2),     # b1
            pl.BlockSpec((f, d), const2),     # W2 (VMEM-resident)
            pl.BlockSpec((1, d), const2),     # b2
            pl.BlockSpec((1, d), const2),     # ln gamma
            pl.BlockSpec((1, d), const2),     # ln beta
        ],
        out_specs=pl.BlockSpec((tm, d), lambda i: (i, 0)),
        out_shape=jax.ShapeDtypeStruct((n, d), x.dtype),
        compiler_params=pltpu.CompilerParams(dimension_semantics=("parallel",)),
        cost_estimate=pl.CostEstimate(flops=flops, transcendentals=int(n),
                                      bytes_accessed=bytes_accessed),
    )(x, w1, b1, w2, b2, gamma, beta)


# ----------------------------------------------------------------------------
# DecoderLayer forward: 3 pallas_calls per layer (self-attn, cross-attn, FFN).
# ----------------------------------------------------------------------------
def decoder_layer_forward(x, cross, params, n_heads, ffn_block_rows=256):
    """x: [B, L, D], cross: [B, S, D] -> [B, L, D].
    dec_kv=None, x_mask=None, cross_mask=None, dropout == identity (eval)."""
    b, l, d = x.shape

    # x = norm1(x + self_attention(x, x, x))
    x1 = fused_attention_block(x, x, params["self_attn"],
                               params["ln1_g"], params["ln1_b"], n_heads)

    # x = norm2(x + cross_attention(x, cross, cross))
    x2 = fused_attention_block(x1, cross, params["cross_attn"],
                               params["ln2_g"], params["ln2_b"], n_heads)

    # y = conv2(relu(conv1(x))); out = norm3(x + y)   (k=1 convs == matmuls)
    out = ffn_residual_layernorm(x2.reshape(b * l, d),
                                 params["w1"], params["b1"],
                                 params["w2"], params["b2"],
                                 params["ln3_g"], params["ln3_b"],
                                 block_rows=ffn_block_rows)
    return out.reshape(b, l, d)


# ----------------------------------------------------------------------------
# Pure-JAX reference (for a sanity check)
# ----------------------------------------------------------------------------
def _ref_attn(q_in, kv_in, p, n_heads):
    b, lq, d = q_in.shape
    skv = kv_in.shape[1]
    h, e = n_heads, d // n_heads
    q = (q_in @ p["wq"] + p["bq"]).reshape(b, lq, h, e)
    k = (kv_in @ p["wk"] + p["bk"]).reshape(b, skv, h, e)
    v = (kv_in @ p["wv"] + p["bv"]).reshape(b, skv, h, e)
    s = jnp.einsum("blhe,bshe->bhls", q, k) / (e ** 0.5)
    a = jax.nn.softmax(s, axis=-1)
    o = jnp.einsum("bhls,bshe->blhe", a, v).reshape(b, lq, d)
    return o @ p["wo"] + p["bo"]


def _ref_ln(z, g, b, eps=1e-5):
    mu = jnp.mean(z, axis=-1, keepdims=True)
    var = jnp.mean((z - mu) ** 2, axis=-1, keepdims=True)
    return (z - mu) * lax.rsqrt(var + eps) * g + b


def decoder_layer_reference(x, cross, params, n_heads):
    x = _ref_ln(x + _ref_attn(x, x, params["self_attn"], n_heads),
                params["ln1_g"], params["ln1_b"])
    x = _ref_ln(x + _ref_attn(x, cross, params["cross_attn"], n_heads),
                params["ln2_g"], params["ln2_b"])
    y = jnp.maximum(x @ params["w1"] + params["b1"], 0.0) @ params["w2"] + params["b2"]
    return _ref_ln(x + y, params["ln3_g"], params["ln3_b"])


# ----------------------------------------------------------------------------
# Deterministic parameter init (synthetic; no checkpoint loading)
# ----------------------------------------------------------------------------
def init_params(key, d_model, d_ff):
    def proj(k):
        k1, k2, k3, k4 = jax.random.split(k, 4)
        return {
            "wq": jax.random.normal(k1, (d_model, d_model), jnp.float32) * 0.05,
            "bq": jnp.zeros((1, d_model), jnp.float32),
            "wk": jax.random.normal(k2, (d_model, d_model), jnp.float32) * 0.05,
            "bk": jnp.zeros((1, d_model), jnp.float32),
            "wv": jax.random.normal(k3, (d_model, d_model), jnp.float32) * 0.05,
            "bv": jnp.zeros((1, d_model), jnp.float32),
            "wo": jax.random.normal(k4, (d_model, d_model), jnp.float32) * 0.05,
            "bo": jnp.zeros((1, d_model), jnp.float32),
        }

    ks = jax.random.split(key, 6)
    return {
        "self_attn": proj(ks[0]),
        "cross_attn": proj(ks[1]),
        # conv1: [d_ff, d_model, 1] -> stored transposed as [d_model, d_ff]
        "w1": jax.random.normal(ks[2], (d_model, d_ff), jnp.float32) * 0.05,
        "b1": jax.random.normal(ks[3], (1, d_ff), jnp.float32) * 0.05,
        # conv2: [d_model, d_ff, 1] -> stored transposed as [d_ff, d_model]
        "w2": jax.random.normal(ks[4], (d_ff, d_model), jnp.float32) * 0.05,
        "b2": jax.random.normal(ks[5], (1, d_model), jnp.float32) * 0.05,
        # LayerNorm params (PyTorch defaults: weight=1, bias=0)
        "ln1_g": jnp.ones((1, d_model), jnp.float32),
        "ln1_b": jnp.zeros((1, d_model), jnp.float32),
        "ln2_g": jnp.ones((1, d_model), jnp.float32),
        "ln2_b": jnp.zeros((1, d_model), jnp.float32),
        "ln3_g": jnp.ones((1, d_model), jnp.float32),
        "ln3_b": jnp.zeros((1, d_model), jnp.float32),
    }


if __name__ == "__main__":
    B, L, S = 2, 8, 16
    d_model, n_heads = 32, 4
    d_ff = 4 * d_model  # 128

    key = jax.random.PRNGKey(0)
    kx, kc, kp = jax.random.split(key, 3)
    x = jax.random.normal(kx, (B, L, d_model), jnp.float32)
    cross = jax.random.normal(kc, (B, S, d_model), jnp.float32)
    params = init_params(kp, d_model, d_ff)

    fwd = jax.jit(functools.partial(decoder_layer_forward, n_heads=n_heads,
                                    ffn_block_rows=8))

    # f32 run + check against pure-JAX reference (tolerance covers the
    # approximate-reciprocal softmax normalization).
    out = jax.block_until_ready(fwd(x, cross, params))
    ref = decoder_layer_reference(x, cross, params, n_heads)
    assert out.shape == (B, L, d_model)
    assert jnp.allclose(out, ref, rtol=1e-2, atol=1e-2), (
        "mismatch vs reference: max abs err = %e"
        % float(jnp.max(jnp.abs(out - ref))))

    # bf16 run (MXU-friendly storage dtype; halves HBM traffic) — smoke test.
    to_bf16 = lambda t: jax.tree_util.tree_map(
        lambda a: a.astype(jnp.bfloat16), t)
    out_bf16 = jax.block_until_ready(
        fwd(x.astype(jnp.bfloat16), cross.astype(jnp.bfloat16), to_bf16(params)))
    assert out_bf16.shape == (B, L, d_model)
    assert out_bf16.dtype == jnp.bfloat16
    assert bool(jnp.all(jnp.isfinite(out_bf16.astype(jnp.float32))))

    # TODO(synk): dropout is identity (eval mode); dec_kv / x_mask / cross_mask
    # not-None paths and the attention-weight second output are not implemented.
    print("KERNEL_OK")
</pallas_src>

<mosaic_0001>
module attributes {stable_mosaic.version = 11 : i64} {
  func.func @_ffn_ln_kernel(%arg0: i32, %arg1: memref<8x32xf32, #tpu.memory_space<vmem>>, %arg2: memref<32x128xf32, #tpu.memory_space<vmem>>, %arg3: memref<1x128xf32, #tpu.memory_space<vmem>>, %arg4: memref<128x32xf32, #tpu.memory_space<vmem>>, %arg5: memref<1x32xf32, #tpu.memory_space<vmem>>, %arg6: memref<1x32xf32, #tpu.memory_space<vmem>>, %arg7: memref<1x32xf32, #tpu.memory_space<vmem>>, %arg8: memref<8x32xf32, #tpu.memory_space<vmem>>) attributes {dimension_semantics = [#tpu.dimension_semantics<parallel>], iteration_bounds = array<i64: 2>, scalar_prefetch = 0 : i64, scratch_operands = 0 : i64, tpu.core_type = #tpu.core_type<tc>, window_params = [{transform_indices = @transform_0, window_bounds = array<i64: 8, 32>}, {pipeline_mode = #tpu.pipeline_mode<synchronous>, transform_indices = @transform_1, window_bounds = array<i64: 32, 128>}, {pipeline_mode = #tpu.pipeline_mode<synchronous>, transform_indices = @transform_2, window_bounds = array<i64: 1, 128>}, {pipeline_mode = #tpu.pipeline_mode<synchronous>, transform_indices = @transform_3, window_bounds = array<i64: 128, 32>}, {pipeline_mode = #tpu.pipeline_mode<synchronous>, transform_indices = @transform_4, window_bounds = array<i64: 1, 32>}, {pipeline_mode = #tpu.pipeline_mode<synchronous>, transform_indices = @transform_5, window_bounds = array<i64: 1, 32>}, {pipeline_mode = #tpu.pipeline_mode<synchronous>, transform_indices = @transform_6, window_bounds = array<i64: 1, 32>}, {transform_indices = @transform_7, window_bounds = array<i64: 8, 32>}]} {
    %c0 = arith.constant 0 : index
    %c0_0 = arith.constant 0 : index
    %0 = vector.load %arg1[%c0, %c0_0] : memref<8x32xf32, #tpu.memory_space<vmem>>, vector<8x32xf32>
    %c0_1 = arith.constant 0 : index
    %c0_2 = arith.constant 0 : index
    %1 = vector.load %arg2[%c0_1, %c0_2] : memref<32x128xf32, #tpu.memory_space<vmem>>, vector<32x128xf32>
    %cst = arith.constant dense<0.000000e+00> : vector<8x128xf32>
    %2 = tpu.matmul %0, %1, %cst {dimension_numbers = #tpu.dot_dimension_numbers<[1], [0], [0], [1], [0, 0, 1, 1], [], []>} : vector<8x32xf32>, vector<32x128xf32>, vector<8x128xf32> -> vector<8x128xf32>
    %c0_3 = arith.constant 0 : index
    %c0_4 = arith.constant 0 : index
    %3 = vector.load %arg3[%c0_3, %c0_4] : memref<1x128xf32, #tpu.memory_space<vmem>>, vector<1x128xf32>
    %4 = vector.broadcast %3 : vector<1x128xf32> to vector<8x128xf32>
    %5 = arith.addf %2, %4 : vector<8x128xf32>
    %cst_5 = arith.constant 0.000000e+00 : f32
    %6 = vector.broadcast %cst_5 : f32 to vector<8x128xf32>
    %7 = arith.maximumf %5, %6 : vector<8x128xf32>
    %c0_6 = arith.constant 0 : index
    %c0_7 = arith.constant 0 : index
    %8 = vector.load %arg4[%c0_6, %c0_7] : memref<128x32xf32, #tpu.memory_space<vmem>>, vector<128x32xf32>
    %cst_8 = arith.constant dense<0.000000e+00> : vector<8x32xf32>
    %9 = tpu.matmul %7, %8, %cst_8 {dimension_numbers = #tpu.dot_dimension_numbers<[1], [0], [0], [1], [0, 0, 1, 1], [], []>} : vector<8x128xf32>, vector<128x32xf32>, vector<8x32xf32> -> vector<8x32xf32>
    %c0_9 = arith.constant 0 : index
    %c0_10 = arith.constant 0 : index
    %10 = vector.load %arg5[%c0_9, %c0_10] : memref<1x32xf32, #tpu.memory_space<vmem>>, vector<1x32xf32>
    %11 = vector.broadcast %10 : vector<1x32xf32> to vector<8x32xf32>
    %12 = arith.addf %9, %11 : vector<8x32xf32>
    %13 = arith.addf %0, %12 : vector<8x32xf32>
    %cst_11 = arith.constant dense<0.000000e+00> : vector<8xf32>
    %14 = vector.multi_reduction <add>, %13, %cst_11 [1] : vector<8x32xf32> to vector<8xf32>
    %15 = vector.shape_cast %14 : vector<8xf32> to vector<8x1xf32>
    %cst_12 = arith.constant 3.200000e+01 : f32
    %16 = vector.broadcast %cst_12 : f32 to vector<8x1xf32>
    %17 = arith.divf %15, %16 : vector<8x1xf32>
    %18 = vector.broadcast %17 : vector<8x1xf32> to vector<8x32xf32>
    %19 = arith.subf %13, %18 : vector<8x32xf32>
    %20 = arith.mulf %19, %19 : vector<8x32xf32>
    %cst_13 = arith.constant dense<0.000000e+00> : vector<8xf32>
    %21 = vector.multi_reduction <add>, %20, %cst_13 [1] : vector<8x32xf32> to vector<8xf32>
    %22 = vector.shape_cast %21 : vector<8xf32> to vector<8x1xf32>
    %cst_14 = arith.constant 3.200000e+01 : f32
    %23 = vector.broadcast %cst_14 : f32 to vector<8x1xf32>
    %24 = arith.divf %22, %23 : vector<8x1xf32>
    %25 = vector.broadcast %17 : vector<8x1xf32> to vector<8x32xf32>
    %26 = arith.subf %13, %25 : vector<8x32xf32>
    %cst_15 = arith.constant 9.99999974E-6 : f32
    %27 = vector.broadcast %cst_15 : f32 to vector<8x1xf32>
    %28 = arith.addf %24, %27 : vector<8x1xf32>
    %29 = math.rsqrt %28 : vector<8x1xf32>
    %30 = vector.broadcast %29 : vector<8x1xf32> to vector<8x32xf32>
    %31 = arith.mulf %26, %30 : vector<8x32xf32>
    %c0_16 = arith.constant 0 : index
    %c0_17 = arith.constant 0 : index
    %32 = vector.load %arg6[%c0_16, %c0_17] : memref<1x32xf32, #tpu.memory_space<vmem>>, vector<1x32xf32>
    %33 = vector.broadcast %32 : vector<1x32xf32> to vector<8x32xf32>
    %34 = arith.mulf %31, %33 : vector<8x32xf32>
    %c0_18 = arith.constant 0 : index
    %c0_19 = arith.constant 0 : index
    %35 = vector.load %arg7[%c0_18, %c0_19] : memref<1x32xf32, #tpu.memory_space<vmem>>, vector<1x32xf32>
    %36 = vector.broadcast %35 : vector<1x32xf32> to vector<8x32xf32>
    %37 = arith.addf %34, %36 : vector<8x32xf32>
    %c0_20 = arith.constant 0 : index
    %c0_21 = arith.constant 0 : index
    %38 = vector.load %arg8[%c0_20, %c0_21] : memref<8x32xf32, #tpu.memory_space<vmem>>, vector<8x32xf32>
    tpu.vector_store %arg8[%c0_20, %c0_21], %37 {strides = array<i32>} : memref<8x32xf32, #tpu.memory_space<vmem>>, vector<8x32xf32>,
    return
  }
  func.func @transform_0(%arg0: i32) -> (i32, i32) {
    %c0_i32 = arith.constant 0 : i32
    %c0_i32_0 = arith.constant 0 : i32
    return %arg0, %c0_i32 : i32, i32
  }
  func.func @transform_1(%arg0: i32) -> (i32, i32) {
    %c0_i32 = arith.constant 0 : i32
    %c0_i32_0 = arith.constant 0 : i32
    %c0_i32_1 = arith.constant 0 : i32
    return %c0_i32, %c0_i32_0 : i32, i32
  }
  func.func @transform_2(%arg0: i32) -> (i32, i32) {
    %c0_i32 = arith.constant 0 : i32
    %c0_i32_0 = arith.constant 0 : i32
    %c0_i32_1 = arith.constant 0 : i32
    return %c0_i32, %c0_i32_0 : i32, i32
  }
  func.func @transform_3(%arg0: i32) -> (i32, i32) {
    %c0_i32 = arith.constant 0 : i32
    %c0_i32_0 = arith.constant 0 : i32
    %c0_i32_1 = arith.constant 0 : i32
    return %c0_i32, %c0_i32_0 : i32, i32
  }
  func.func @transform_4(%arg0: i32) -> (i32, i32) {
    %c0_i32 = arith.constant 0 : i32
    %c0_i32_0 = arith.constant 0 : i32
    %c0_i32_1 = arith.constant 0 : i32
    return %c0_i32, %c0_i32_0 : i32, i32
  }
  func.func @transform_5(%arg0: i32) -> (i32, i32) {
    %c0_i32 = arith.constant 0 : i32
    %c0_i32_0 = arith.constant 0 : i32
    %c0_i32_1 = arith.constant 0 : i32
    return %c0_i32, %c0_i32_0 : i32, i32
  }
  func.func @transform_6(%arg0: i32) -> (i32, i32) {
    %c0_i32 = arith.constant 0 : i32
    %c0_i32_0 = arith.constant 0 : i32
    %c0_i32_1 = arith.constant 0 : i32
    return %c0_i32, %c0_i32_0 : i32, i32
  }
  func.func @transform_7(%arg0: i32) -> (i32, i32) {
    %c0_i32 = arith.constant 0 : i32
    %c0_i32_0 = arith.constant 0 : i32
    return %arg0, %c0_i32 : i32, i32
  }
}

module attributes {stable_mosaic.version = 11 : i64} {
  func.func @_attn_block_kernel(%arg0: i32, %arg1: memref<1x8x32xf32, #tpu.memory_space<vmem>>, %arg2: memref<1x8x32xf32, #tpu.memory_space<vmem>>, %arg3: memref<32x32xf32, #tpu.memory_space<vmem>>, %arg4: memref<1x32xf32, #tpu.memory_space<vmem>>, %arg5: memref<32x32xf32, #tpu.memory_space<vmem>>, %arg6: memref<1x32xf32, #tpu.memory_space<vmem>>, %arg7: memref<32x32xf32, #tpu.memory_space<vmem>>, %arg8: memref<1x32xf32, #tpu.memory_space<vmem>>, %arg9: memref<32x32xf32, #tpu.memory_space<vmem>>, %arg10: memref<1x32xf32, #tpu.memory_space<vmem>>, %arg11: memref<1x32xf32, #tpu.memory_space<vmem>>, %arg12: memref<1x32xf32, #tpu.memory_space<vmem>>, %arg13: memref<1x8x32xf32, #tpu.memory_space<vmem>>, %arg14: memref<8x32xf32, #tpu.memory_space<vmem>>, %arg15: memref<8x32xf32, #tpu.memory_space<vmem>>, %arg16: memref<8x32xf32, #tpu.memory_space<vmem>>, %arg17: memref<8x32xf32, #tpu.memory_space<vmem>>) attributes {dimension_semantics = [#tpu.dimension_semantics<parallel>], iteration_bounds = array<i64: 2>, scalar_prefetch = 0 : i64, scratch_operands = 4 : i64, tpu.core_type = #tpu.core_type<tc>, window_params = [{transform_indices = @transform_0, window_bounds = array<i64: 1, 8, 32>}, {transform_indices = @transform_1, window_bounds = array<i64: 1, 8, 32>}, {pipeline_mode = #tpu.pipeline_mode<synchronous>, transform_indices = @transform_2, window_bounds = array<i64: 32, 32>}, {pipeline_mode = #tpu.pipeline_mode<synchronous>, transform_indices = @transform_3, window_bounds = array<i64: 1, 32>}, {pipeline_mode = #tpu.pipeline_mode<synchronous>, transform_indices = @transform_4, window_bounds = array<i64: 32, 32>}, {pipeline_mode = #tpu.pipeline_mode<synchronous>, transform_indices = @transform_5, window_bounds = array<i64: 1, 32>}, {pipeline_mode = #tpu.pipeline_mode<synchronous>, transform_indices = @transform_6, window_bounds = array<i64: 32, 32>}, {pipeline_mode = #tpu.pipeline_mode<synchronous>, transform_indices = @transform_7, window_bounds = array<i64: 1, 32>}, {pipeline_mode = #tpu.pipeline_mode<synchronous>, transform_indices = @transform_8, window_bounds = array<i64: 32, 32>}, {pipeline_mode = #tpu.pipeline_mode<synchronous>, transform_indices = @transform_9, window_bounds = array<i64: 1, 32>}, {pipeline_mode = #tpu.pipeline_mode<synchronous>, transform_indices = @transform_10, window_bounds = array<i64: 1, 32>}, {pipeline_mode = #tpu.pipeline_mode<synchronous>, transform_indices = @transform_11, window_bounds = array<i64: 1, 32>}, {transform_indices = @transform_12, window_bounds = array<i64: 1, 8, 32>}]} {
    %c0 = arith.constant 0 : index
    %c0_0 = arith.constant 0 : index
    %c0_1 = arith.constant 0 : index
    %0 = vector.load %arg1[%c0, %c0_0, %c0_1] : memref<1x8x32xf32, #tpu.memory_space<vmem>>, vector<1x8x32xf32>
    %1 = vector.shape_cast %0 : vector<1x8x32xf32> to vector<8x32xf32>
    %c0_2 = arith.constant 0 : index
    %c0_3 = arith.constant 0 : index
    %c0_4 = arith.constant 0 : index
    %2 = vector.load %arg2[%c0_2, %c0_3, %c0_4] : memref<1x8x32xf32, #tpu.memory_space<vmem>>, vector<1x8x32xf32>
    %3 = vector.shape_cast %2 : vector<1x8x32xf32> to vector<8x32xf32>
    %c0_5 = arith.constant 0 : index
    %c0_6 = arith.constant 0 : index
    %4 = vector.load %arg3[%c0_5, %c0_6] : memref<32x32xf32, #tpu.memory_space<vmem>>, vector<32x32xf32>
    %cst = arith.constant dense<0.000000e+00> : vector<8x32xf32>
    %5 = tpu.matmul %1, %4, %cst {dimension_numbers = #tpu.dot_dimension_numbers<[1], [0], [0], [1], [0, 0, 1, 1], [], []>} : vector<8x32xf32>, vector<32x32xf32>, vector<8x32xf32> -> vector<8x32xf32>
    %c0_7 = arith.constant 0 : index
    %c0_8 = arith.constant 0 : index
    %6 = vector.load %arg4[%c0_7, %c0_8] : memref<1x32xf32, #tpu.memory_space<vmem>>, vector<1x32xf32>
    %7 = vector.broadcast %6 : vector<1x32xf32> to vector<8x32xf32>
    %8 = arith.addf %5, %7 : vector<8x32xf32>
    %c0_9 = arith.constant 0 : index
    %c0_10 = arith.constant 0 : index
    %9 = vector.load %arg14[%c0_9, %c0_10] : memref<8x32xf32, #tpu.memory_space<vmem>>, vector<8x32xf32>
    tpu.vector_store %arg14[%c0_9, %c0_10], %8 {strides = array<i32>} : memref<8x32xf32, #tpu.memory_space<vmem>>, vector<8x32xf32>,
    %c0_11 = arith.constant 0 : index
    %c0_12 = arith.constant 0 : index
    %10 = vector.load %arg5[%c0_11, %c0_12] : memref<32x32xf32, #tpu.memory_space<vmem>>, vector<32x32xf32>
    %cst_13 = arith.constant dense<0.000000e+00> : vector<8x32xf32>
    %11 = tpu.matmul %3, %10, %cst_13 {dimension_numbers = #tpu.dot_dimension_numbers<[1], [0], [0], [1], [0, 0, 1, 1], [], []>} : vector<8x32xf32>, vector<32x32xf32>, vector<8x32xf32> -> vector<8x32xf32>
    %c0_14 = arith.constant 0 : index
    %c0_15 = arith.constant 0 : index
    %12 = vector.load %arg6[%c0_14, %c0_15] : memref<1x32xf32, #tpu.memory_space<vmem>>, vector<1x32xf32>
    %13 = vector.broadcast %12 : vector<1x32xf32> to vector<8x32xf32>
    %14 = arith.addf %11, %13 : vector<8x32xf32>
    %c0_16 = arith.constant 0 : index
    %c0_17 = arith.constant 0 : index
    %15 = vector.load %arg15[%c0_16, %c0_17] : memref<8x32xf32, #tpu.memory_space<vmem>>, vector<8x32xf32>
    tpu.vector_store %arg15[%c0_16, %c0_17], %14 {strides = array<i32>} : memref<8x32xf32, #tpu.memory_space<vmem>>, vector<8x32xf32>,
    %c0_18 = arith.constant 0 : index
    %c0_19 = arith.constant 0 : index
    %16 = vector.load %arg7[%c0_18, %c0_19] : memref<32x32xf32, #tpu.memory_space<vmem>>, vector<32x32xf32>
    %cst_20 = arith.constant dense<0.000000e+00> : vector<8x32xf32>
    %17 = tpu.matmul %3, %16, %cst_20 {dimension_numbers = #tpu.dot_dimension_numbers<[1], [0], [0], [1], [0, 0, 1, 1], [], []>} : vector<8x32xf32>, vector<32x32xf32>, vector<8x32xf32> -> vector<8x32xf32>
    %c0_21 = arith.constant 0 : index
    %c0_22 = arith.constant 0 : index
    %18 = vector.load %arg8[%c0_21, %c0_22] : memref<1x32xf32, #tpu.memory_space<vmem>>, vector<1x32xf32>
    %19 = vector.broadcast %18 : vector<1x32xf32> to vector<8x32xf32>
    %20 = arith.addf %17, %19 : vector<8x32xf32>
    %c0_23 = arith.constant 0 : index
    %c0_24 = arith.constant 0 : index
    %21 = vector.load %arg16[%c0_23, %c0_24] : memref<8x32xf32, #tpu.memory_space<vmem>>, vector<8x32xf32>
    tpu.vector_store %arg16[%c0_23, %c0_24], %20 {strides = array<i32>} : memref<8x32xf32, #tpu.memory_space<vmem>>, vector<8x32xf32>,
    %c0_25 = arith.constant 0 : index
    %c0_26 = arith.constant 0 : index
    %22 = vector.load %arg14[%c0_25, %c0_26] : memref<8x32xf32, #tpu.memory_space<vmem>>, vector<8x8xf32>
    %c0_27 = arith.constant 0 : index
    %c0_28 = arith.constant 0 : index
    %23 = vector.load %arg15[%c0_27, %c0_28] : memref<8x32xf32, #tpu.memory_space<vmem>>, vector<8x8xf32>
    %c0_29 = arith.constant 0 : index
    %c0_30 = arith.constant 0 : index
    %24 = vector.load %arg16[%c0_29, %c0_30] : memref<8x32xf32, #tpu.memory_space<vmem>>, vector<8x8xf32>
    %cst_31 = arith.constant dense<0.000000e+00> : vector<8x8xf32>
    %25 = tpu.matmul %22, %23, %cst_31 {dimension_numbers = #tpu.dot_dimension_numbers<[1], [1], [0], [0], [0, 0, 1, 0], [], []>} : vector<8x8xf32>, vector<8x8xf32>, vector<8x8xf32> -> vector<8x8xf32>
    %cst_32 = arith.constant 0.353553385 : f32
    %26 = vector.broadcast %cst_32 : f32 to vector<8x8xf32>
    %27 = arith.mulf %25, %26 : vector<8x8xf32>
    %cst_33 = arith.constant dense<0xFF800000> : vector<8xf32>
    %28 = vector.multi_reduction <maximumf>, %27, %cst_33 [1] : vector<8x8xf32> to vector<8xf32>
    %29 = vector.shape_cast %28 : vector<8xf32> to vector<8x1xf32>
    %30 = vector.broadcast %29 : vector<8x1xf32> to vector<8x8xf32>
    %31 = arith.subf %27, %30 : vector<8x8xf32>
    %32 = math.exp %31 : vector<8x8xf32>
    %cst_34 = arith.constant dense<0.000000e+00> : vector<8xf32>
    %33 = vector.multi_reduction <add>, %32, %cst_34 [1] : vector<8x8xf32> to vector<8xf32>
    %34 = vector.shape_cast %33 : vector<8xf32> to vector<8x1xf32>
    %cst_35 = arith.constant dense<0.000000e+00> : vector<8x8xf32>
    %35 = tpu.matmul %32, %24, %cst_35 {dimension_numbers = #tpu.dot_dimension_numbers<[1], [0], [0], [1], [0, 0, 1, 1], [], []>} : vector<8x8xf32>, vector<8x8xf32>, vector<8x8xf32> -> vector<8x8xf32>
    %36 = tpu.reciprocal %34 {approx = true} : vector<8x1xf32> -> vector<8x1xf32>
    %37 = vector.broadcast %36 : vector<8x1xf32> to vector<8x8xf32>
    %38 = arith.mulf %35, %37 : vector<8x8xf32>
    %c0_36 = arith.constant 0 : index
    %c0_37 = arith.constant 0 : index
    %39 = vector.load %arg17[%c0_36, %c0_37] : memref<8x32xf32, #tpu.memory_space<vmem>>, vector<8x8xf32>
    tpu.vector_store %arg17[%c0_36, %c0_37], %38 {strides = array<i32>} : memref<8x32xf32, #tpu.memory_space<vmem>>, vector<8x8xf32>,
    %c0_38 = arith.constant 0 : index
    %c8 = arith.constant 8 : index
    %40 = vector.load %arg14[%c0_38, %c8] : memref<8x32xf32, #tpu.memory_space<vmem>>, vector<8x8xf32>
    %c0_39 = arith.constant 0 : index
    %c8_40 = arith.constant 8 : index
    %41 = vector.load %arg15[%c0_39, %c8_40] : memref<8x32xf32, #tpu.memory_space<vmem>>, vector<8x8xf32>
    %c0_41 = arith.constant 0 : index
    %c8_42 = arith.constant 8 : index
    %42 = vector.load %arg16[%c0_41, %c8_42] : memref<8x32xf32, #tpu.memory_space<vmem>>, vector<8x8xf32>
    %cst_43 = arith.constant dense<0.000000e+00> : vector<8x8xf32>
    %43 = tpu.matmul %40, %41, %cst_43 {dimension_numbers = #tpu.dot_dimension_numbers<[1], [1], [0], [0], [0, 0, 1, 0], [], []>} : vector<8x8xf32>, vector<8x8xf32>, vector<8x8xf32> -> vector<8x8xf32>
    %cst_44 = arith.constant 0.353553385 : f32
    %44 = vector.broadcast %cst_44 : f32 to vector<8x8xf32>
    %45 = arith.mulf %43, %44 : vector<8x8xf32>
    %cst_45 = arith.constant dense<0xFF800000> : vector<8xf32>
    %46 = vector.multi_reduction <maximumf>, %45, %cst_45 [1] : vector<8x8xf32> to vector<8xf32>
    %47 = vector.shape_cast %46 : vector<8xf32> to vector<8x1xf32>
    %48 = vector.broadcast %47 : vector<8x1xf32> to vector<8x8xf32>
    %49 = arith.subf %45, %48 : vector<8x8xf32>
    %50 = math.exp %49 : vector<8x8xf32>
    %cst_46 = arith.constant dense<0.000000e+00> : vector<8xf32>
    %51 = vector.multi_reduction <add>, %50, %cst_46 [1] : vector<8x8xf32> to vector<8xf32>
    %52 = vector.shape_cast %51 : vector<8xf32> to vector<8x1xf32>
    %cst_47 = arith.constant dense<0.000000e+00> : vector<8x8xf32>
    %53 = tpu.matmul %50, %42, %cst_47 {dimension_numbers = #tpu.dot_dimension_numbers<[1], [0], [0], [1], [0, 0, 1, 1], [], []>} : vector<8x8xf32>, vector<8x8xf32>, vector<8x8xf32> -> vector<8x8xf32>
    %54 = tpu.reciprocal %52 {approx = true} : vector<8x1xf32> -> vector<8x1xf32>
    %55 = vector.broadcast %54 : vector<8x1xf32> to vector<8x8xf32>
    %56 = arith.mulf %53, %55 : vector<8x8xf32>
    %c0_48 = arith.constant 0 : index
    %c8_49 = arith.constant 8 : index
    %57 = vector.load %arg17[%c0_48, %c8_49] : memref<8x32xf32, #tpu.memory_space<vmem>>, vector<8x8xf32>
    tpu.vector_store %arg17[%c0_48, %c8_49], %56 {strides = array<i32>} : memref<8x32xf32, #tpu.memory_space<vmem>>, vector<8x8xf32>,
    %c0_50 = arith.constant 0 : index
    %c16 = arith.constant 16 : index
    %58 = vector.load %arg14[%c0_50, %c16] : memref<8x32xf32, #tpu.memory_space<vmem>>, vector<8x8xf32>
    %c0_51 = arith.constant 0 : index
    %c16_52 = arith.constant 16 : index
    %59 = vector.load %arg15[%c0_51, %c16_52] : memref<8x32xf32, #tpu.memory_space<vmem>>, vector<8x8xf32>
    %c0_53 = arith.constant 0 : index
    %c16_54 = arith.constant 16 : index
    %60 = vector.load %arg16[%c0_53, %c16_54] : memref<8x32xf32, #tpu.memory_space<vmem>>, vector<8x8xf32>
    %cst_55 = arith.constant dense<0.000000e+00> : vector<8x8xf32>
    %61 = tpu.matmul %58, %59, %cst_55 {dimension_numbers = #tpu.dot_dimension_numbers<[1], [1], [0], [0], [0, 0, 1, 0], [], []>} : vector<8x8xf32>, vector<8x8xf32>, vector<8x8xf32> -> vector<8x8xf32>
    %cst_56 = arith.constant 0.353553385 : f32
    %62 = vector.broadcast %cst_56 : f32 to vector<8x8xf32>
    %63 = arith.mulf %61, %62 : vector<8x8xf32>
    %cst_57 = arith.constant dense<0xFF800000> : vector<8xf32>
    %64 = vector.multi_reduction <maximumf>, %63, %cst_57 [1] : vector<8x8xf32> to vector<8xf32>
    %65 = vector.shape_cast %64 : vector<8xf32> to vector<8x1xf32>
    %66 = vector.broadcast %65 : vector<8x1xf32> to vector<8x8xf32>
    %67 = arith.subf %63, %66 : vector<8x8xf32>
    %68 = math.exp %67 : vector<8x8xf32>
    %cst_58 = arith.constant dense<0.000000e+00> : vector<8xf32>
    %69 = vector.multi_reduction <add>, %68, %cst_58 [1] : vector<8x8xf32> to vector<8xf32>
    %70 = vector.shape_cast %69 : vector<8xf32> to vector<8x1xf32>
    %cst_59 = arith.constant dense<0.000000e+00> : vector<8x8xf32>
    %71 = tpu.matmul %68, %60, %cst_59 {dimension_numbers = #tpu.dot_dimension_numbers<[1], [0], [0], [1], [0, 0, 1, 1], [], []>} : vector<8x8xf32>, vector<8x8xf32>, vector<8x8xf32> -> vector<8x8xf32>
    %72 = tpu.reciprocal %70 {approx = true} : vector<8x1xf32> -> vector<8x1xf32>
    %73 = vector.broadcast %72 : vector<8x1xf32> to vector<8x8xf32>
    %74 = arith.mulf %71, %73 : vector<8x8xf32>
    %c0_60 = arith.constant 0 : index
    %c16_61 = arith.constant 16 : index
    %75 = vector.load %arg17[%c0_60, %c16_61] : memref<8x32xf32, #tpu.memory_space<vmem>>, vector<8x8xf32>
    tpu.vector_store %arg17[%c0_60, %c16_61], %74 {strides = array<i32>} : memref<8x32xf32, #tpu.memory_space<vmem>>, vector<8x8xf32>,
    %c0_62 = arith.constant 0 : index
    %c24 = arith.constant 24 : index
    %76 = vector.load %arg14[%c0_62, %c24] : memref<8x32xf32, #tpu.memory_space<vmem>>, vector<8x8xf32>
    %c0_63 = arith.constant 0 : index
    %c24_64 = arith.constant 24 : index
    %77 = vector.load %arg15[%c0_63, %c24_64] : memref<8x32xf32, #tpu.memory_space<vmem>>, vector<8x8xf32>
    %c0_65 = arith.constant 0 : index
    %c24_66 = arith.constant 24 : index
    %78 = vector.load %arg16[%c0_65, %c24_66] : memref<8x32xf32, #tpu.memory_space<vmem>>, vector<8x8xf32>
    %cst_67 = arith.constant dense<0.000000e+00> : vector<8x8xf32>
    %79 = tpu.matmul %76, %77, %cst_67 {dimension_numbers = #tpu.dot_dimension_numbers<[1], [1], [0], [0], [0, 0, 1, 0], [], []>} : vector<8x8xf32>, vector<8x8xf32>, vector<8x8xf32> -> vector<8x8xf32>
    %cst_68 = arith.constant 0.353553385 : f32
    %80 = vector.broadcast %cst_68 : f32 to vector<8x8xf32>
    %81 = arith.mulf %79, %80 : vector<8x8xf32>
    %cst_69 = arith.constant dense<0xFF800000> : vector<8xf32>
    %82 = vector.multi_reduction <maximumf>, %81, %cst_69 [1] : vector<8x8xf32> to vector<8xf32>
    %83 = vector.shape_cast %82 : vector<8xf32> to vector<8x1xf32>
    %84 = vector.broadcast %83 : vector<8x1xf32> to vector<8x8xf32>
    %85 = arith.subf %81, %84 : vector<8x8xf32>
    %86 = math.exp %85 : vector<8x8xf32>
    %cst_70 = arith.constant dense<0.000000e+00> : vector<8xf32>
    %87 = vector.multi_reduction <add>, %86, %cst_70 [1] : vector<8x8xf32> to vector<8xf32>
    %88 = vector.shape_cast %87 : vector<8xf32> to vector<8x1xf32>
    %cst_71 = arith.constant dense<0.000000e+00> : vector<8x8xf32>
    %89 = tpu.matmul %86, %78, %cst_71 {dimension_numbers = #tpu.dot_dimension_numbers<[1], [0], [0], [1], [0, 0, 1, 1], [], []>} : vector<8x8xf32>, vector<8x8xf32>, vector<8x8xf32> -> vector<8x8xf32>
    %90 = tpu.reciprocal %88 {approx = true} : vector<8x1xf32> -> vector<8x1xf32>
    %91 = vector.broadcast %90 : vector<8x1xf32> to vector<8x8xf32>
    %92 = arith.mulf %89, %91 : vector<8x8xf32>
    %c0_72 = arith.constant 0 : index
    %c24_73 = arith.constant 24 : index
    %93 = vector.load %arg17[%c0_72, %c24_73] : memref<8x32xf32, #tpu.memory_space<vmem>>, vector<8x8xf32>
    tpu.vector_store %arg17[%c0_72, %c24_73], %92 {strides = array<i32>} : memref<8x32xf32, #tpu.memory_space<vmem>>, vector<8x8xf32>,
    %c0_74 = arith.constant 0 : index
    %c0_75 = arith.constant 0 : index
    %94 = vector.load %arg17[%c0_74, %c0_75] : memref<8x32xf32, #tpu.memory_space<vmem>>, vector<8x32xf32>
    %c0_76 = arith.constant 0 : index
    %c0_77 = arith.constant 0 : index
    %95 = vector.load %arg9[%c0_76, %c0_77] : memref<32x32xf32, #tpu.memory_space<vmem>>, vector<32x32xf32>
    %cst_78 = arith.constant dense<0.000000e+00> : vector<8x32xf32>
    %96 = tpu.matmul %94, %95, %cst_78 {dimension_numbers = #tpu.dot_dimension_numbers<[1], [0], [0], [1], [0, 0, 1, 1], [], []>} : vector<8x32xf32>, vector<32x32xf32>, vector<8x32xf32> -> vector<8x32xf32>
    %c0_79 = arith.constant 0 : index
    %c0_80 = arith.constant 0 : index
    %97 = vector.load %arg10[%c0_79, %c0_80] : memref<1x32xf32, #tpu.memory_space<vmem>>, vector<1x32xf32>
    %98 = vector.broadcast %97 : vector<1x32xf32> to vector<8x32xf32>
    %99 = arith.addf %96, %98 : vector<8x32xf32>
    %100 = arith.addf %1, %99 : vector<8x32xf32>
    %cst_81 = arith.constant dense<0.000000e+00> : vector<8xf32>
    %101 = vector.multi_reduction <add>, %100, %cst_81 [1] : vector<8x32xf32> to vector<8xf32>
    %102 = vector.shape_cast %101 : vector<8xf32> to vector<8x1xf32>
    %cst_82 = arith.constant 3.200000e+01 : f32
    %103 = vector.broadcast %cst_82 : f32 to vector<8x1xf32>
    %104 = arith.divf %102, %103 : vector<8x1xf32>
    %105 = vector.broadcast %104 : vector<8x1xf32> to vector<8x32xf32>
    %106 = arith.subf %100, %105 : vector<8x32xf32>
    %107 = arith.mulf %106, %106 : vector<8x32xf32>
    %cst_83 = arith.constant dense<0.000000e+00> : vector<8xf32>
    %108 = vector.multi_reduction <add>, %107, %cst_83 [1] : vector<8x32xf32> to vector<8xf32>
    %109 = vector.shape_cast %108 : vector<8xf32> to vector<8x1xf32>
    %cst_84 = arith.constant 3.200000e+01 : f32
    %110 = vector.broadcast %cst_84 : f32 to vector<8x1xf32>
    %111 = arith.divf %109, %110 : vector<8x1xf32>
    %112 = vector.broadcast %104 : vector<8x1xf32> to vector<8x32xf32>
    %113 = arith.subf %100, %112 : vector<8x32xf32>
    %cst_85 = arith.constant 9.99999974E-6 : f32
    %114 = vector.broadcast %cst_85 : f32 to vector<8x1xf32>
    %115 = arith.addf %111, %114 : vector<8x1xf32>
    %116 = math.rsqrt %115 : vector<8x1xf32>
    %117 = vector.broadcast %116 : vector<8x1xf32> to vector<8x32xf32>
    %118 = arith.mulf %113, %117 : vector<8x32xf32>
    %c0_86 = arith.constant 0 : index
    %c0_87 = arith.constant 0 : index
    %119 = vector.load %arg11[%c0_86, %c0_87] : memref<1x32xf32, #tpu.memory_space<vmem>>, vector<1x32xf32>
    %120 = vector.broadcast %119 : vector<1x32xf32> to vector<8x32xf32>
    %121 = arith.mulf %118, %120 : vector<8x32xf32>
    %c0_88 = arith.constant 0 : index
    %c0_89 = arith.constant 0 : index
    %122 = vector.load %arg12[%c0_88, %c0_89] : memref<1x32xf32, #tpu.memory_space<vmem>>, vector<1x32xf32>
    %123 = vector.broadcast %122 : vector<1x32xf32> to vector<8x32xf32>
    %124 = arith.addf %121, %123 : vector<8x32xf32>
    %c0_90 = arith.constant 0 : index
    %c0_91 = arith.constant 0 : index
    %c0_92 = arith.constant 0 : index
    %125 = vector.load %arg13[%c0_90, %c0_91, %c0_92] : memref<1x8x32xf32, #tpu.memory_space<vmem>>, vector<1x8x32xf32>
    %126 = vector.shape_cast %125 : vector<1x8x32xf32> to vector<8x32xf32>
    %127 = vector.shape_cast %124 : vector<8x32xf32> to vector<1x8x32xf32>
    tpu.vector_store %arg13[%c0_90, %c0_91, %c0_92], %127 {strides = array<i32>} : memref<1x8x32xf32, #tpu.memory_space<vmem>>, vector<1x8x32xf32>,
    return
  }
  func.func @transform_0(%arg0: i32) -> (i32, i32, i32) {
    %c0_i32 = arith.constant 0 : i32
    %c0_i32_0 = arith.constant 0 : i32
    %c0_i32_1 = arith.constant 0 : i32
    return %arg0, %c0_i32, %c0_i32_0 : i32, i32, i32
  }
  func.func @transform_1(%arg0: i32) -> (i32, i32, i32) {
    %c0_i32 = arith.constant 0 : i32
    %c0_i32_0 = arith.constant 0 : i32
    %c0_i32_1 = arith.constant 0 : i32
    return %arg0, %c0_i32, %c0_i32_0 : i32, i32, i32
  }
  func.func @transform_2(%arg0: i32) -> (i32, i32) {
    %c0_i32 = arith.constant 0 : i32
    %c0_i32_0 = arith.constant 0 : i32
    %c0_i32_1 = arith.constant 0 : i32
    return %c0_i32, %c0_i32_0 : i32, i32
  }
  func.func @transform_3(%arg0: i32) -> (i32, i32) {
    %c0_i32 = arith.constant 0 : i32
    %c0_i32_0 = arith.constant 0 : i32
    %c0_i32_1 = arith.constant 0 : i32
    return %c0_i32, %c0_i32_0 : i32, i32
  }
  func.func @transform_4(%arg0: i32) -> (i32, i32) {
    %c0_i32 = arith.constant 0 : i32
    %c0_i32_0 = arith.constant 0 : i32
    %c0_i32_1 = arith.constant 0 : i32
    return %c0_i32, %c0_i32_0 : i32, i32
  }
  func.func @transform_5(%arg0: i32) -> (i32, i32) {
    %c0_i32 = arith.constant 0 : i32
    %c0_i32_0 = arith.constant 0 : i32
    %c0_i32_1 = arith.constant 0 : i32
    return %c0_i32, %c0_i32_0 : i32, i32
  }
  func.func @transform_6(%arg0: i32) -> (i32, i32) {
    %c0_i32 = arith.constant 0 : i32
    %c0_i32_0 = arith.constant 0 : i32
    %c0_i32_1 = arith.constant 0 : i32
    return %c0_i32, %c0_i32_0 : i32, i32
  }
  func.func @transform_7(%arg0: i32) -> (i32, i32) {
    %c0_i32 = arith.constant 0 : i32
    %c0_i32_0 = arith.constant 0 : i32
    %c0_i32_1 = arith.constant 0 : i32
    return %c0_i32, %c0_i32_0 : i32, i32
  }
  func.func @transform_8(%arg0: i32) -> (i32, i32) {
    %c0_i32 = arith.constant 0 : i32
    %c0_i32_0 = arith.constant 0 : i32
    %c0_i32_1 = arith.constant 0 : i32
    return %c0_i32, %c0_i32_0 : i32, i32
  }
  func.func @transform_9(%arg0: i32) -> (i32, i32) {
    %c0_i32 = arith.constant 0 : i32
    %c0_i32_0 = arith.constant 0 : i32
    %c0_i32_1 = arith.constant 0 : i32
    return %c0_i32, %c0_i32_0 : i32, i32
  }
  func.func @transform_10(%arg0: i32) -> (i32, i32) {
    %c0_i32 = arith.constant 0 : i32
    %c0_i32_0 = arith.constant 0 : i32
    %c0_i32_1 = arith.constant 0 : i32
    return %c0_i32, %c0_i32_0 : i32, i32
  }
  func.func @transform_11(%arg0: i32) -> (i32, i32) {
    %c0_i32 = arith.constant 0 : i32
    %c0_i32_0 = arith.constant 0 : i32
    %c0_i32_1 = arith.constant 0 : i32
    return %c0_i32, %c0_i32_0 : i32, i32
  }
  func.func @transform_12(%arg0: i32) -> (i32, i32, i32) {
    %c0_i32 = arith.constant 0 : i32
    %c0_i32_0 = arith.constant 0 : i32
    %c0_i32_1 = arith.constant 0 : i32
    return %arg0, %c0_i32, %c0_i32_0 : i32, i32, i32
  }
}

module attributes {stable_mosaic.version = 11 : i64} {
  func.func @_attn_block_kernel(%arg0: i32, %arg1: memref<1x8x32xf32, #tpu.memory_space<vmem>>, %arg2: memref<1x16x32xf32, #tpu.memory_space<vmem>>, %arg3: memref<32x32xf32, #tpu.memory_space<vmem>>, %arg4: memref<1x32xf32, #tpu.memory_space<vmem>>, %arg5: memref<32x32xf32, #tpu.memory_space<vmem>>, %arg6: memref<1x32xf32, #tpu.memory_space<vmem>>, %arg7: memref<32x32xf32, #tpu.memory_space<vmem>>, %arg8: memref<1x32xf32, #tpu.memory_space<vmem>>, %arg9: memref<32x32xf32, #tpu.memory_space<vmem>>, %arg10: memref<1x32xf32, #tpu.memory_space<vmem>>, %arg11: memref<1x32xf32, #tpu.memory_space<vmem>>, %arg12: memref<1x32xf32, #tpu.memory_space<vmem>>, %arg13: memref<1x8x32xf32, #tpu.memory_space<vmem>>, %arg14: memref<8x32xf32, #tpu.memory_space<vmem>>, %arg15: memref<16x32xf32, #tpu.memory_space<vmem>>, %arg16: memref<16x32xf32, #tpu.memory_space<vmem>>, %arg17: memref<8x32xf32, #tpu.memory_space<vmem>>) attributes {dimension_semantics = [#tpu.dimension_semantics<parallel>], iteration_bounds = array<i64: 2>, scalar_prefetch = 0 : i64, scratch_operands = 4 : i64, tpu.core_type = #tpu.core_type<tc>, window_params = [{transform_indices = @transform_0, window_bounds = array<i64: 1, 8, 32>}, {transform_indices = @transform_1, window_bounds = array<i64: 1, 16, 32>}, {pipeline_mode = #tpu.pipeline_mode<synchronous>, transform_indices = @transform_2, window_bounds = array<i64: 32, 32>}, {pipeline_mode = #tpu.pipeline_mode<synchronous>, transform_indices = @transform_3, window_bounds = array<i64: 1, 32>}, {pipeline_mode = #tpu.pipeline_mode<synchronous>, transform_indices = @transform_4, window_bounds = array<i64: 32, 32>}, {pipeline_mode = #tpu.pipeline_mode<synchronous>, transform_indices = @transform_5, window_bounds = array<i64: 1, 32>}, {pipeline_mode = #tpu.pipeline_mode<synchronous>, transform_indices = @transform_6, window_bounds = array<i64: 32, 32>}, {pipeline_mode = #tpu.pipeline_mode<synchronous>, transform_indices = @transform_7, window_bounds = array<i64: 1, 32>}, {pipeline_mode = #tpu.pipeline_mode<synchronous>, transform_indices = @transform_8, window_bounds = array<i64: 32, 32>}, {pipeline_mode = #tpu.pipeline_mode<synchronous>, transform_indices = @transform_9, window_bounds = array<i64: 1, 32>}, {pipeline_mode = #tpu.pipeline_mode<synchronous>, transform_indices = @transform_10, window_bounds = array<i64: 1, 32>}, {pipeline_mode = #tpu.pipeline_mode<synchronous>, transform_indices = @transform_11, window_bounds = array<i64: 1, 32>}, {transform_indices = @transform_12, window_bounds = array<i64: 1, 8, 32>}]} {
    %c0 = arith.constant 0 : index
    %c0_0 = arith.constant 0 : index
    %c0_1 = arith.constant 0 : index
    %0 = vector.load %arg1[%c0, %c0_0, %c0_1] : memref<1x8x32xf32, #tpu.memory_space<vmem>>, vector<1x8x32xf32>
    %1 = vector.shape_cast %0 : vector<1x8x32xf32> to vector<8x32xf32>
    %c0_2 = arith.constant 0 : index
    %c0_3 = arith.constant 0 : index
    %c0_4 = arith.constant 0 : index
    %2 = vector.load %arg2[%c0_2, %c0_3, %c0_4] : memref<1x16x32xf32, #tpu.memory_space<vmem>>, vector<1x16x32xf32>
    %3 = vector.shape_cast %2 : vector<1x16x32xf32> to vector<16x32xf32>
    %c0_5 = arith.constant 0 : index
    %c0_6 = arith.constant 0 : index
    %4 = vector.load %arg3[%c0_5, %c0_6] : memref<32x32xf32, #tpu.memory_space<vmem>>, vector<32x32xf32>
    %cst = arith.constant dense<0.000000e+00> : vector<8x32xf32>
    %5 = tpu.matmul %1, %4, %cst {dimension_numbers = #tpu.dot_dimension_numbers<[1], [0], [0], [1], [0, 0, 1, 1], [], []>} : vector<8x32xf32>, vector<32x32xf32>, vector<8x32xf32> -> vector<8x32xf32>
    %c0_7 = arith.constant 0 : index
    %c0_8 = arith.constant 0 : index
    %6 = vector.load %arg4[%c0_7, %c0_8] : memref<1x32xf32, #tpu.memory_space<vmem>>, vector<1x32xf32>
    %7 = vector.broadcast %6 : vector<1x32xf32> to vector<8x32xf32>
    %8 = arith.addf %5, %7 : vector<8x32xf32>
    %c0_9 = arith.constant 0 : index
    %c0_10 = arith.constant 0 : index
    %9 = vector.load %arg14[%c0_9, %c0_10] : memref<8x32xf32, #tpu.memory_space<vmem>>, vector<8x32xf32>
    tpu.vector_store %arg14[%c0_9, %c0_10], %8 {strides = array<i32>} : memref<8x32xf32, #tpu.memory_space<vmem>>, vector<8x32xf32>,
    %c0_11 = arith.constant 0 : index
    %c0_12 = arith.constant 0 : index
    %10 = vector.load %arg5[%c0_11, %c0_12] : memref<32x32xf32, #tpu.memory_space<vmem>>, vector<32x32xf32>
    %cst_13 = arith.constant dense<0.000000e+00> : vector<16x32xf32>
    %11 = tpu.matmul %3, %10, %cst_13 {dimension_numbers = #tpu.dot_dimension_numbers<[1], [0], [0], [1], [0, 0, 1, 1], [], []>} : vector<16x32xf32>, vector<32x32xf32>, vector<16x32xf32> -> vector<16x32xf32>
    %c0_14 = arith.constant 0 : index
    %c0_15 = arith.constant 0 : index
    %12 = vector.load %arg6[%c0_14, %c0_15] : memref<1x32xf32, #tpu.memory_space<vmem>>, vector<1x32xf32>
    %13 = vector.broadcast %12 : vector<1x32xf32> to vector<16x32xf32>
    %14 = arith.addf %11, %13 : vector<16x32xf32>
    %c0_16 = arith.constant 0 : index
    %c0_17 = arith.constant 0 : index
    %15 = vector.load %arg15[%c0_16, %c0_17] : memref<16x32xf32, #tpu.memory_space<vmem>>, vector<16x32xf32>
    tpu.vector_store %arg15[%c0_16, %c0_17], %14 {strides = array<i32>} : memref<16x32xf32, #tpu.memory_space<vmem>>, vector<16x32xf32>,
    %c0_18 = arith.constant 0 : index
    %c0_19 = arith.constant 0 : index
    %16 = vector.load %arg7[%c0_18, %c0_19] : memref<32x32xf32, #tpu.memory_space<vmem>>, vector<32x32xf32>
    %cst_20 = arith.constant dense<0.000000e+00> : vector<16x32xf32>
    %17 = tpu.matmul %3, %16, %cst_20 {dimension_numbers = #tpu.dot_dimension_numbers<[1], [0], [0], [1], [0, 0, 1, 1], [], []>} : vector<16x32xf32>, vector<32x32xf32>, vector<16x32xf32> -> vector<16x32xf32>
    %c0_21 = arith.constant 0 : index
    %c0_22 = arith.constant 0 : index
    %18 = vector.load %arg8[%c0_21, %c0_22] : memref<1x32xf32, #tpu.memory_space<vmem>>, vector<1x32xf32>
    %19 = vector.broadcast %18 : vector<1x32xf32> to vector<16x32xf32>
    %20 = arith.addf %17, %19 : vector<16x32xf32>
    %c0_23 = arith.constant 0 : index
    %c0_24 = arith.constant 0 : index
    %21 = vector.load %arg16[%c0_23, %c0_24] : memref<16x32xf32, #tpu.memory_space<vmem>>, vector<16x32xf32>
    tpu.vector_store %arg16[%c0_23, %c0_24], %20 {strides = array<i32>} : memref<16x32xf32, #tpu.memory_space<vmem>>, vector<16x32xf32>,
    %c0_25 = arith.constant 0 : index
    %c0_26 = arith.constant 0 : index
    %22 = vector.load %arg14[%c0_25, %c0_26] : memref<8x32xf32, #tpu.memory_space<vmem>>, vector<8x8xf32>
    %c0_27 = arith.constant 0 : index
    %c0_28 = arith.constant 0 : index
    %23 = vector.load %arg15[%c0_27, %c0_28] : memref<16x32xf32, #tpu.memory_space<vmem>>, vector<16x8xf32>
    %c0_29 = arith.constant 0 : index
    %c0_30 = arith.constant 0 : index
    %24 = vector.load %arg16[%c0_29, %c0_30] : memref<16x32xf32, #tpu.memory_space<vmem>>, vector<16x8xf32>
    %cst_31 = arith.constant dense<0.000000e+00> : vector<8x16xf32>
    %25 = tpu.matmul %22, %23, %cst_31 {dimension_numbers = #tpu.dot_dimension_numbers<[1], [1], [0], [0], [0, 0, 1, 0], [], []>} : vector<8x8xf32>, vector<16x8xf32>, vector<8x16xf32> -> vector<8x16xf32>
    %cst_32 = arith.constant 0.353553385 : f32
    %26 = vector.broadcast %cst_32 : f32 to vector<8x16xf32>
    %27 = arith.mulf %25, %26 : vector<8x16xf32>
    %cst_33 = arith.constant dense<0xFF800000> : vector<8xf32>
    %28 = vector.multi_reduction <maximumf>, %27, %cst_33 [1] : vector<8x16xf32> to vector<8xf32>
    %29 = vector.shape_cast %28 : vector<8xf32> to vector<8x1xf32>
    %30 = vector.broadcast %29 : vector<8x1xf32> to vector<8x16xf32>
    %31 = arith.subf %27, %30 : vector<8x16xf32>
    %32 = math.exp %31 : vector<8x16xf32>
    %cst_34 = arith.constant dense<0.000000e+00> : vector<8xf32>
    %33 = vector.multi_reduction <add>, %32, %cst_34 [1] : vector<8x16xf32> to vector<8xf32>
    %34 = vector.shape_cast %33 : vector<8xf32> to vector<8x1xf32>
    %cst_35 = arith.constant dense<0.000000e+00> : vector<8x8xf32>
    %35 = tpu.matmul %32, %24, %cst_35 {dimension_numbers = #tpu.dot_dimension_numbers<[1], [0], [0], [1], [0, 0, 1, 1], [], []>} : vector<8x16xf32>, vector<16x8xf32>, vector<8x8xf32> -> vector<8x8xf32>
    %36 = tpu.reciprocal %34 {approx = true} : vector<8x1xf32> -> vector<8x1xf32>
    %37 = vector.broadcast %36 : vector<8x1xf32> to vector<8x8xf32>
    %38 = arith.mulf %35, %37 : vector<8x8xf32>
    %c0_36 = arith.constant 0 : index
    %c0_37 = arith.constant 0 : index
    %39 = vector.load %arg17[%c0_36, %c0_37] : memref<8x32xf32, #tpu.memory_space<vmem>>, vector<8x8xf32>
    tpu.vector_store %arg17[%c0_36, %c0_37], %38 {strides = array<i32>} : memref<8x32xf32, #tpu.memory_space<vmem>>, vector<8x8xf32>,
    %c0_38 = arith.constant 0 : index
    %c8 = arith.constant 8 : index
    %40 = vector.load %arg14[%c0_38, %c8] : memref<8x32xf32, #tpu.memory_space<vmem>>, vector<8x8xf32>
    %c0_39 = arith.constant 0 : index
    %c8_40 = arith.constant 8 : index
    %41 = vector.load %arg15[%c0_39, %c8_40] : memref<16x32xf32, #tpu.memory_space<vmem>>, vector<16x8xf32>
    %c0_41 = arith.constant 0 : index
    %c8_42 = arith.constant 8 : index
    %42 = vector.load %arg16[%c0_41, %c8_42] : memref<16x32xf32, #tpu.memory_space<vmem>>, vector<16x8xf32>
    %cst_43 = arith.constant dense<0.000000e+00> : vector<8x16xf32>
    %43 = tpu.matmul %40, %41, %cst_43 {dimension_numbers = #tpu.dot_dimension_numbers<[1], [1], [0], [0], [0, 0, 1, 0], [], []>} : vector<8x8xf32>, vector<16x8xf32>, vector<8x16xf32> -> vector<8x16xf32>
    %cst_44 = arith.constant 0.353553385 : f32
    %44 = vector.broadcast %cst_44 : f32 to vector<8x16xf32>
    %45 = arith.mulf %43, %44 : vector<8x16xf32>
    %cst_45 = arith.constant dense<0xFF800000> : vector<8xf32>
    %46 = vector.multi_reduction <maximumf>, %45, %cst_45 [1] : vector<8x16xf32> to vector<8xf32>
    %47 = vector.shape_cast %46 : vector<8xf32> to vector<8x1xf32>
    %48 = vector.broadcast %47 : vector<8x1xf32> to vector<8x16xf32>
    %49 = arith.subf %45, %48 : vector<8x16xf32>
    %50 = math.exp %49 : vector<8x16xf32>
    %cst_46 = arith.constant dense<0.000000e+00> : vector<8xf32>
    %51 = vector.multi_reduction <add>, %50, %cst_46 [1] : vector<8x16xf32> to vector<8xf32>
    %52 = vector.shape_cast %51 : vector<8xf32> to vector<8x1xf32>
    %cst_47 = arith.constant dense<0.000000e+00> : vector<8x8xf32>
    %53 = tpu.matmul %50, %42, %cst_47 {dimension_numbers = #tpu.dot_dimension_numbers<[1], [0], [0], [1], [0, 0, 1, 1], [], []>} : vector<8x16xf32>, vector<16x8xf32>, vector<8x8xf32> -> vector<8x8xf32>
    %54 = tpu.reciprocal %52 {approx = true} : vector<8x1xf32> -> vector<8x1xf32>
    %55 = vector.broadcast %54 : vector<8x1xf32> to vector<8x8xf32>
    %56 = arith.mulf %53, %55 : vector<8x8xf32>
    %c0_48 = arith.constant 0 : index
    %c8_49 = arith.constant 8 : index
    %57 = vector.load %arg17[%c0_48, %c8_49] : memref<8x32xf32, #tpu.memory_space<vmem>>, vector<8x8xf32>
    tpu.vector_store %arg17[%c0_48, %c8_49], %56 {strides = array<i32>} : memref<8x32xf32, #tpu.memory_space<vmem>>, vector<8x8xf32>,
    %c0_50 = arith.constant 0 : index
    %c16 = arith.constant 16 : index
    %58 = vector.load %arg14[%c0_50, %c16] : memref<8x32xf32, #tpu.memory_space<vmem>>, vector<8x8xf32>
    %c0_51 = arith.constant 0 : index
    %c16_52 = arith.constant 16 : index
    %59 = vector.load %arg15[%c0_51, %c16_52] : memref<16x32xf32, #tpu.memory_space<vmem>>, vector<16x8xf32>
    %c0_53 = arith.constant 0 : index
    %c16_54 = arith.constant 16 : index
    %60 = vector.load %arg16[%c0_53, %c16_54] : memref<16x32xf32, #tpu.memory_space<vmem>>, vector<16x8xf32>
    %cst_55 = arith.constant dense<0.000000e+00> : vector<8x16xf32>
    %61 = tpu.matmul %58, %59, %cst_55 {dimension_numbers = #tpu.dot_dimension_numbers<[1], [1], [0], [0], [0, 0, 1, 0], [], []>} : vector<8x8xf32>, vector<16x8xf32>, vector<8x16xf32> -> vector<8x16xf32>
    %cst_56 = arith.constant 0.353553385 : f32
    %62 = vector.broadcast %cst_56 : f32 to vector<8x16xf32>
    %63 = arith.mulf %61, %62 : vector<8x16xf32>
    %cst_57 = arith.constant dense<0xFF800000> : vector<8xf32>
    %64 = vector.multi_reduction <maximumf>, %63, %cst_57 [1] : vector<8x16xf32> to vector<8xf32>
    %65 = vector.shape_cast %64 : vector<8xf32> to vector<8x1xf32>
    %66 = vector.broadcast %65 : vector<8x1xf32> to vector<8x16xf32>
    %67 = arith.subf %63, %66 : vector<8x16xf32>
    %68 = math.exp %67 : vector<8x16xf32>
    %cst_58 = arith.constant dense<0.000000e+00> : vector<8xf32>
    %69 = vector.multi_reduction <add>, %68, %cst_58 [1] : vector<8x16xf32> to vector<8xf32>
    %70 = vector.shape_cast %69 : vector<8xf32> to vector<8x1xf32>
    %cst_59 = arith.constant dense<0.000000e+00> : vector<8x8xf32>
    %71 = tpu.matmul %68, %60, %cst_59 {dimension_numbers = #tpu.dot_dimension_numbers<[1], [0], [0], [1], [0, 0, 1, 1], [], []>} : vector<8x16xf32>, vector<16x8xf32>, vector<8x8xf32> -> vector<8x8xf32>
    %72 = tpu.reciprocal %70 {approx = true} : vector<8x1xf32> -> vector<8x1xf32>
    %73 = vector.broadcast %72 : vector<8x1xf32> to vector<8x8xf32>
    %74 = arith.mulf %71, %73 : vector<8x8xf32>
    %c0_60 = arith.constant 0 : index
    %c16_61 = arith.constant 16 : index
    %75 = vector.load %arg17[%c0_60, %c16_61] : memref<8x32xf32, #tpu.memory_space<vmem>>, vector<8x8xf32>
    tpu.vector_store %arg17[%c0_60, %c16_61], %74 {strides = array<i32>} : memref<8x32xf32, #tpu.memory_space<vmem>>, vector<8x8xf32>,
    %c0_62 = arith.constant 0 : index
    %c24 = arith.constant 24 : index
    %76 = vector.load %arg14[%c0_62, %c24] : memref<8x32xf32, #tpu.memory_space<vmem>>, vector<8x8xf32>
    %c0_63 = arith.constant 0 : index
    %c24_64 = arith.constant 24 : index
    %77 = vector.load %arg15[%c0_63, %c24_64] : memref<16x32xf32, #tpu.memory_space<vmem>>, vector<16x8xf32>
    %c0_65 = arith.constant 0 : index
    %c24_66 = arith.constant 24 : index
    %78 = vector.load %arg16[%c0_65, %c24_66] : memref<16x32xf32, #tpu.memory_space<vmem>>, vector<16x8xf32>
    %cst_67 = arith.constant dense<0.000000e+00> : vector<8x16xf32>
    %79 = tpu.matmul %76, %77, %cst_67 {dimension_numbers = #tpu.dot_dimension_numbers<[1], [1], [0], [0], [0, 0, 1, 0], [], []>} : vector<8x8xf32>, vector<16x8xf32>, vector<8x16xf32> -> vector<8x16xf32>
    %cst_68 = arith.constant 0.353553385 : f32
    %80 = vector.broadcast %cst_68 : f32 to vector<8x16xf32>
    %81 = arith.mulf %79, %80 : vector<8x16xf32>
    %cst_69 = arith.constant dense<0xFF800000> : vector<8xf32>
    %82 = vector.multi_reduction <maximumf>, %81, %cst_69 [1] : vector<8x16xf32> to vector<8xf32>
    %83 = vector.shape_cast %82 : vector<8xf32> to vector<8x1xf32>
    %84 = vector.broadcast %83 : vector<8x1xf32> to vector<8x16xf32>
    %85 = arith.subf %81, %84 : vector<8x16xf32>
    %86 = math.exp %85 : vector<8x16xf32>
    %cst_70 = arith.constant dense<0.000000e+00> : vector<8xf32>
    %87 = vector.multi_reduction <add>, %86, %cst_70 [1] : vector<8x16xf32> to vector<8xf32>
    %88 = vector.shape_cast %87 : vector<8xf32> to vector<8x1xf32>
    %cst_71 = arith.constant dense<0.000000e+00> : vector<8x8xf32>
    %89 = tpu.matmul %86, %78, %cst_71 {dimension_numbers = #tpu.dot_dimension_numbers<[1], [0], [0], [1], [0, 0, 1, 1], [], []>} : vector<8x16xf32>, vector<16x8xf32>, vector<8x8xf32> -> vector<8x8xf32>
    %90 = tpu.reciprocal %88 {approx = true} : vector<8x1xf32> -> vector<8x1xf32>
    %91 = vector.broadcast %90 : vector<8x1xf32> to vector<8x8xf32>
    %92 = arith.mulf %89, %91 : vector<8x8xf32>
    %c0_72 = arith.constant 0 : index
    %c24_73 = arith.constant 24 : index
    %93 = vector.load %arg17[%c0_72, %c24_73] : memref<8x32xf32, #tpu.memory_space<vmem>>, vector<8x8xf32>
    tpu.vector_store %arg17[%c0_72, %c24_73], %92 {strides = array<i32>} : memref<8x32xf32, #tpu.memory_space<vmem>>, vector<8x8xf32>,
    %c0_74 = arith.constant 0 : index
    %c0_75 = arith.constant 0 : index
    %94 = vector.load %arg17[%c0_74, %c0_75] : memref<8x32xf32, #tpu.memory_space<vmem>>, vector<8x32xf32>
    %c0_76 = arith.constant 0 : index
    %c0_77 = arith.constant 0 : index
    %95 = vector.load %arg9[%c0_76, %c0_77] : memref<32x32xf32, #tpu.memory_space<vmem>>, vector<32x32xf32>
    %cst_78 = arith.constant dense<0.000000e+00> : vector<8x32xf32>
    %96 = tpu.matmul %94, %95, %cst_78 {dimension_numbers = #tpu.dot_dimension_numbers<[1], [0], [0], [1], [0, 0, 1, 1], [], []>} : vector<8x32xf32>, vector<32x32xf32>, vector<8x32xf32> -> vector<8x32xf32>
    %c0_79 = arith.constant 0 : index
    %c0_80 = arith.constant 0 : index
    %97 = vector.load %arg10[%c0_79, %c0_80] : memref<1x32xf32, #tpu.memory_space<vmem>>, vector<1x32xf32>
    %98 = vector.broadcast %97 : vector<1x32xf32> to vector<8x32xf32>
    %99 = arith.addf %96, %98 : vector<8x32xf32>
    %100 = arith.addf %1, %99 : vector<8x32xf32>
    %cst_81 = arith.constant dense<0.000000e+00> : vector<8xf32>
    %101 = vector.multi_reduction <add>, %100, %cst_81 [1] : vector<8x32xf32> to vector<8xf32>
    %102 = vector.shape_cast %101 : vector<8xf32> to vector<8x1xf32>
    %cst_82 = arith.constant 3.200000e+01 : f32
    %103 = vector.broadcast %cst_82 : f32 to vector<8x1xf32>
    %104 = arith.divf %102, %103 : vector<8x1xf32>
    %105 = vector.broadcast %104 : vector<8x1xf32> to vector<8x32xf32>
    %106 = arith.subf %100, %105 : vector<8x32xf32>
    %107 = arith.mulf %106, %106 : vector<8x32xf32>
    %cst_83 = arith.constant dense<0.000000e+00> : vector<8xf32>
    %108 = vector.multi_reduction <add>, %107, %cst_83 [1] : vector<8x32xf32> to vector<8xf32>
    %109 = vector.shape_cast %108 : vector<8xf32> to vector<8x1xf32>
    %cst_84 = arith.constant 3.200000e+01 : f32
    %110 = vector.broadcast %cst_84 : f32 to vector<8x1xf32>
    %111 = arith.divf %109, %110 : vector<8x1xf32>
    %112 = vector.broadcast %104 : vector<8x1xf32> to vector<8x32xf32>
    %113 = arith.subf %100, %112 : vector<8x32xf32>
    %cst_85 = arith.constant 9.99999974E-6 : f32
    %114 = vector.broadcast %cst_85 : f32 to vector<8x1xf32>
    %115 = arith.addf %111, %114 : vector<8x1xf32>
    %116 = math.rsqrt %115 : vector<8x1xf32>
    %117 = vector.broadcast %116 : vector<8x1xf32> to vector<8x32xf32>
    %118 = arith.mulf %113, %117 : vector<8x32xf32>
    %c0_86 = arith.constant 0 : index
    %c0_87 = arith.constant 0 : index
    %119 = vector.load %arg11[%c0_86, %c0_87] : memref<1x32xf32, #tpu.memory_space<vmem>>, vector<1x32xf32>
    %120 = vector.broadcast %119 : vector<1x32xf32> to vector<8x32xf32>
    %121 = arith.mulf %118, %120 : vector<8x32xf32>
    %c0_88 = arith.constant 0 : index
    %c0_89 = arith.constant 0 : index
    %122 = vector.load %arg12[%c0_88, %c0_89] : memref<1x32xf32, #tpu.memory_space<vmem>>, vector<1x32xf32>
    %123 = vector.broadcast %122 : vector<1x32xf32> to vector<8x32xf32>
    %124 = arith.addf %121, %123 : vector<8x32xf32>
    %c0_90 = arith.constant 0 : index
    %c0_91 = arith.constant 0 : index
    %c0_92 = arith.constant 0 : index
    %125 = vector.load %arg13[%c0_90, %c0_91, %c0_92] : memref<1x8x32xf32, #tpu.memory_space<vmem>>, vector<1x8x32xf32>
    %126 = vector.shape_cast %125 : vector<1x8x32xf32> to vector<8x32xf32>
    %127 = vector.shape_cast %124 : vector<8x32xf32> to vector<1x8x32xf32>
    tpu.vector_store %arg13[%c0_90, %c0_91, %c0_92], %127 {strides = array<i32>} : memref<1x8x32xf32, #tpu.memory_space<vmem>>, vector<1x8x32xf32>,
    return
  }
  func.func @transform_0(%arg0: i32) -> (i32, i32, i32) {
    %c0_i32 = arith.constant 0 : i32
    %c0_i32_0 = arith.constant 0 : i32
    %c0_i32_1 = arith.constant 0 : i32
    return %arg0, %c0_i32, %c0_i32_0 : i32, i32, i32
  }
  func.func @transform_1(%arg0: i32) -> (i32, i32, i32) {
    %c0_i32 = arith.constant 0 : i32
    %c0_i32_0 = arith.constant 0 : i32
    %c0_i32_1 = arith.constant 0 : i32
    return %arg0, %c0_i32, %c0_i32_0 : i32, i32, i32
  }
  func.func @transform_2(%arg0: i32) -> (i32, i32) {
    %c0_i32 = arith.constant 0 : i32
    %c0_i32_0 = arith.constant 0 : i32
    %c0_i32_1 = arith.constant 0 : i32
    return %c0_i32, %c0_i32_0 : i32, i32
  }
  func.func @transform_3(%arg0: i32) -> (i32, i32) {
    %c0_i32 = arith.constant 0 : i32
    %c0_i32_0 = arith.constant 0 : i32
    %c0_i32_1 = arith.constant 0 : i32
    return %c0_i32, %c0_i32_0 : i32, i32
  }
  func.func @transform_4(%arg0: i32) -> (i32, i32) {
    %c0_i32 = arith.constant 0 : i32
    %c0_i32_0 = arith.constant 0 : i32
    %c0_i32_1 = arith.constant 0 : i32
    return %c0_i32, %c0_i32_0 : i32, i32
  }
  func.func @transform_5(%arg0: i32) -> (i32, i32) {
    %c0_i32 = arith.constant 0 : i32
    %c0_i32_0 = arith.constant 0 : i32
    %c0_i32_1 = arith.constant 0 : i32
    return %c0_i32, %c0_i32_0 : i32, i32
  }
  func.func @transform_6(%arg0: i32) -> (i32, i32) {
    %c0_i32 = arith.constant 0 : i32
    %c0_i32_0 = arith.constant 0 : i32
    %c0_i32_1 = arith.constant 0 : i32
    return %c0_i32, %c0_i32_0 : i32, i32
  }
  func.func @transform_7(%arg0: i32) -> (i32, i32) {
    %c0_i32 = arith.constant 0 : i32
    %c0_i32_0 = arith.constant 0 : i32
    %c0_i32_1 = arith.constant 0 : i32
    return %c0_i32, %c0_i32_0 : i32, i32
  }
  func.func @transform_8(%arg0: i32) -> (i32, i32) {
    %c0_i32 = arith.constant 0 : i32
    %c0_i32_0 = arith.constant 0 : i32
    %c0_i32_1 = arith.constant 0 : i32
    return %c0_i32, %c0_i32_0 : i32, i32
  }
  func.func @transform_9(%arg0: i32) -> (i32, i32) {
    %c0_i32 = arith.constant 0 : i32
    %c0_i32_0 = arith.constant 0 : i32
    %c0_i32_1 = arith.constant 0 : i32
    return %c0_i32, %c0_i32_0 : i32, i32
  }
  func.func @transform_10(%arg0: i32) -> (i32, i32) {
    %c0_i32 = arith.constant 0 : i32
    %c0_i32_0 = arith.constant 0 : i32
    %c0_i32_1 = arith.constant 0 : i32
    return %c0_i32, %c0_i32_0 : i32, i32
  }
  func.func @transform_11(%arg0: i32) -> (i32, i32) {
    %c0_i32 = arith.constant 0 : i32
    %c0_i32_0 = arith.constant 0 : i32
    %c0_i32_1 = arith.constant 0 : i32
    return %c0_i32, %c0_i32_0 : i32, i32
  }
  func.func @transform_12(%arg0: i32) -> (i32, i32, i32) {
    %c0_i32 = arith.constant 0 : i32
    %c0_i32_0 = arith.constant 0 : i32
    %c0_i32_1 = arith.constant 0 : i32
    return %arg0, %c0_i32, %c0_i32_0 : i32, i32, i32
  }
}

</mosaic_0001>

<llo_original>
// kernel: decoder_layer_forward.5
$region0: #{decoder_layer_forward.5}
  #allocation0 [shape = 'u32[]', space=smem, size = 0x4, offset = 0x4, fixed_abs, tag = 'smem constant byte address 0x4 - core index']
  #allocation1 [shape = 'u32[144,128]{1,0:T(1,128)}', space=vmem, size = 0x12000, scoped, tag = 'internal scratch']
  %s0 = inlined_call_operand.vmem [shape: f32[16,32], index: 0, kind: input, shape index: {}]
  %s1 = inlined_call_operand.vmem [shape: f32[32,128], index: 1, kind: input, shape index: {}]
  %s2 = inlined_call_operand.vmem [shape: f32[1,128], index: 2, kind: input, shape index: {}]
  %s3 = inlined_call_operand.vmem [shape: f32[128,32], index: 3, kind: input, shape index: {}]
  %s4 = inlined_call_operand.vmem [shape: f32[1,32], index: 4, kind: input, shape index: {}]
  %s5 = inlined_call_operand.vmem [shape: f32[1,32], index: 5, kind: input, shape index: {}]
  %s6 = inlined_call_operand.vmem [shape: f32[1,32], index: 6, kind: input, shape index: {}]
  %s7 = inlined_call_operand.hbm [shape: f32[16,32], index: 7, kind: output, shape index: {}]
  %s8 = sld [smem:[#allocation0]]
  $region61: #{decoder_layer_forward.5} parent=0
    _
  %s10 = ssub.s32 1, %s8
  %s11 = scalar_select 0, %s10, %s8
  $region1: #{decoder_layer_forward.5} parent=0
    #allocation2 [shape = 'u8[8192]{0}', space=vmem, size = 0x2000, scoped, tag = 'output window, operand 0']
    #allocation3 [shape = 's32[2]{0}', space=sflag, size = 0x8, scoped, tag = 'scoped memory for decoder_layer_forward.5']
    %12 = vsyncpa [#allocation3], 0
    %s13 = scalar_lea.sflag [#allocation3], 1
    %14 = vsyncpa %s13, 0
    loop: start=0, step=1, limit=4
    $region2: #{decoder_layer_forward.5} parent=1 // loop_pre_header
      _
    $region3: #{decoder_layer_forward.5} parent=1 // loop_header
      %s16 = sphi 0, %s20
      %p17 = scmp.ge.s32.totalorder %s16, 4
      %s26 = sphi 0, %s28
      %s29 = sphi 0, %s26
      %s30 = sphi 0, %s29
      %s46 = sphi 0, %s30
      %s50 = sphi 0, %s50
      %s52 = sphi 0, %s50
      %s53 = sphi 0, %s52
      %s67 = sphi 0, %s53
      %s71 = sphi 0, %s71
      %s73 = sphi 0, %s71
      %s74 = sphi 0, %s73
      %s88 = sphi 0, %s74
      %s92 = sphi 0, %s92
      %s94 = sphi 0, %s92
      %s95 = sphi 0, %s94
      %s109 = sphi 0, %s95
      %s113 = sphi 0, %s113
      %s115 = sphi 0, %s113
      %s116 = sphi 0, %s115
      %s130 = sphi 0, %s116
      %s134 = sphi 0, %s134
      %s136 = sphi 0, %s134
      %s137 = sphi 0, %s136
      %s151 = sphi 0, %s137
      %s155 = sphi 0, %s155
      %s157 = sphi 0, %s155
      %s158 = sphi 0, %s157
      %s172 = sphi 0, %s158
      %s178 = sphi 0, %s180
      %s181 = sphi 0, %s178
      %s182 = sphi 0, %s181
      %s198 = sphi 0, %s182
    $region4: #{decoder_layer_forward.5} parent=1 // loop_header_branch
      %19 = sbr.rel (%p17) target = $region8
    $region5: #{decoder_layer_forward.5} parent=1 // loop_body
      %s21 = ssub.s32 %s16, 1
      %s22 = ssub.s32 %s16, 2
      %s23 = sadd.s32 %s16, 1
      %s24 = ssub.s32 %s16, %s23
      %p25 = scmp.eq.s32.totalorder %s24, 0
      %s27 = sadd.s32 %s26, 1
      %s28 = scalar_select %p25, %s26, %s27
      %p31 = pneg %p25
      %p32 = scmp.eq.s32.totalorder %s16, 1
      %p33 = por %p31, %p32
      %p34 = scmp.ne.s32.totalorder %s26, %s29
      %p35 = scmp.eq.s32.totalorder %s16, 0
      %p36 = por %p34, %p35
      %p37 = scmp.ne.s32.totalorder %s26, %s29
      %p38 = scmp.eq.s32.totalorder %s21, 1
      %p39 = por %p37, %p38
      %p40 = scmp.ne.s32.totalorder %s29, %s30
      %p41 = scmp.eq.s32.totalorder %s21, 0
      %p42 = por %p40, %p41
      %p43 = scmp.ne.s32.totalorder %s29, %s30
      %p44 = scmp.eq.s32.totalorder %s22, 1
      %p45 = por %p43, %p44
      %p47 = scmp.ne.s32.totalorder %s30, %s46
      %p48 = scmp.eq.s32.totalorder %s22, 0
      %p49 = por %p47, %p48
      %s51 = sadd.s32 %s50, 1
      %p54 = scmp.eq.s32.totalorder %s16, 1
      %p55 = scmp.ne.s32.totalorder %s50, %s52
      %p56 = scmp.eq.s32.totalorder %s16, 0
      %p57 = por %p55, %p56
      %p58 = scmp.ne.s32.totalorder %s50, %s52
      %p59 = scmp.eq.s32.totalorder %s21, 1
      %p60 = por %p58, %p59
      %p61 = scmp.ne.s32.totalorder %s52, %s53
      %p62 = scmp.eq.s32.totalorder %s21, 0
      %p63 = por %p61, %p62
      %p64 = scmp.ne.s32.totalorder %s52, %s53
      %p65 = scmp.eq.s32.totalorder %s22, 1
      %p66 = por %p64, %p65
      %p68 = scmp.ne.s32.totalorder %s53, %s67
      %p69 = scmp.eq.s32.totalorder %s22, 0
      %p70 = por %p68, %p69
      %s72 = sadd.s32 %s71, 1
      %p75 = scmp.eq.s32.totalorder %s16, 1
      %p76 = scmp.ne.s32.totalorder %s71, %s73
      %p77 = scmp.eq.s32.totalorder %s16, 0
      %p78 = por %p76, %p77
      %p79 = scmp.ne.s32.totalorder %s71, %s73
      %p80 = scmp.eq.s32.totalorder %s21, 1
      %p81 = por %p79, %p80
      %p82 = scmp.ne.s32.totalorder %s73, %s74
      %p83 = scmp.eq.s32.totalorder %s21, 0
      %p84 = por %p82, %p83
      %p85 = scmp.ne.s32.totalorder %s73, %s74
      %p86 = scmp.eq.s32.totalorder %s22, 1
      %p87 = por %p85, %p86
      %p89 = scmp.ne.s32.totalorder %s74, %s88
      %p90 = scmp.eq.s32.totalorder %s22, 0
      %p91 = por %p89, %p90
      %s93 = sadd.s32 %s92, 1
      %p96 = scmp.eq.s32.totalorder %s16, 1
      %p97 = scmp.ne.s32.totalorder %s92, %s94
      %p98 = scmp.eq.s32.totalorder %s16, 0
      %p99 = por %p97, %p98
      %p100 = scmp.ne.s32.totalorder %s92, %s94
      %p101 = scmp.eq.s32.totalorder %s21, 1
      %p102 = por %p100, %p101
      %p103 = scmp.ne.s32.totalorder %s94, %s95
      %p104 = scmp.eq.s32.totalorder %s21, 0
      %p105 = por %p103, %p104
      %p106 = scmp.ne.s32.totalorder %s94, %s95
      %p107 = scmp.eq.s32.totalorder %s22, 1
      %p108 = por %p106, %p107
      %p110 = scmp.ne.s32.totalorder %s95, %s109
      %p111 = scmp.eq.s32.totalorder %s22, 0
      %p112 = por %p110, %p111
      %s114 = sadd.s32 %s113, 1
      %p117 = scmp.eq.s32.totalorder %s16, 1
      %p118 = scmp.ne.s32.totalorder %s113, %s115
      %p119 = scmp.eq.s32.totalorder %s16, 0
      %p120 = por %p118, %p119
      %p121 = scmp.ne.s32.totalorder %s113, %s115
      %p122 = scmp.eq.s32.totalorder %s21, 1
      %p123 = por %p121, %p122
      %p124 = scmp.ne.s32.totalorder %s115, %s116
      %p125 = scmp.eq.s32.totalorder %s21, 0
      %p126 = por %p124, %p125
      %p127 = scmp.ne.s32.totalorder %s115, %s116
      %p128 = scmp.eq.s32.totalorder %s22, 1
      %p129 = por %p127, %p128
      %p131 = scmp.ne.s32.totalorder %s116, %s130
      %p132 = scmp.eq.s32.totalorder %s22, 0
      %p133 = por %p131, %p132
      %s135 = sadd.s32 %s134, 1
      %p138 = scmp.eq.s32.totalorder %s16, 1
      %p139 = scmp.ne.s32.totalorder %s134, %s136
      %p140 = scmp.eq.s32.totalorder %s16, 0
      %p141 = por %p139, %p140
      %p142 = scmp.ne.s32.totalorder %s134, %s136
      %p143 = scmp.eq.s32.totalorder %s21, 1
      %p144 = por %p142, %p143
      %p145 = scmp.ne.s32.totalorder %s136, %s137
      %p146 = scmp.eq.s32.totalorder %s21, 0
      %p147 = por %p145, %p146
      %p148 = scmp.ne.s32.totalorder %s136, %s137
      %p149 = scmp.eq.s32.totalorder %s22, 1
      %p150 = por %p148, %p149
      %p152 = scmp.ne.s32.totalorder %s137, %s151
      %p153 = scmp.eq.s32.totalorder %s22, 0
      %p154 = por %p152, %p153
      %s156 = sadd.s32 %s155, 1
      %p159 = scmp.eq.s32.totalorder %s16, 1
      %p160 = scmp.ne.s32.totalorder %s155, %s157
      %p161 = scmp.eq.s32.totalorder %s16, 0
      %p162 = por %p160, %p161
      %p163 = scmp.ne.s32.totalorder %s155, %s157
      %p164 = scmp.eq.s32.totalorder %s21, 1
      %p165 = por %p163, %p164
      %p166 = scmp.ne.s32.totalorder %s157, %s158
      %p167 = scmp.eq.s32.totalorder %s21, 0
      %p168 = por %p166, %p167
      %p169 = scmp.ne.s32.totalorder %s157, %s158
      %p170 = scmp.eq.s32.totalorder %s22, 1
      %p171 = por %p169, %p170
      %p173 = scmp.ne.s32.totalorder %s158, %s172
      %p174 = scmp.eq.s32.totalorder %s22, 0
      %p175 = por %p173, %p174
      %s176 = ssub.s32 %s16, %s23
      %p177 = scmp.eq.s32.totalorder %s176, 0
      %s179 = sadd.s32 %s178, 1
      %s180 = scalar_select %p177, %s178, %s179
      %p183 = pneg %p177
      %p184 = scmp.eq.s32.totalorder %s16, 1
      %p185 = por %p183, %p184
      %p186 = scmp.ne.s32.totalorder %s178, %s181
      %p187 = scmp.eq.s32.totalorder %s16, 0
      %p188 = por %p186, %p187
      %p189 = scmp.ne.s32.totalorder %s178, %s181
      %p190 = scmp.eq.s32.totalorder %s21, 1
      %p191 = por %p189, %p190
      %p192 = scmp.ne.s32.totalorder %s181, %s182
      %p193 = scmp.eq.s32.totalorder %s21, 0
      %p194 = por %p192, %p193
      %p195 = scmp.ne.s32.totalorder %s181, %s182
      %p196 = scmp.eq.s32.totalorder %s22, 1
      %p197 = por %p195, %p196
      %p199 = scmp.ne.s32.totalorder %s182, %s198
      %p200 = scmp.eq.s32.totalorder %s22, 0
      %p201 = por %p199, %p200
      %p202 = scmp.le.s32.totalorder 1, %s16
      %p203 = scmp.lt.s32.totalorder %s16, 3
      %p204 = pnand %p202, %p203
      %p205 = pneg %p204
      // Predicated region
      $region9: #{decoder_layer_forward.5} parent=5 // pred_check
        _
      $region10: #{decoder_layer_forward.5} parent=5 // pred_check_branch
        %207 = sbr.rel (%p204) target = $region12
      $region11: #{decoder_layer_forward.5} parent=5 // pred_region
        %s208 = ssub.s32 %s16, 1
        // Predicated region
        $region13: #{decoder_layer_forward.5} parent=11 // pred_check
          %p209 = pneg %p63
        $region14: #{decoder_layer_forward.5} parent=11 // pred_check_branch
          %211 = sbr.rel (%p209) target = $region16
        $region15: #{decoder_layer_forward.5} parent=11 // pred_region
          _
        $region16: #{decoder_layer_forward.5} parent=11 // pred_fallthru
          _
        // Predicated region
        $region17: #{decoder_layer_forward.5} parent=11 // pred_check
          %p212 = pneg %p84
        $region18: #{decoder_layer_forward.5} parent=11 // pred_check_branch
          %214 = sbr.rel (%p212) target = $region20
        $region19: #{decoder_layer_forward.5} parent=11 // pred_region
          _
        $region20: #{decoder_layer_forward.5} parent=11 // pred_fallthru
          _
        // Predicated region
        $region21: #{decoder_layer_forward.5} parent=11 // pred_check
          %p215 = pneg %p105
        $region22: #{decoder_layer_forward.5} parent=11 // pred_check_branch
          %217 = sbr.rel (%p215) target = $region24
        $region23: #{decoder_layer_forward.5} parent=11 // pred_region
          _
        $region24: #{decoder_layer_forward.5} parent=11 // pred_fallthru
          _
        // Predicated region
        $region25: #{decoder_layer_forward.5} parent=11 // pred_check
          %p218 = pneg %p126
        $region26: #{decoder_layer_forward.5} parent=11 // pred_check_branch
          %220 = sbr.rel (%p218) target = $region28
        $region27: #{decoder_layer_forward.5} parent=11 // pred_region
          _
        $region28: #{decoder_layer_forward.5} parent=11 // pred_fallthru
          _
        // Predicated region
        $region29: #{decoder_layer_forward.5} parent=11 // pred_check
          %p221 = pneg %p147
        $region30: #{decoder_layer_forward.5} parent=11 // pred_check_branch
          %223 = sbr.rel (%p221) target = $region32
        $region31: #{decoder_layer_forward.5} parent=11 // pred_region
          _
        $region32: #{decoder_layer_forward.5} parent=11 // pred_fallthru
          _
        // Predicated region
        $region33: #{decoder_layer_forward.5} parent=11 // pred_check
          %p224 = pneg %p168
        $region34: #{decoder_layer_forward.5} parent=11 // pred_check_branch
          %226 = sbr.rel (%p224) target = $region36
        $region35: #{decoder_layer_forward.5} parent=11 // pred_region
          _
        $region36: #{decoder_layer_forward.5} parent=11 // pred_fallthru
          _
      $region12: #{decoder_layer_forward.5} parent=5 // pred_fallthru
        _
      %p227 = scmp.lt.s32.totalorder %s16, 2
      // Predicated region
      $region37: #{decoder_layer_forward.5} parent=5 // pred_check
        %p228 = pneg %p227
      $region38: #{decoder_layer_forward.5} parent=5 // pred_check_branch
        %230 = sbr.rel (%p228) target = $region40
      $region39: #{decoder_layer_forward.5} parent=5 // pred_region
        // Predicated region
        $region41: #{decoder_layer_forward.5} parent=39 // pred_check
          %p231 = pneg %p36
        $region42: #{decoder_layer_forward.5} parent=39 // pred_check_branch
          %233 = sbr.rel (%p231) target = $region44
        $region43: #{decoder_layer_forward.5} parent=39 // pred_region
          %p234 = scmp.lt.s32.totalorder %s16, 1
          %s235 = scalar_select %p234, %s16, 1
          %s236 = smul.addr %s235, 8
          %s237 = scalar_lea.vmem %s0, %s236
        $region44: #{decoder_layer_forward.5} parent=39 // pred_fallthru
          _
      $region40: #{decoder_layer_forward.5} parent=5 // pred_fallthru
        _
      %p238 = scmp.le.s32.totalorder 1, %s16
      %p239 = scmp.lt.s32.totalorder %s16, 3
      %p240 = pnand %p238, %p239
      %p241 = pneg %p240
      // Predicated region
      $region45: #{decoder_layer_forward.5} parent=5 // pred_check
        _
      $region46: #{decoder_layer_forward.5} parent=5 // pred_check_branch
        %243 = sbr.rel (%p240) target = $region48
      $region47: #{decoder_layer_forward.5} parent=5 // pred_region
        %s244 = ssub.s32 %s16, 1
        %p245 = scmp.lt.s32.totalorder %s21, 1
        %s246 = scalar_select %p245, %s21, 1
        %s247 = smul.addr %s246, 8
        %s248 = scalar_lea.vmem %s0, %s247
        %p249 = pneg %p42
        %p250 = pneg %p39
        %p251 = pneg %p63
        %p252 = pneg %p60
        %p253 = pneg %p84
        %p254 = pneg %p81
        %p255 = pneg %p105
        %p256 = pneg %p102
        %p257 = pneg %p126
        %p258 = pneg %p123
        %p259 = pneg %p147
        %p260 = pneg %p144
        %p261 = pneg %p168
        %p262 = pneg %p165
        %p263 = pneg %p194
        %p264 = pneg %p191
        %s265 = sand.u32 %s181, 1
        %s266 = scalar_lea.sflag [#allocation3], %s265
        %s267 = sand.u32 %s181, 1
        %s268 = smul.addr %s267, 8
        %s269 = scalar_lea.vmem [#allocation2], %s268
        %p270 = scmp.lt.s32.totalorder %s21, 1
        %s271 = scalar_select %p270, %s21, 1
        %s272 = smul.addr %s271, 8
        %s273 = scalar_lea.vmem %s0, %s272
        %v274 = vld [vmem:[%s273] sm:$0xff]
        %v275 = vld [vmem:[%s1] sm:$0xff]
        %v276 = vld [vmem:[%s1 + $0x8] sm:$0xff]
        %v277 = vld [vmem:[%s1 + $0x10] sm:$0xff]
        %v278 = vld [vmem:[%s1 + $0x18] sm:$0xff]
        %v279 = vld [vmem:[%s2] sm:$0x1]
        %v281 = vlaneseq
        %v282 = vshrl.u32 %v281, 7
        %v283 = vsub.s32 0, %v282
        %v284 = vrot.slane %v279, %v283
        %vm286 = vcmask 261120
        %v288 = vsel %vm286, %v274, 0
        %290 = vmatprep.subr.mxu0 0.0
        %291 = vmatpush1.msra.mxu0 0.0
        %292 = vmatprep.subr.mxu0 0.0
        %293 = vmatpush1.msra.mxu0 0.0
        %294 = vmatprep.subr.mxu0 0.0
        %295 = vmatpush1.msra.mxu0 0.0
        %296 = vmatprep.subr.mxu0 0.0
        %297 = vmatpush1.msra.mxu0 0.0
        %298 = vmatprep.subr.mxu0 0.0
        %299 = vmatpush1.msra.mxu0 0.0
        %300 = vmatprep.subr.mxu0 0.0
        %301 = vmatpush1.msra.mxu0 0.0
        %302 = vmatprep.subr.mxu0 0.0
        %303 = vmatpush1.msra.mxu0 0.0
        %304 = vmatprep.subr.mxu0 0.0
        %305 = vmatpush1.msra.mxu0 0.0
        %306 = vmatprep.subr.mxu0 0.0
        %307 = vmatpush1.msra.mxu0 0.0
        %308 = vmatprep.subr.mxu0 0.0
        %309 = vmatpush1.msra.mxu0 0.0
        %310 = vmatprep.subr.mxu0 0.0
        %311 = vmatpush1.msra.mxu0 0.0
        %312 = vmatprep.subr.mxu0 0.0
        %313 = vmatpush1.msra.mxu0 0.0
        %314 = vmatprep.subr.mxu0 0.0
        %315 = vmatpush1.msra.mxu0 %v278
        %316 = vmatprep.subr.mxu0 0.0
        %317 = vmatpush1.msra.mxu0 %v277
        %318 = vmatprep.subr.mxu0 0.0
        %319 = vmatpush1.msra.mxu0 %v276
        %320 = vmatprep.subr.mxu0 0.0
        %321 = vmatpush1.msra.mxu0 %v275
        %322 = vmatprep.subr.mxu0 0.0
        %323 = vmatpush2.msra.mxu0 0.0
        %324 = vmatprep.subr.mxu0 0.0
        %325 = vmatpush2.msra.mxu0 0.0
        %326 = vmatprep.subr.mxu0 0.0
        %327 = vmatpush2.msra.mxu0 0.0
        %328 = vmatprep.subr.mxu0 0.0
        %329 = vmatpush2.msra.mxu0 0.0
        %330 = vmatprep.subr.mxu0 0.0
        %331 = vmatpush2.msra.mxu0 0.0
        %332 = vmatprep.subr.mxu0 0.0
        %333 = vmatpush2.msra.mxu0 0.0
        %334 = vmatprep.subr.mxu0 0.0
        %335 = vmatpush2.msra.mxu0 0.0
        %336 = vmatprep.subr.mxu0 0.0
        %337 = vmatpush2.msra.mxu0 0.0
        %338 = vmatprep.subr.mxu0 0.0
        %339 = vmatpush2.msra.mxu0 0.0
        %340 = vmatprep.subr.mxu0 0.0
        %341 = vmatpush2.msra.mxu0 0.0
        %342 = vmatprep.subr.mxu0 0.0
        %343 = vmatpush2.msra.mxu0 0.0
        %344 = vmatprep.subr.mxu0 0.0
        %345 = vmatpush2.msra.mxu0 0.0
        %346 = vmatprep.subr.mxu0 0.0
        %347 = vmatpush2.msra.mxu0 0.0
        %348 = vmatprep.subr.mxu0 0.0
        %349 = vmatpush2.msra.mxu0 0.0
        %350 = vmatprep.subr.mxu0 0.0
        %351 = vmatpush2.msra.mxu0 0.0
        %352 = vmatprep.subr.mxu0 0.0
        %353 = vmatpush2.msra.mxu0 0.0
        %354 = vmatprep.mubr.f32.mxu0 0.0
        %355 = vmatmul.mubr.f32.gmra.mxu0 %v288
        %v356 = vpop.f32.mrf.mxu0
        %v357 = vadd.f32 %v284, %v356
        %v358 = vpop.f32.mrf.mxu0
        %359 = vdwg.mxu0
        %v360 = vmax.f32 %v357, 0.0
        %v361 = vld [vmem:[%s3] sm:$0xff]
        %v362 = vld [vmem:[%s3 + $0x8] sm:$0xff]
        %v363 = vld [vmem:[%s3 + $0x10] sm:$0xff]
        %v364 = vld [vmem:[%s3 + $0x18] sm:$0xff]
        %v365 = vld [vmem:[%s3 + $0x20] sm:$0xff]
        %v366 = vld [vmem:[%s3 + $0x28] sm:$0xff]
        %v367 = vld [vmem:[%s3 + $0x30] sm:$0xff]
        %v368 = vld [vmem:[%s3 + $0x38] sm:$0xff]
        %v369 = vld [vmem:[%s3 + $0x40] sm:$0xff]
        %v370 = vld [vmem:[%s3 + $0x48] sm:$0xff]
        %v371 = vld [vmem:[%s3 + $0x50] sm:$0xff]
        %v372 = vld [vmem:[%s3 + $0x58] sm:$0xff]
        %v373 = vld [vmem:[%s3 + $0x60] sm:$0xff]
        %v374 = vld [vmem:[%s3 + $0x68] sm:$0xff]
        %v375 = vld [vmem:[%s3 + $0x70] sm:$0xff]
        %v376 = vld [vmem:[%s3 + $0x78] sm:$0xff]
        %v377 = vld [vmem:[%s4] sm:$0x1]
        %v379 = vlaneseq
        %v380 = vshrl.u32 %v379, 7
        %v381 = vsub.s32 0, %v380
        %v382 = vrot.slane %v377, %v381
        %384 = vmatprep.subr.mxu0 0.0
        %385 = vmatpush1.msra.mxu0 %v376
        %386 = vmatprep.subr.mxu0 0.0
        %387 = vmatpush1.msra.mxu0 %v375
        %388 = vmatprep.subr.mxu0 0.0
        %389 = vmatpush1.msra.mxu0 %v374
        %390 = vmatprep.subr.mxu0 0.0
        %391 = vmatpush1.msra.mxu0 %v373
        %392 = vmatprep.subr.mxu0 0.0
        %393 = vmatpush1.msra.mxu0 %v372
        %394 = vmatprep.subr.mxu0 0.0
        %395 = vmatpush1.msra.mxu0 %v371
        %396 = vmatprep.subr.mxu0 0.0
        %397 = vmatpush1.msra.mxu0 %v370
        %398 = vmatprep.subr.mxu0 0.0
        %399 = vmatpush1.msra.mxu0 %v369
        %400 = vmatprep.subr.mxu0 0.0
        %401 = vmatpush1.msra.mxu0 %v368
        %402 = vmatprep.subr.mxu0 0.0
        %403 = vmatpush1.msra.mxu0 %v367
        %404 = vmatprep.subr.mxu0 0.0
        %405 = vmatpush1.msra.mxu0 %v366
        %406 = vmatprep.subr.mxu0 0.0
        %407 = vmatpush1.msra.mxu0 %v365
        %408 = vmatprep.subr.mxu0 0.0
        %409 = vmatpush1.msra.mxu0 %v364
        %410 = vmatprep.subr.mxu0 0.0
        %411 = vmatpush1.msra.mxu0 %v363
        %412 = vmatprep.subr.mxu0 0.0
        %413 = vmatpush1.msra.mxu0 %v362
        %414 = vmatprep.subr.mxu0 0.0
        %415 = vmatpush1.msra.mxu0 %v361
        %416 = vmatprep.subr.mxu0 0.0
        %417 = vmatpush2.msra.mxu0 0.0
        %418 = vmatprep.subr.mxu0 0.0
        %419 = vmatpush2.msra.mxu0 0.0
        %420 = vmatprep.subr.mxu0 0.0
        %421 = vmatpush2.msra.mxu0 0.0
        %422 = vmatprep.subr.mxu0 0.0
        %423 = vmatpush2.msra.mxu0 0.0
        %424 = vmatprep.subr.mxu0 0.0
        %425 = vmatpush2.msra.mxu0 0.0
        %426 = vmatprep.subr.mxu0 0.0
        %427 = vmatpush2.msra.mxu0 0.0
        %428 = vmatprep.subr.mxu0 0.0
        %429 = vmatpush2.msra.mxu0 0.0
        %430 = vmatprep.subr.mxu0 0.0
        %431 = vmatpush2.msra.mxu0 0.0
        %432 = vmatprep.subr.mxu0 0.0
        %433 = vmatpush2.msra.mxu0 0.0
        %434 = vmatprep.subr.mxu0 0.0
        %435 = vmatpush2.msra.mxu0 0.0
        %436 = vmatprep.subr.mxu0 0.0
        %437 = vmatpush2.msra.mxu0 0.0
        %438 = vmatprep.subr.mxu0 0.0
        %439 = vmatpush2.msra.mxu0 0.0
        %440 = vmatprep.subr.mxu0 0.0
        %441 = vmatpush2.msra.mxu0 0.0
        %442 = vmatprep.subr.mxu0 0.0
        %443 = vmatpush2.msra.mxu0 0.0
        %444 = vmatprep.subr.mxu0 0.0
        %445 = vmatpush2.msra.mxu0 0.0
        %446 = vmatprep.subr.mxu0 0.0
        %447 = vmatpush2.msra.mxu0 0.0
        %448 = vmatprep.mubr.f32.mxu0 0.0
        %449 = vmatmul.mubr.f32.gmra.mxu0 %v360
        %v450 = vpop.f32.mrf.mxu0
        %v451 = vadd.f32 %v382, %v450
        %v452 = vpop.f32.mrf.mxu0
        %453 = vdwg.mxu0
        %v454 = vadd.f32 %v274, %v451
        %v455 = vsel %vm286, %v454, 0.0
        %456 = vadd.xlane.f32.xlu0 %v455
        %v457 = vpop.xlane.xlu0 %456
        %v458 = vrcp.pop 32.0
        %v459 = vmul.f32 %v457, %v458
        %v460 = vsub.f32 %v454, %v459
        %v461 = vmul.f32 %v460, %v460
        %v462 = vsel %vm286, %v461, 0.0
        %463 = vadd.xlane.f32.xlu0 %v462
        %v464 = vpop.xlane.xlu0 %463
        %v465 = vmul.f32 %v464, %v458
        %v466 = vadd.f32 %v465, 1e-05
        %v467 = vrsqrt.pop %v466
        %v468 = vmul.f32 %v460, %v467
        %v469 = vld [vmem:[%s5] sm:$0x1]
        %v471 = vlaneseq
        %v472 = vshrl.u32 %v471, 7
        %v473 = vsub.s32 0, %v472
        %v474 = vrot.slane %v469, %v473
        %v476 = vmul.f32 %v468, %v474
        %v477 = vld [vmem:[%s6] sm:$0x1]
        %v479 = vlaneseq
        %v480 = vshrl.u32 %v479, 7
        %v481 = vsub.s32 0, %v480
        %v482 = vrot.slane %v477, %v481
        %v484 = vadd.f32 %v476, %v482
        %485 = vst.msk [vmem:[%s269] sm:$0xff] %vm286, %v484
        %s486 = sand.u32 %s181, 1
        %s487 = scalar_lea.sflag [#allocation3], %s486
        %s488 = sand.u32 %s181, 1
        %s489 = smul.addr %s488, 8
        %s490 = scalar_lea.vmem [#allocation2], %s489
        // Predicated region
        $region49: #{decoder_layer_forward.5} parent=47 // pred_check
          %p491 = pneg %p191
        $region50: #{decoder_layer_forward.5} parent=47 // pred_check_branch
          %493 = sbr.rel (%p491) target = $region52
        $region51: #{decoder_layer_forward.5} parent=47 // pred_region
          %s495 = ssub.s32 128, 128
          %496 = vsyncadd %s487, %s495
          %s497 = smul.addr %s21, 128
          %s498 = scalar_lea.hbm %s7, %s497
          %s500 = sshll.u32 %s490, 4
          %s501 = int_to_ptr.vmem [resolvable:$true] %s500
          %503 = dma.vmem_to_hbm [thread:$0]  %s501, 128, %s498, %s487
        $region52: #{decoder_layer_forward.5} parent=47 // pred_fallthru
          _
      $region48: #{decoder_layer_forward.5} parent=5 // pred_fallthru
        _
      %p504 = scmp.le.s32.totalorder 2, %s16
      // Predicated region
      $region53: #{decoder_layer_forward.5} parent=5 // pred_check
        %p505 = pneg %p504
      $region54: #{decoder_layer_forward.5} parent=5 // pred_check_branch
        %507 = sbr.rel (%p505) target = $region56
      $region55: #{decoder_layer_forward.5} parent=5 // pred_region
        %s508 = ssub.s32 %s16, 2
        // Predicated region
        $region57: #{decoder_layer_forward.5} parent=55 // pred_check
          %p509 = pneg %p197
        $region58: #{decoder_layer_forward.5} parent=55 // pred_check_branch
          %511 = sbr.rel (%p509) target = $region60
        $region59: #{decoder_layer_forward.5} parent=55 // pred_region
          %s512 = sand.u32 %s182, 1
          %s513 = scalar_lea.sflag [#allocation3], %s512
          %s514 = sand.u32 %s182, 1
          %s515 = smul.addr %s514, 8
          %s516 = scalar_lea.vmem [#allocation2], %s515
          %517 = dma.done %s513, 128
        $region60: #{decoder_layer_forward.5} parent=55 // pred_fallthru
          _
      $region56: #{decoder_layer_forward.5} parent=5 // pred_fallthru
        _
    $region6: #{decoder_layer_forward.5} parent=1 // loop_footer
      %s20 = sadd.s32 1, %s16
    $region7: #{decoder_layer_forward.5} parent=1 // loop_footer_branch
      %15 = sbr.rel target = $region3
    $region8: #{decoder_layer_forward.5} parent=1 // loop_exit
      _
    %518 = vsyncpa [#allocation3], 1
    %s519 = scalar_lea.sflag [#allocation3], 1
    %520 = vsyncpa %s519, 1

// kernel: decoder_layer_forward.4
$region0: #{decoder_layer_forward.4}
  #allocation0 [shape = 'u32[]', space=smem, size = 0x4, offset = 0x4, fixed_abs, tag = 'smem constant byte address 0x4 - core index']
  #allocation1 [shape = 'u32[144,128]{1,0:T(1,128)}', space=vmem, size = 0x12000, scoped, tag = 'internal scratch']
  #allocation2 [shape = 'f32[8,32]{1,0:T(8,128)}', space=vmem, size = 0x1000, scoped, tag = 'scratch operand']
  #allocation3 [shape = 'f32[16,32]{1,0:T(8,128)}', space=vmem, size = 0x2000, scoped, tag = 'scratch operand']
  #allocation4 [shape = 'f32[16,32]{1,0:T(8,128)}', space=vmem, size = 0x2000, scoped, tag = 'scratch operand']
  #allocation5 [shape = 'f32[8,32]{1,0:T(8,128)}', space=vmem, size = 0x1000, scoped, tag = 'scratch operand']
  %s0 = inlined_call_operand.vmem [shape: f32[2,8,32], index: 0, kind: input, shape index: {}]
  %s1 = inlined_call_operand.vmem [shape: f32[2,16,32], index: 1, kind: input, shape index: {}]
  %s2 = inlined_call_operand.vmem [shape: f32[32,32], index: 2, kind: input, shape index: {}]
  %s3 = inlined_call_operand.vmem [shape: f32[1,32], index: 3, kind: input, shape index: {}]
  %s4 = inlined_call_operand.vmem [shape: f32[32,32], index: 4, kind: input, shape index: {}]
  %s5 = inlined_call_operand.vmem [shape: f32[1,32], index: 5, kind: input, shape index: {}]
  %s6 = inlined_call_operand.vmem [shape: f32[32,32], index: 6, kind: input, shape index: {}]
  %s7 = inlined_call_operand.vmem [shape: f32[1,32], index: 7, kind: input, shape index: {}]
  %s8 = inlined_call_operand.vmem [shape: f32[32,32], index: 8, kind: input, shape index: {}]
  %s9 = inlined_call_operand.vmem [shape: f32[1,32], index: 9, kind: input, shape index: {}]
  %s10 = inlined_call_operand.vmem [shape: f32[1,32], index: 10, kind: input, shape index: {}]
  %s11 = inlined_call_operand.vmem [shape: f32[1,32], index: 11, kind: input, shape index: {}]
  %s12 = inlined_call_operand.vmem [shape: f32[2,8,32], index: 12, kind: output, shape index: {}]
  %s13 = sld [smem:[#allocation0]]
  $region81: #{decoder_layer_forward.4} parent=0
    _
  %s15 = ssub.s32 1, %s13
  %s16 = scalar_select 0, %s15, %s13
  loop: start=0, step=1, limit=4
  $region2: #{decoder_layer_forward.4} parent=0 // loop_pre_header
    _
  $region3: #{decoder_layer_forward.4} parent=0 // loop_header
    %s18 = sphi 0, %s22
    %p19 = scmp.ge.s32.totalorder %s18, 4
    %s28 = sphi 0, %s30
    %s31 = sphi 0, %s28
    %s32 = sphi 0, %s31
    %s48 = sphi 0, %s32
    %s54 = sphi 0, %s56
    %s57 = sphi 0, %s54
    %s58 = sphi 0, %s57
    %s74 = sphi 0, %s58
    %s78 = sphi 0, %s78
    %s80 = sphi 0, %s78
    %s81 = sphi 0, %s80
    %s95 = sphi 0, %s81
    %s99 = sphi 0, %s99
    %s101 = sphi 0, %s99
    %s102 = sphi 0, %s101
    %s116 = sphi 0, %s102
    %s120 = sphi 0, %s120
    %s122 = sphi 0, %s120
    %s123 = sphi 0, %s122
    %s137 = sphi 0, %s123
    %s141 = sphi 0, %s141
    %s143 = sphi 0, %s141
    %s144 = sphi 0, %s143
    %s158 = sphi 0, %s144
    %s162 = sphi 0, %s162
    %s164 = sphi 0, %s162
    %s165 = sphi 0, %s164
    %s179 = sphi 0, %s165
    %s183 = sphi 0, %s183
    %s185 = sphi 0, %s183
    %s186 = sphi 0, %s185
    %s200 = sphi 0, %s186
    %s204 = sphi 0, %s204
    %s206 = sphi 0, %s204
    %s207 = sphi 0, %s206
    %s221 = sphi 0, %s207
    %s225 = sphi 0, %s225
    %s227 = sphi 0, %s225
    %s228 = sphi 0, %s227
    %s242 = sphi 0, %s228
    %s246 = sphi 0, %s246
    %s248 = sphi 0, %s246
    %s249 = sphi 0, %s248
    %s263 = sphi 0, %s249
    %s267 = sphi 0, %s267
    %s269 = sphi 0, %s267
    %s270 = sphi 0, %s269
    %s284 = sphi 0, %s270
    %s290 = sphi 0, %s292
    %s293 = sphi 0, %s290
    %s294 = sphi 0, %s293
    %s310 = sphi 0, %s294
  $region4: #{decoder_layer_forward.4} parent=0 // loop_header_branch
    %21 = sbr.rel (%p19) target = $region8
  $region5: #{decoder_layer_forward.4} parent=0 // loop_body
    %s23 = ssub.s32 %s18, 1
    %s24 = ssub.s32 %s18, 2
    %s25 = sadd.s32 %s18, 1
    %s26 = ssub.s32 %s18, %s25
    %p27 = scmp.eq.s32.totalorder %s26, 0
    %s29 = sadd.s32 %s28, 1
    %s30 = scalar_select %p27, %s28, %s29
    %p33 = pneg %p27
    %p34 = scmp.eq.s32.totalorder %s18, 1
    %p35 = por %p33, %p34
    %p36 = scmp.ne.s32.totalorder %s28, %s31
    %p37 = scmp.eq.s32.totalorder %s18, 0
    %p38 = por %p36, %p37
    %p39 = scmp.ne.s32.totalorder %s28, %s31
    %p40 = scmp.eq.s32.totalorder %s23, 1
    %p41 = por %p39, %p40
    %p42 = scmp.ne.s32.totalorder %s31, %s32
    %p43 = scmp.eq.s32.totalorder %s23, 0
    %p44 = por %p42, %p43
    %p45 = scmp.ne.s32.totalorder %s31, %s32
    %p46 = scmp.eq.s32.totalorder %s24, 1
    %p47 = por %p45, %p46
    %p49 = scmp.ne.s32.totalorder %s32, %s48
    %p50 = scmp.eq.s32.totalorder %s24, 0
    %p51 = por %p49, %p50
    %s52 = ssub.s32 %s18, %s25
    %p53 = scmp.eq.s32.totalorder %s52, 0
    %s55 = sadd.s32 %s54, 1
    %s56 = scalar_select %p53, %s54, %s55
    %p59 = pneg %p53
    %p60 = scmp.eq.s32.totalorder %s18, 1
    %p61 = por %p59, %p60
    %p62 = scmp.ne.s32.totalorder %s54, %s57
    %p63 = scmp.eq.s32.totalorder %s18, 0
    %p64 = por %p62, %p63
    %p65 = scmp.ne.s32.totalorder %s54, %s57
    %p66 = scmp.eq.s32.totalorder %s23, 1
    %p67 = por %p65, %p66
    %p68 = scmp.ne.s32.totalorder %s57, %s58
    %p69 = scmp.eq.s32.totalorder %s23, 0
    %p70 = por %p68, %p69
    %p71 = scmp.ne.s32.totalorder %s57, %s58
    %p72 = scmp.eq.s32.totalorder %s24, 1
    %p73 = por %p71, %p72
    %p75 = scmp.ne.s32.totalorder %s58, %s74
    %p76 = scmp.eq.s32.totalorder %s24, 0
    %p77 = por %p75, %p76
    %s79 = sadd.s32 %s78, 1
    %p82 = scmp.eq.s32.totalorder %s18, 1
    %p83 = scmp.ne.s32.totalorder %s78, %s80
    %p84 = scmp.eq.s32.totalorder %s18, 0
    %p85 = por %p83, %p84
    %p86 = scmp.ne.s32.totalorder %s78, %s80
    %p87 = scmp.eq.s32.totalorder %s23, 1
    %p88 = por %p86, %p87
    %p89 = scmp.ne.s32.totalorder %s80, %s81
    %p90 = scmp.eq.s32.totalorder %s23, 0
    %p91 = por %p89, %p90
    %p92 = scmp.ne.s32.totalorder %s80, %s81
    %p93 = scmp.eq.s32.totalorder %s24, 1
    %p94 = por %p92, %p93
    %p96 = scmp.ne.s32.totalorder %s81, %s95
    %p97 = scmp.eq.s32.totalorder %s24, 0
    %p98 = por %p96, %p97
    %s100 = sadd.s32 %s99, 1
    %p103 = scmp.eq.s32.totalorder %s18, 1
    %p104 = scmp.ne.s32.totalorder %s99, %s101
    %p105 = scmp.eq.s32.totalorder %s18, 0
    %p106 = por %p104, %p105
    %p107 = scmp.ne.s32.totalorder %s99, %s101
    %p108 = scmp.eq.s32.totalorder %s23, 1
    %p109 = por %p107, %p108
    %p110 = scmp.ne.s32.totalorder %s101, %s102
    %p111 = scmp.eq.s32.totalorder %s23, 0
    %p112 = por %p110, %p111
    %p113 = scmp.ne.s32.totalorder %s101, %s102
    %p114 = scmp.eq.s32.totalorder %s24, 1
    %p115 = por %p113, %p114
    %p117 = scmp.ne.s32.totalorder %s102, %s116
    %p118 = scmp.eq.s32.totalorder %s24, 0
    %p119 = por %p117, %p118
    %s121 = sadd.s32 %s120, 1
    %p124 = scmp.eq.s32.totalorder %s18, 1
    %p125 = scmp.ne.s32.totalorder %s120, %s122
    %p126 = scmp.eq.s32.totalorder %s18, 0
    %p127 = por %p125, %p126
    %p128 = scmp.ne.s32.totalorder %s120, %s122
    %p129 = scmp.eq.s32.totalorder %s23, 1
    %p130 = por %p128, %p129
    %p131 = scmp.ne.s32.totalorder %s122, %s123
    %p132 = scmp.eq.s32.totalorder %s23, 0
    %p133 = por %p131, %p132
    %p134 = scmp.ne.s32.totalorder %s122, %s123
    %p135 = scmp.eq.s32.totalorder %s24, 1
    %p136 = por %p134, %p135
    %p138 = scmp.ne.s32.totalorder %s123, %s137
    %p139 = scmp.eq.s32.totalorder %s24, 0
    %p140 = por %p138, %p139
    %s142 = sadd.s32 %s141, 1
    %p145 = scmp.eq.s32.totalorder %s18, 1
    %p146 = scmp.ne.s32.totalorder %s141, %s143
    %p147 = scmp.eq.s32.totalorder %s18, 0
    %p148 = por %p146, %p147
    %p149 = scmp.ne.s32.totalorder %s141, %s143
    %p150 = scmp.eq.s32.totalorder %s23, 1
    %p151 = por %p149, %p150
    %p152 = scmp.ne.s32.totalorder %s143, %s144
    %p153 = scmp.eq.s32.totalorder %s23, 0
    %p154 = por %p152, %p153
    %p155 = scmp.ne.s32.totalorder %s143, %s144
    %p156 = scmp.eq.s32.totalorder %s24, 1
    %p157 = por %p155, %p156
    %p159 = scmp.ne.s32.totalorder %s144, %s158
    %p160 = scmp.eq.s32.totalorder %s24, 0
    %p161 = por %p159, %p160
    %s163 = sadd.s32 %s162, 1
    %p166 = scmp.eq.s32.totalorder %s18, 1
    %p167 = scmp.ne.s32.totalorder %s162, %s164
    %p168 = scmp.eq.s32.totalorder %s18, 0
    %p169 = por %p167, %p168
    %p170 = scmp.ne.s32.totalorder %s162, %s164
    %p171 = scmp.eq.s32.totalorder %s23, 1
    %p172 = por %p170, %p171
    %p173 = scmp.ne.s32.totalorder %s164, %s165
    %p174 = scmp.eq.s32.totalorder %s23, 0
    %p175 = por %p173, %p174
    %p176 = scmp.ne.s32.totalorder %s164, %s165
    %p177 = scmp.eq.s32.totalorder %s24, 1
    %p178 = por %p176, %p177
    %p180 = scmp.ne.s32.totalorder %s165, %s179
    %p181 = scmp.eq.s32.totalorder %s24, 0
    %p182 = por %p180, %p181
    %s184 = sadd.s32 %s183, 1
    %p187 = scmp.eq.s32.totalorder %s18, 1
    %p188 = scmp.ne.s32.totalorder %s183, %s185
    %p189 = scmp.eq.s32.totalorder %s18, 0
    %p190 = por %p188, %p189
    %p191 = scmp.ne.s32.totalorder %s183, %s185
    %p192 = scmp.eq.s32.totalorder %s23, 1
    %p193 = por %p191, %p192
    %p194 = scmp.ne.s32.totalorder %s185, %s186
    %p195 = scmp.eq.s32.totalorder %s23, 0
    %p196 = por %p194, %p195
    %p197 = scmp.ne.s32.totalorder %s185, %s186
    %p198 = scmp.eq.s32.totalorder %s24, 1
    %p199 = por %p197, %p198
    %p201 = scmp.ne.s32.totalorder %s186, %s200
    %p202 = scmp.eq.s32.totalorder %s24, 0
    %p203 = por %p201, %p202
    %s205 = sadd.s32 %s204, 1
    %p208 = scmp.eq.s32.totalorder %s18, 1
    %p209 = scmp.ne.s32.totalorder %s204, %s206
    %p210 = scmp.eq.s32.totalorder %s18, 0
    %p211 = por %p209, %p210
    %p212 = scmp.ne.s32.totalorder %s204, %s206
    %p213 = scmp.eq.s32.totalorder %s23, 1
    %p214 = por %p212, %p213
    %p215 = scmp.ne.s32.totalorder %s206, %s207
    %p216 = scmp.eq.s32.totalorder %s23, 0
    %p217 = por %p215, %p216
    %p218 = scmp.ne.s32.totalorder %s206, %s207
    %p219 = scmp.eq.s32.totalorder %s24, 1
    %p220 = por %p218, %p219
    %p222 = scmp.ne.s32.totalorder %s207, %s221
    %p223 = scmp.eq.s32.totalorder %s24, 0
    %p224 = por %p222, %p223
    %s226 = sadd.s32 %s225, 1
    %p229 = scmp.eq.s32.totalorder %s18, 1
    %p230 = scmp.ne.s32.totalorder %s225, %s227
    %p231 = scmp.eq.s32.totalorder %s18, 0
    %p232 = por %p230, %p231
    %p233 = scmp.ne.s32.totalorder %s225, %s227
    %p234 = scmp.eq.s32.totalorder %s23, 1
    %p235 = por %p233, %p234
    %p236 = scmp.ne.s32.totalorder %s227, %s228
    %p237 = scmp.eq.s32.totalorder %s23, 0
    %p238 = por %p236, %p237
    %p239 = scmp.ne.s32.totalorder %s227, %s228
    %p240 = scmp.eq.s32.totalorder %s24, 1
    %p241 = por %p239, %p240
    %p243 = scmp.ne.s32.totalorder %s228, %s242
    %p244 = scmp.eq.s32.totalorder %s24, 0
    %p245 = por %p243, %p244
    %s247 = sadd.s32 %s246, 1
    %p250 = scmp.eq.s32.totalorder %s18, 1
    %p251 = scmp.ne.s32.totalorder %s246, %s248
    %p252 = scmp.eq.s32.totalorder %s18, 0
    %p253 = por %p251, %p252
    %p254 = scmp.ne.s32.totalorder %s246, %s248
    %p255 = scmp.eq.s32.totalorder %s23, 1
    %p256 = por %p254, %p255
    %p257 = scmp.ne.s32.totalorder %s248, %s249
    %p258 = scmp.eq.s32.totalorder %s23, 0
    %p259 = por %p257, %p258
    %p260 = scmp.ne.s32.totalorder %s248, %s249
    %p261 = scmp.eq.s32.totalorder %s24, 1
    %p262 = por %p260, %p261
    %p264 = scmp.ne.s32.totalorder %s249, %s263
    %p265 = scmp.eq.s32.totalorder %s24, 0
    %p266 = por %p264, %p265
    %s268 = sadd.s32 %s267, 1
    %p271 = scmp.eq.s32.totalorder %s18, 1
    %p272 = scmp.ne.s32.totalorder %s267, %s269
    %p273 = scmp.eq.s32.totalorder %s18, 0
    %p274 = por %p272, %p273
    %p275 = scmp.ne.s32.totalorder %s267, %s269
    %p276 = scmp.eq.s32.totalorder %s23, 1
    %p277 = por %p275, %p276
    %p278 = scmp.ne.s32.totalorder %s269, %s270
    %p279 = scmp.eq.s32.totalorder %s23, 0
    %p280 = por %p278, %p279
    %p281 = scmp.ne.s32.totalorder %s269, %s270
    %p282 = scmp.eq.s32.totalorder %s24, 1
    %p283 = por %p281, %p282
    %p285 = scmp.ne.s32.totalorder %s270, %s284
    %p286 = scmp.eq.s32.totalorder %s24, 0
    %p287 = por %p285, %p286
    %s288 = ssub.s32 %s18, %s25
    %p289 = scmp.eq.s32.totalorder %s288, 0
    %s291 = sadd.s32 %s290, 1
    %s292 = scalar_select %p289, %s290, %s291
    %p295 = pneg %p289
    %p296 = scmp.eq.s32.totalorder %s18, 1
    %p297 = por %p295, %p296
    %p298 = scmp.ne.s32.totalorder %s290, %s293
    %p299 = scmp.eq.s32.totalorder %s18, 0
    %p300 = por %p298, %p299
    %p301 = scmp.ne.s32.totalorder %s290, %s293
    %p302 = scmp.eq.s32.totalorder %s23, 1
    %p303 = por %p301, %p302
    %p304 = scmp.ne.s32.totalorder %s293, %s294
    %p305 = scmp.eq.s32.totalorder %s23, 0
    %p306 = por %p304, %p305
    %p307 = scmp.ne.s32.totalorder %s293, %s294
    %p308 = scmp.eq.s32.totalorder %s24, 1
    %p309 = por %p307, %p308
    %p311 = scmp.ne.s32.totalorder %s294, %s310
    %p312 = scmp.eq.s32.totalorder %s24, 0
    %p313 = por %p311, %p312
    %p314 = scmp.le.s32.totalorder 1, %s18
    %p315 = scmp.lt.s32.totalorder %s18, 3
    %p316 = pnand %p314, %p315
    %p317 = pneg %p316
    // Predicated region
    $region9: #{decoder_layer_forward.4} parent=5 // pred_check
      _
    $region10: #{decoder_layer_forward.4} parent=5 // pred_check_branch
      %319 = sbr.rel (%p316) target = $region12
    $region11: #{decoder_layer_forward.4} parent=5 // pred_region
      %s320 = ssub.s32 %s18, 1
      // Predicated region
      $region13: #{decoder_layer_forward.4} parent=11 // pred_check
        %p321 = pneg %p91
      $region14: #{decoder_layer_forward.4} parent=11 // pred_check_branch
        %323 = sbr.rel (%p321) target = $region16
      $region15: #{decoder_layer_forward.4} parent=11 // pred_region
        _
      $region16: #{decoder_layer_forward.4} parent=11 // pred_fallthru
        _
      // Predicated region
      $region17: #{decoder_layer_forward.4} parent=11 // pred_check
        %p324 = pneg %p112
      $region18: #{decoder_layer_forward.4} parent=11 // pred_check_branch
        %326 = sbr.rel (%p324) target = $region20
      $region19: #{decoder_layer_forward.4} parent=11 // pred_region
        _
      $region20: #{decoder_layer_forward.4} parent=11 // pred_fallthru
        _
      // Predicated region
      $region21: #{decoder_layer_forward.4} parent=11 // pred_check
        %p327 = pneg %p133
      $region22: #{decoder_layer_forward.4} parent=11 // pred_check_branch
        %329 = sbr.rel (%p327) target = $region24
      $region23: #{decoder_layer_forward.4} parent=11 // pred_region
        _
      $region24: #{decoder_layer_forward.4} parent=11 // pred_fallthru
        _
      // Predicated region
      $region25: #{decoder_layer_forward.4} parent=11 // pred_check
        %p330 = pneg %p154
      $region26: #{decoder_layer_forward.4} parent=11 // pred_check_branch
        %332 = sbr.rel (%p330) target = $region28
      $region27: #{decoder_layer_forward.4} parent=11 // pred_region
        _
      $region28: #{decoder_layer_forward.4} parent=11 // pred_fallthru
        _
      // Predicated region
      $region29: #{decoder_layer_forward.4} parent=11 // pred_check
        %p333 = pneg %p175
      $region30: #{decoder_layer_forward.4} parent=11 // pred_check_branch
        %335 = sbr.rel (%p333) target = $region32
      $region31: #{decoder_layer_forward.4} parent=11 // pred_region
        _
      $region32: #{decoder_layer_forward.4} parent=11 // pred_fallthru
        _
      // Predicated region
      $region33: #{decoder_layer_forward.4} parent=11 // pred_check
        %p336 = pneg %p196
      $region34: #{decoder_layer_forward.4} parent=11 // pred_check_branch
        %338 = sbr.rel (%p336) target = $region36
      $region35: #{decoder_layer_forward.4} parent=11 // pred_region
        _
      $region36: #{decoder_layer_forward.4} parent=11 // pred_fallthru
        _
      // Predicated region
      $region37: #{decoder_layer_forward.4} parent=11 // pred_check
        %p339 = pneg %p217
      $region38: #{decoder_layer_forward.4} parent=11 // pred_check_branch
        %341 = sbr.rel (%p339) target = $region40
      $region39: #{decoder_layer_forward.4} parent=11 // pred_region
        _
      $region40: #{decoder_layer_forward.4} parent=11 // pred_fallthru
        _
      // Predicated region
      $region41: #{decoder_layer_forward.4} parent=11 // pred_check
        %p342 = pneg %p238
      $region42: #{decoder_layer_forward.4} parent=11 // pred_check_branch
        %344 = sbr.rel (%p342) target = $region44
      $region43: #{decoder_layer_forward.4} parent=11 // pred_region
        _
      $region44: #{decoder_layer_forward.4} parent=11 // pred_fallthru
        _
      // Predicated region
      $region45: #{decoder_layer_forward.4} parent=11 // pred_check
        %p345 = pneg %p259
      $region46: #{decoder_layer_forward.4} parent=11 // pred_check_branch
        %347 = sbr.rel (%p345) target = $region48
      $region47: #{decoder_layer_forward.4} parent=11 // pred_region
        _
      $region48: #{decoder_layer_forward.4} parent=11 // pred_fallthru
        _
      // Predicated region
      $region49: #{decoder_layer_forward.4} parent=11 // pred_check
        %p348 = pneg %p280
      $region50: #{decoder_layer_forward.4} parent=11 // pred_check_branch
        %350 = sbr.rel (%p348) target = $region52
      $region51: #{decoder_layer_forward.4} parent=11 // pred_region
        _
      $region52: #{decoder_layer_forward.4} parent=11 // pred_fallthru
        _
    $region12: #{decoder_layer_forward.4} parent=5 // pred_fallthru
      _
    %p351 = scmp.lt.s32.totalorder %s18, 2
    // Predicated region
    $region53: #{decoder_layer_forward.4} parent=5 // pred_check
      %p352 = pneg %p351
    $region54: #{decoder_layer_forward.4} parent=5 // pred_check_branch
      %354 = sbr.rel (%p352) target = $region56
    $region55: #{decoder_layer_forward.4} parent=5 // pred_region
      // Predicated region
      $region57: #{decoder_layer_forward.4} parent=55 // pred_check
        %p355 = pneg %p38
      $region58: #{decoder_layer_forward.4} parent=55 // pred_check_branch
        %357 = sbr.rel (%p355) target = $region60
      $region59: #{decoder_layer_forward.4} parent=55 // pred_region
        %p358 = scmp.lt.s32.totalorder %s18, 1
        %s359 = scalar_select %p358, %s18, 1
        %s360 = smul.addr %s359, 8
        %s361 = scalar_lea.vmem %s0, %s360
      $region60: #{decoder_layer_forward.4} parent=55 // pred_fallthru
        _
      // Predicated region
      $region61: #{decoder_layer_forward.4} parent=55 // pred_check
        %p362 = pneg %p64
      $region62: #{decoder_layer_forward.4} parent=55 // pred_check_branch
        %364 = sbr.rel (%p362) target = $region64
      $region63: #{decoder_layer_forward.4} parent=55 // pred_region
        %p365 = scmp.lt.s32.totalorder %s18, 1
        %s366 = scalar_select %p365, %s18, 1
        %s367 = smul.addr %s366, 2
        %s368 = smul.addr %s367, 8
        %s369 = scalar_lea.vmem %s1, %s368
      $region64: #{decoder_layer_forward.4} parent=55 // pred_fallthru
        _
    $region56: #{decoder_layer_forward.4} parent=5 // pred_fallthru
      _
    %p370 = scmp.le.s32.totalorder 1, %s18
    %p371 = scmp.lt.s32.totalorder %s18, 3
    %p372 = pnand %p370, %p371
    %p373 = pneg %p372
    // Predicated region
    $region65: #{decoder_layer_forward.4} parent=5 // pred_check
      _
    $region66: #{decoder_layer_forward.4} parent=5 // pred_check_branch
      %375 = sbr.rel (%p372) target = $region68
    $region67: #{decoder_layer_forward.4} parent=5 // pred_region
      %s376 = ssub.s32 %s18, 1
      %p377 = scmp.lt.s32.totalorder %s23, 1
      %s378 = scalar_select %p377, %s23, 1
      %s379 = smul.addr %s378, 8
      %s380 = scalar_lea.vmem %s0, %s379
      %p381 = pneg %p44
      %p382 = pneg %p41
      %p383 = scmp.lt.s32.totalorder %s23, 1
      %s384 = scalar_select %p383, %s23, 1
      %s385 = smul.addr %s384, 2
      %s386 = smul.addr %s385, 8
      %s387 = scalar_lea.vmem %s1, %s386
      %p388 = pneg %p70
      %p389 = pneg %p67
      %p390 = pneg %p91
      %p391 = pneg %p88
      %p392 = pneg %p112
      %p393 = pneg %p109
      %p394 = pneg %p133
      %p395 = pneg %p130
      %p396 = pneg %p154
      %p397 = pneg %p151
      %p398 = pneg %p175
      %p399 = pneg %p172
      %p400 = pneg %p196
      %p401 = pneg %p193
      %p402 = pneg %p217
      %p403 = pneg %p214
      %p404 = pneg %p238
      %p405 = pneg %p235
      %p406 = pneg %p259
      %p407 = pneg %p256
      %p408 = pneg %p280
      %p409 = pneg %p277
      %p410 = pneg %p306
      %p411 = pneg %p303
      %p412 = scmp.lt.s32.totalorder %s23, 1
      %s413 = scalar_select %p412, %s23, 1
      %s414 = smul.addr %s413, 8
      %s415 = scalar_lea.vmem %s12, %s414
      %p416 = scmp.lt.s32.totalorder %s23, 1
      %s417 = scalar_select %p416, %s23, 1
      %s418 = smul.addr %s417, 8
      %s419 = scalar_lea.vmem %s0, %s418
      %p420 = scmp.lt.s32.totalorder %s23, 1
      %s421 = scalar_select %p420, %s23, 1
      %s422 = smul.addr %s421, 2
      %s423 = smul.addr %s422, 8
      %s424 = scalar_lea.vmem %s1, %s423
      %p425 = scmp.lt.s32.totalorder %s23, 1
      %s426 = scalar_select %p425, %s23, 1
      %s427 = smul.addr %s426, 8
      %s428 = scalar_lea.vmem %s12, %s427
      %v429 = vld [vmem:[%s419] sm:$0xff]
      %v430 = vld [vmem:[%s424] sm:$0xff]
      %v431 = vld [vmem:[%s424 + $0x8] sm:$0xff]
      %v432 = vld [vmem:[%s2] sm:$0xff]
      %v433 = vld [vmem:[%s2 + $0x8] sm:$0xff]
      %v434 = vld [vmem:[%s2 + $0x10] sm:$0xff]
      %v435 = vld [vmem:[%s2 + $0x18] sm:$0xff]
      %v436 = vld [vmem:[%s3] sm:$0x1]
      %v438 = vlaneseq
      %v439 = vshrl.u32 %v438, 7
      %v440 = vsub.s32 0, %v439
      %v441 = vrot.slane %v436, %v440
      %vm443 = vcmask 261120
      %v445 = vsel %vm443, %v429, 0
      %447 = vmatprep.subr.mxu0 0.0
      %448 = vmatpush1.msra.mxu0 0.0
      %449 = vmatprep.subr.mxu0 0.0
      %450 = vmatpush1.msra.mxu0 0.0
      %451 = vmatprep.subr.mxu0 0.0
      %452 = vmatpush1.msra.mxu0 0.0
      %453 = vmatprep.subr.mxu0 0.0
      %454 = vmatpush1.msra.mxu0 0.0
      %455 = vmatprep.subr.mxu0 0.0
      %456 = vmatpush1.msra.mxu0 0.0
      %457 = vmatprep.subr.mxu0 0.0
      %458 = vmatpush1.msra.mxu0 0.0
      %459 = vmatprep.subr.mxu0 0.0
      %460 = vmatpush1.msra.mxu0 0.0
      %461 = vmatprep.subr.mxu0 0.0
      %462 = vmatpush1.msra.mxu0 0.0
      %463 = vmatprep.subr.mxu0 0.0
      %464 = vmatpush1.msra.mxu0 0.0
      %465 = vmatprep.subr.mxu0 0.0
      %466 = vmatpush1.msra.mxu0 0.0
      %467 = vmatprep.subr.mxu0 0.0
      %468 = vmatpush1.msra.mxu0 0.0
      %469 = vmatprep.subr.mxu0 0.0
      %470 = vmatpush1.msra.mxu0 0.0
      %471 = vmatprep.subr.mxu0 0.0
      %472 = vmatpush1.msra.mxu0 %v435
      %473 = vmatprep.subr.mxu0 0.0
      %474 = vmatpush1.msra.mxu0 %v434
      %475 = vmatprep.subr.mxu0 0.0
      %476 = vmatpush1.msra.mxu0 %v433
      %477 = vmatprep.subr.mxu0 0.0
      %478 = vmatpush1.msra.mxu0 %v432
      %479 = vmatprep.subr.mxu0 0.0
      %480 = vmatpush2.msra.mxu0 0.0
      %481 = vmatprep.subr.mxu0 0.0
      %482 = vmatpush2.msra.mxu0 0.0
      %483 = vmatprep.subr.mxu0 0.0
      %484 = vmatpush2.msra.mxu0 0.0
      %485 = vmatprep.subr.mxu0 0.0
      %486 = vmatpush2.msra.mxu0 0.0
      %487 = vmatprep.subr.mxu0 0.0
      %488 = vmatpush2.msra.mxu0 0.0
      %489 = vmatprep.subr.mxu0 0.0
      %490 = vmatpush2.msra.mxu0 0.0
      %491 = vmatprep.subr.mxu0 0.0
      %492 = vmatpush2.msra.mxu0 0.0
      %493 = vmatprep.subr.mxu0 0.0
      %494 = vmatpush2.msra.mxu0 0.0
      %495 = vmatprep.subr.mxu0 0.0
      %496 = vmatpush2.msra.mxu0 0.0
      %497 = vmatprep.subr.mxu0 0.0
      %498 = vmatpush2.msra.mxu0 0.0
      %499 = vmatprep.subr.mxu0 0.0
      %500 = vmatpush2.msra.mxu0 0.0
      %501 = vmatprep.subr.mxu0 0.0
      %502 = vmatpush2.msra.mxu0 0.0
      %503 = vmatprep.subr.mxu0 0.0
      %504 = vmatpush2.msra.mxu0 0.0
      %505 = vmatprep.subr.mxu0 0.0
      %506 = vmatpush2.msra.mxu0 0.0
      %507 = vmatprep.subr.mxu0 0.0
      %508 = vmatpush2.msra.mxu0 0.0
      %509 = vmatprep.subr.mxu0 0.0
      %510 = vmatpush2.msra.mxu0 0.0
      %511 = vmatprep.mubr.f32.mxu0 0.0
      %512 = vmatmul.mubr.f32.gmra.mxu0 %v445
      %v513 = vpop.f32.mrf.mxu0
      %v514 = vadd.f32 %v441, %v513
      %v515 = vpop.f32.mrf.mxu0
      %516 = vdwg.mxu0
      %517 = vst.msk [vmem:[#allocation2] sm:$0xff] %vm443, %v514
      %v518 = vld [vmem:[%s4] sm:$0xff]
      %v519 = vld [vmem:[%s4 + $0x8] sm:$0xff]
      %v520 = vld [vmem:[%s4 + $0x10] sm:$0xff]
      %v521 = vld [vmem:[%s4 + $0x18] sm:$0xff]
      %v522 = vld [vmem:[%s5] sm:$0x1]
      %v524 = vlaneseq
      %v525 = vshrl.u32 %v524, 7
      %v526 = vsub.s32 0, %v525
      %v527 = vrot.slane %v522, %v526
      %v530 = vsel %vm443, %v430, 0
      %v533 = vsel %vm443, %v431, 0
      %535 = vmatprep.subr.mxu0 0.0
      %536 = vmatpush1.msra.mxu0 0.0
      %537 = vmatprep.subr.mxu0 0.0
      %538 = vmatpush1.msra.mxu0 0.0
      %539 = vmatprep.subr.mxu0 0.0
      %540 = vmatpush1.msra.mxu0 0.0
      %541 = vmatprep.subr.mxu0 0.0
      %542 = vmatpush1.msra.mxu0 0.0
      %543 = vmatprep.subr.mxu0 0.0
      %544 = vmatpush1.msra.mxu0 0.0
      %545 = vmatprep.subr.mxu0 0.0
      %546 = vmatpush1.msra.mxu0 0.0
      %547 = vmatprep.subr.mxu0 0.0
      %548 = vmatpush1.msra.mxu0 0.0
      %549 = vmatprep.subr.mxu0 0.0
      %550 = vmatpush1.msra.mxu0 0.0
      %551 = vmatprep.subr.mxu0 0.0
      %552 = vmatpush1.msra.mxu0 0.0
      %553 = vmatprep.subr.mxu0 0.0
      %554 = vmatpush1.msra.mxu0 0.0
      %555 = vmatprep.subr.mxu0 0.0
      %556 = vmatpush1.msra.mxu0 0.0
      %557 = vmatprep.subr.mxu0 0.0
      %558 = vmatpush1.msra.mxu0 0.0
      %559 = vmatprep.subr.mxu0 0.0
      %560 = vmatpush1.msra.mxu0 %v521
      %561 = vmatprep.subr.mxu0 0.0
      %562 = vmatpush1.msra.mxu0 %v520
      %563 = vmatprep.subr.mxu0 0.0
      %564 = vmatpush1.msra.mxu0 %v519
      %565 = vmatprep.subr.mxu0 0.0
      %566 = vmatpush1.msra.mxu0 %v518
      %567 = vmatprep.subr.mxu0 0.0
      %568 = vmatpush2.msra.mxu0 0.0
      %569 = vmatprep.subr.mxu0 0.0
      %570 = vmatpush2.msra.mxu0 0.0
      %571 = vmatprep.subr.mxu0 0.0
      %572 = vmatpush2.msra.mxu0 0.0
      %573 = vmatprep.subr.mxu0 0.0
      %574 = vmatpush2.msra.mxu0 0.0
      %575 = vmatprep.subr.mxu0 0.0
      %576 = vmatpush2.msra.mxu0 0.0
      %577 = vmatprep.subr.mxu0 0.0
      %578 = vmatpush2.msra.mxu0 0.0
      %579 = vmatprep.subr.mxu0 0.0
      %580 = vmatpush2.msra.mxu0 0.0
      %581 = vmatprep.subr.mxu0 0.0
      %582 = vmatpush2.msra.mxu0 0.0
      %583 = vmatprep.subr.mxu0 0.0
      %584 = vmatpush2.msra.mxu0 0.0
      %585 = vmatprep.subr.mxu0 0.0
      %586 = vmatpush2.msra.mxu0 0.0
      %587 = vmatprep.subr.mxu0 0.0
      %588 = vmatpush2.msra.mxu0 0.0
      %589 = vmatprep.subr.mxu0 0.0
      %590 = vmatpush2.msra.mxu0 0.0
      %591 = vmatprep.subr.mxu0 0.0
      %592 = vmatpush2.msra.mxu0 0.0
      %593 = vmatprep.subr.mxu0 0.0
      %594 = vmatpush2.msra.mxu0 0.0
      %595 = vmatprep.subr.mxu0 0.0
      %596 = vmatpush2.msra.mxu0 0.0
      %597 = vmatprep.subr.mxu0 0.0
      %598 = vmatpush2.msra.mxu0 0.0
      %599 = vmatprep.mubr.f32.mxu0 0.0
      %600 = vmatmul.mubr.f32.gmra.mxu0 %v530
      %v601 = vpop.f32.mrf.mxu0
      %v602 = vadd.f32 %v527, %v601
      %v603 = vpop.f32.mrf.mxu0
      %604 = vmatprep.mubr.f32.mxu0 0.0
      %605 = vmatmul.mubr.f32.gmra.mxu0 %v533
      %v606 = vpop.f32.mrf.mxu0
      %v607 = vadd.f32 %v527, %v606
      %v608 = vpop.f32.mrf.mxu0
      %609 = vdwg.mxu0
      %610 = vst.msk [vmem:[#allocation3] sm:$0xff] %vm443, %v602
      %611 = vst.msk [vmem:[#allocation3 + $0x8] sm:$0xff] %vm443, %v607
      %v612 = vld [vmem:[%s6] sm:$0xff]
      %v613 = vld [vmem:[%s6 + $0x8] sm:$0xff]
      %v614 = vld [vmem:[%s6 + $0x10] sm:$0xff]
      %v615 = vld [vmem:[%s6 + $0x18] sm:$0xff]
      %v616 = vld [vmem:[%s7] sm:$0x1]
      %v618 = vlaneseq
      %v619 = vshrl.u32 %v618, 7
      %v620 = vsub.s32 0, %v619
      %v621 = vrot.slane %v616, %v620
      %623 = vmatprep.subr.mxu0 0.0
      %624 = vmatpush1.msra.mxu0 0.0
      %625 = vmatprep.subr.mxu0 0.0
      %626 = vmatpush1.msra.mxu0 0.0
      %627 = vmatprep.subr.mxu0 0.0
      %628 = vmatpush1.msra.mxu0 0.0
      %629 = vmatprep.subr.mxu0 0.0
      %630 = vmatpush1.msra.mxu0 0.0
      %631 = vmatprep.subr.mxu0 0.0
      %632 = vmatpush1.msra.mxu0 0.0
      %633 = vmatprep.subr.mxu0 0.0
      %634 = vmatpush1.msra.mxu0 0.0
      %635 = vmatprep.subr.mxu0 0.0
      %636 = vmatpush1.msra.mxu0 0.0
      %637 = vmatprep.subr.mxu0 0.0
      %638 = vmatpush1.msra.mxu0 0.0
      %639 = vmatprep.subr.mxu0 0.0
      %640 = vmatpush1.msra.mxu0 0.0
      %641 = vmatprep.subr.mxu0 0.0
      %642 = vmatpush1.msra.mxu0 0.0
      %643 = vmatprep.subr.mxu0 0.0
      %644 = vmatpush1.msra.mxu0 0.0
      %645 = vmatprep.subr.mxu0 0.0
      %646 = vmatpush1.msra.mxu0 0.0
      %647 = vmatprep.subr.mxu0 0.0
      %648 = vmatpush1.msra.mxu0 %v615
      %649 = vmatprep.subr.mxu0 0.0
      %650 = vmatpush1.msra.mxu0 %v614
      %651 = vmatprep.subr.mxu0 0.0
      %652 = vmatpush1.msra.mxu0 %v613
      %653 = vmatprep.subr.mxu0 0.0
      %654 = vmatpush1.msra.mxu0 %v612
      %655 = vmatprep.subr.mxu0 0.0
      %656 = vmatpush2.msra.mxu0 0.0
      %657 = vmatprep.subr.mxu0 0.0
      %658 = vmatpush2.msra.mxu0 0.0
      %659 = vmatprep.subr.mxu0 0.0
      %660 = vmatpush2.msra.mxu0 0.0
      %661 = vmatprep.subr.mxu0 0.0
      %662 = vmatpush2.msra.mxu0 0.0
      %663 = vmatprep.subr.mxu0 0.0
      %664 = vmatpush2.msra.mxu0 0.0
      %665 = vmatprep.subr.mxu0 0.0
      %666 = vmatpush2.msra.mxu0 0.0
      %667 = vmatprep.subr.mxu0 0.0
      %668 = vmatpush2.msra.mxu0 0.0
      %669 = vmatprep.subr.mxu0 0.0
      %670 = vmatpush2.msra.mxu0 0.0
      %671 = vmatprep.subr.mxu0 0.0
      %672 = vmatpush2.msra.mxu0 0.0
      %673 = vmatprep.subr.mxu0 0.0
      %674 = vmatpush2.msra.mxu0 0.0
      %675 = vmatprep.subr.mxu0 0.0
      %676 = vmatpush2.msra.mxu0 0.0
      %677 = vmatprep.subr.mxu0 0.0
      %678 = vmatpush2.msra.mxu0 0.0
      %679 = vmatprep.subr.mxu0 0.0
      %680 = vmatpush2.msra.mxu0 0.0
      %681 = vmatprep.subr.mxu0 0.0
      %682 = vmatpush2.msra.mxu0 0.0
      %683 = vmatprep.subr.mxu0 0.0
      %684 = vmatpush2.msra.mxu0 0.0
      %685 = vmatprep.subr.mxu0 0.0
      %686 = vmatpush2.msra.mxu0 0.0
      %687 = vmatprep.mubr.f32.mxu0 0.0
      %688 = vmatmul.mubr.f32.gmra.mxu0 %v530
      %v689 = vpop.f32.mrf.mxu0
      %v690 = vadd.f32 %v621, %v689
      %v691 = vpop.f32.mrf.mxu0
      %692 = vmatprep.mubr.f32.mxu0 0.0
      %693 = vmatmul.mubr.f32.gmra.mxu0 %v533
      %v694 = vpop.f32.mrf.mxu0
      %v695 = vadd.f32 %v621, %v694
      %v696 = vpop.f32.mrf.mxu0
      %697 = vdwg.mxu0
      %698 = vst.msk [vmem:[#allocation4] sm:$0xff] %vm443, %v690
      %699 = vst.msk [vmem:[#allocation4 + $0x8] sm:$0xff] %vm443, %v695
      %v700 = vld [vmem:[#allocation2] sm:$0xff]
      %v701 = vld [vmem:[#allocation3] sm:$0xff]
      %v702 = vld [vmem:[#allocation3 + $0x8] sm:$0xff]
      %v703 = vld [vmem:[#allocation4] sm:$0xff]
      %v704 = vld [vmem:[#allocation4 + $0x8] sm:$0xff]
      %vm705 = vcmask 64512
      %v707 = vsel %vm705, %v700, 0
      %v710 = vsel %vm705, %v701, 0
      %v713 = vsel %vm705, %v702, 0
      %715 = vmatprep.subr.mxu0 0.0
      %716 = vmatpush1.xpose.msra.mxu0 0.0
      %717 = vmatprep.subr.mxu0 0.0
      %718 = vmatpush1.xpose.msra.mxu0 0.0
      %719 = vmatprep.subr.mxu0 0.0
      %720 = vmatpush1.xpose.msra.mxu0 0.0
      %721 = vmatprep.subr.mxu0 0.0
      %722 = vmatpush1.xpose.msra.mxu0 0.0
      %723 = vmatprep.subr.mxu0 0.0
      %724 = vmatpush1.xpose.msra.mxu0 0.0
      %725 = vmatprep.subr.mxu0 0.0
      %726 = vmatpush1.xpose.msra.mxu0 0.0
      %727 = vmatprep.subr.mxu0 0.0
      %728 = vmatpush1.xpose.msra.mxu0 0.0
      %729 = vmatprep.subr.mxu0 0.0
      %730 = vmatpush1.xpose.msra.mxu0 0.0
      %731 = vmatprep.subr.mxu0 0.0
      %732 = vmatpush1.xpose.msra.mxu0 0.0
      %733 = vmatprep.subr.mxu0 0.0
      %734 = vmatpush1.xpose.msra.mxu0 0.0
      %735 = vmatprep.subr.mxu0 0.0
      %736 = vmatpush1.xpose.msra.mxu0 0.0
      %737 = vmatprep.subr.mxu0 0.0
      %738 = vmatpush1.xpose.msra.mxu0 0.0
      %739 = vmatprep.subr.mxu0 0.0
      %740 = vmatpush1.xpose.msra.mxu0 0.0
      %741 = vmatprep.subr.mxu0 0.0
      %742 = vmatpush1.xpose.msra.mxu0 0.0
      %743 = vmatprep.subr.mxu0 0.0
      %744 = vmatpush1.xpose.msra.mxu0 %v713
      %745 = vmatprep.subr.mxu0 0.0
      %746 = vmatpush1.xpose.msra.mxu0 %v710
      %747 = vmatprep.subr.mxu0 0.0
      %748 = vmatpush2.xpose.msra.mxu0 0.0
      %749 = vmatprep.subr.mxu0 0.0
      %750 = vmatpush2.xpose.msra.mxu0 0.0
      %751 = vmatprep.subr.mxu0 0.0
      %752 = vmatpush2.xpose.msra.mxu0 0.0
      %753 = vmatprep.subr.mxu0 0.0
      %754 = vmatpush2.xpose.msra.mxu0 0.0
      %755 = vmatprep.subr.mxu0 0.0
      %756 = vmatpush2.xpose.msra.mxu0 0.0
      %757 = vmatprep.subr.mxu0 0.0
      %758 = vmatpush2.xpose.msra.mxu0 0.0
      %759 = vmatprep.subr.mxu0 0.0
      %760 = vmatpush2.xpose.msra.mxu0 0.0
      %761 = vmatprep.subr.mxu0 0.0
      %762 = vmatpush2.xpose.msra.mxu0 0.0
      %763 = vmatprep.subr.mxu0 0.0
      %764 = vmatpush2.xpose.msra.mxu0 0.0
      %765 = vmatprep.subr.mxu0 0.0
      %766 = vmatpush2.xpose.msra.mxu0 0.0
      %767 = vmatprep.subr.mxu0 0.0
      %768 = vmatpush2.xpose.msra.mxu0 0.0
      %769 = vmatprep.subr.mxu0 0.0
      %770 = vmatpush2.xpose.msra.mxu0 0.0
      %771 = vmatprep.subr.mxu0 0.0
      %772 = vmatpush2.xpose.msra.mxu0 0.0
      %773 = vmatprep.subr.mxu0 0.0
      %774 = vmatpush2.xpose.msra.mxu0 0.0
      %775 = vmatprep.subr.mxu0 0.0
      %776 = vmatpush2.xpose.msra.mxu0 0.0
      %777 = vmatprep.subr.mxu0 0.0
      %778 = vmatpush2.xpose.msra.mxu0 0.0
      %779 = vmatprep.mubr.f32.mxu0 0.0
      %780 = vmatmul.mubr.f32.gmra.mxu0 %v707
      %v781 = vpop.f32.mrf.mxu0
      %v782 = vadd.f32 0.0, %v781
      %v783 = vpop.f32.mrf.mxu0
      %784 = vdwg.mxu0
      %v785 = vmul.f32 %v782, 0.35355338
      %vm786 = vcmask 130048
      %v787 = vsel %vm786, %v785, -inf
      %788 = vmax.xlane.f32.xlu0 %v787
      %v789 = vpop.xlane.xlu0 %788
      %v790 = vsub.f32 %v785, %v789
      %v791 = vmul.f32 %v790, 1.442695
      %v792 = vpow.pop %v791
      %v793 = vsel %vm786, %v792, 0.0
      %794 = vadd.xlane.f32.xlu0 %v793
      %v795 = vpop.xlane.xlu0 %794
      %v797 = vsel %vm786, %v792, 0
      %799 = vmatprep.subr.mxu0 0.0
      %800 = vmatpush1.msra.mxu0 0.0
      %801 = vmatprep.subr.mxu0 0.0
      %802 = vmatpush1.msra.mxu0 0.0
      %803 = vmatprep.subr.mxu0 0.0
      %804 = vmatpush1.msra.mxu0 0.0
      %805 = vmatprep.subr.mxu0 0.0
      %806 = vmatpush1.msra.mxu0 0.0
      %807 = vmatprep.subr.mxu0 0.0
      %808 = vmatpush1.msra.mxu0 0.0
      %809 = vmatprep.subr.mxu0 0.0
      %810 = vmatpush1.msra.mxu0 0.0
      %811 = vmatprep.subr.mxu0 0.0
      %812 = vmatpush1.msra.mxu0 0.0
      %813 = vmatprep.subr.mxu0 0.0
      %814 = vmatpush1.msra.mxu0 0.0
      %815 = vmatprep.subr.mxu0 0.0
      %816 = vmatpush1.msra.mxu0 0.0
      %817 = vmatprep.subr.mxu0 0.0
      %818 = vmatpush1.msra.mxu0 0.0
      %819 = vmatprep.subr.mxu0 0.0
      %820 = vmatpush1.msra.mxu0 0.0
      %821 = vmatprep.subr.mxu0 0.0
      %822 = vmatpush1.msra.mxu0 0.0
      %823 = vmatprep.subr.mxu0 0.0
      %824 = vmatpush1.msra.mxu0 0.0
      %825 = vmatprep.subr.mxu0 0.0
      %826 = vmatpush1.msra.mxu0 0.0
      %827 = vmatprep.subr.mxu0 0.0
      %828 = vmatpush1.msra.mxu0 %v704
      %829 = vmatprep.subr.mxu0 0.0
      %830 = vmatpush1.msra.mxu0 %v703
      %831 = vmatprep.subr.mxu0 0.0
      %832 = vmatpush2.msra.mxu0 0.0
      %833 = vmatprep.subr.mxu0 0.0
      %834 = vmatpush2.msra.mxu0 0.0
      %835 = vmatprep.subr.mxu0 0.0
      %836 = vmatpush2.msra.mxu0 0.0
      %837 = vmatprep.subr.mxu0 0.0
      %838 = vmatpush2.msra.mxu0 0.0
      %839 = vmatprep.subr.mxu0 0.0
      %840 = vmatpush2.msra.mxu0 0.0
      %841 = vmatprep.subr.mxu0 0.0
      %842 = vmatpush2.msra.mxu0 0.0
      %843 = vmatprep.subr.mxu0 0.0
      %844 = vmatpush2.msra.mxu0 0.0
      %845 = vmatprep.subr.mxu0 0.0
      %846 = vmatpush2.msra.mxu0 0.0
      %847 = vmatprep.subr.mxu0 0.0
      %848 = vmatpush2.msra.mxu0 0.0
      %849 = vmatprep.subr.mxu0 0.0
      %850 = vmatpush2.msra.mxu0 0.0
      %851 = vmatprep.subr.mxu0 0.0
      %852 = vmatpush2.msra.mxu0 0.0
      %853 = vmatprep.subr.mxu0 0.0
      %854 = vmatpush2.msra.mxu0 0.0
      %855 = vmatprep.subr.mxu0 0.0
      %856 = vmatpush2.msra.mxu0 0.0
      %857 = vmatprep.subr.mxu0 0.0
      %858 = vmatpush2.msra.mxu0 0.0
      %859 = vmatprep.subr.mxu0 0.0
      %860 = vmatpush2.msra.mxu0 0.0
      %861 = vmatprep.subr.mxu0 0.0
      %862 = vmatpush2.msra.mxu0 0.0
      %863 = vmatprep.mubr.f32.mxu0 0.0
      %864 = vmatmul.mubr.f32.gmra.mxu0 %v797
      %v865 = vpop.f32.mrf.mxu0
      %v866 = vadd.f32 0.0, %v865
      %v867 = vpop.f32.mrf.mxu0
      %868 = vdwg.mxu0
      %v869 = vrcp.pop %v795
      %v870 = vmul.f32 %v866, %v869
      %871 = vst.msk [vmem:[#allocation5] sm:$0xff] %vm705, %v870
      %v872 = vld [vmem:[#allocation2] sm:$0xff]
      %v873 = vld [vmem:[#allocation3] sm:$0xff]
      %v874 = vld [vmem:[#allocation3 + $0x8] sm:$0xff]
      %v875 = vld [vmem:[#allocation4] sm:$0xff]
      %v876 = vld [vmem:[#allocation4 + $0x8] sm:$0xff]
      %878 = vrot.lane.b32.xlu0 %v872, 120
      %v879 = vpop.permute.xlu0 %878
      %882 = vrot.lane.b32.xlu0 %v873, 120
      %v883 = vpop.permute.xlu0 %882
      %884 = vrot.lane.b32.xlu0 %v874, 120
      %v885 = vpop.permute.xlu0 %884
      %v886 = vsel %vm705, %v879, 0
      %v888 = vsel %vm705, %v883, 0
      %v890 = vsel %vm705, %v885, 0
      %892 = vmatprep.subr.mxu0 0.0
      %893 = vmatpush1.xpose.msra.mxu0 0.0
      %894 = vmatprep.subr.mxu0 0.0
      %895 = vmatpush1.xpose.msra.mxu0 0.0
      %896 = vmatprep.subr.mxu0 0.0
      %897 = vmatpush1.xpose.msra.mxu0 0.0
      %898 = vmatprep.subr.mxu0 0.0
      %899 = vmatpush1.xpose.msra.mxu0 0.0
      %900 = vmatprep.subr.mxu0 0.0
      %901 = vmatpush1.xpose.msra.mxu0 0.0
      %902 = vmatprep.subr.mxu0 0.0
      %903 = vmatpush1.xpose.msra.mxu0 0.0
      %904 = vmatprep.subr.mxu0 0.0
      %905 = vmatpush1.xpose.msra.mxu0 0.0
      %906 = vmatprep.subr.mxu0 0.0
      %907 = vmatpush1.xpose.msra.mxu0 0.0
      %908 = vmatprep.subr.mxu0 0.0
      %909 = vmatpush1.xpose.msra.mxu0 0.0
      %910 = vmatprep.subr.mxu0 0.0
      %911 = vmatpush1.xpose.msra.mxu0 0.0
      %912 = vmatprep.subr.mxu0 0.0
      %913 = vmatpush1.xpose.msra.mxu0 0.0
      %914 = vmatprep.subr.mxu0 0.0
      %915 = vmatpush1.xpose.msra.mxu0 0.0
      %916 = vmatprep.subr.mxu0 0.0
      %917 = vmatpush1.xpose.msra.mxu0 0.0
      %918 = vmatprep.subr.mxu0 0.0
      %919 = vmatpush1.xpose.msra.mxu0 0.0
      %920 = vmatprep.subr.mxu0 0.0
      %921 = vmatpush1.xpose.msra.mxu0 %v890
      %922 = vmatprep.subr.mxu0 0.0
      %923 = vmatpush1.xpose.msra.mxu0 %v888
      %924 = vmatprep.subr.mxu0 0.0
      %925 = vmatpush2.xpose.msra.mxu0 0.0
      %926 = vmatprep.subr.mxu0 0.0
      %927 = vmatpush2.xpose.msra.mxu0 0.0
      %928 = vmatprep.subr.mxu0 0.0
      %929 = vmatpush2.xpose.msra.mxu0 0.0
      %930 = vmatprep.subr.mxu0 0.0
      %931 = vmatpush2.xpose.msra.mxu0 0.0
      %932 = vmatprep.subr.mxu0 0.0
      %933 = vmatpush2.xpose.msra.mxu0 0.0
      %934 = vmatprep.subr.mxu0 0.0
      %935 = vmatpush2.xpose.msra.mxu0 0.0
      %936 = vmatprep.subr.mxu0 0.0
      %937 = vmatpush2.xpose.msra.mxu0 0.0
      %938 = vmatprep.subr.mxu0 0.0
      %939 = vmatpush2.xpose.msra.mxu0 0.0
      %940 = vmatprep.subr.mxu0 0.0
      %941 = vmatpush2.xpose.msra.mxu0 0.0
      %942 = vmatprep.subr.mxu0 0.0
      %943 = vmatpush2.xpose.msra.mxu0 0.0
      %944 = vmatprep.subr.mxu0 0.0
      %945 = vmatpush2.xpose.msra.mxu0 0.0
      %946 = vmatprep.subr.mxu0 0.0
      %947 = vmatpush2.xpose.msra.mxu0 0.0
      %948 = vmatprep.subr.mxu0 0.0
      %949 = vmatpush2.xpose.msra.mxu0 0.0
      %950 = vmatprep.subr.mxu0 0.0
      %951 = vmatpush2.xpose.msra.mxu0 0.0
      %952 = vmatprep.subr.mxu0 0.0
      %953 = vmatpush2.xpose.msra.mxu0 0.0
      %954 = vmatprep.subr.mxu0 0.0
      %955 = vmatpush2.xpose.msra.mxu0 0.0
      %956 = vmatprep.mubr.f32.mxu0 0.0
      %957 = vmatmul.mubr.f32.gmra.mxu0 %v886
      %v958 = vpop.f32.mrf.mxu0
      %v959 = vadd.f32 0.0, %v958
      %v960 = vpop.f32.mrf.mxu0
      %961 = vdwg.mxu0
      %v962 = vmul.f32 %v959, 0.35355338
      %v963 = vsel %vm786, %v962, -inf
      %964 = vmax.xlane.f32.xlu0 %v963
      %v965 = vpop.xlane.xlu0 %964
      %v966 = vsub.f32 %v962, %v965
      %v967 = vmul.f32 %v966, 1.442695
      %v968 = vpow.pop %v967
      %v969 = vsel %vm786, %v968, 0.0
      %970 = vadd.xlane.f32.xlu0 %v969
      %v971 = vpop.xlane.xlu0 %970
      %974 = vrot.lane.b32.xlu0 %v875, 120
      %v975 = vpop.permute.xlu0 %974
      %976 = vrot.lane.b32.xlu0 %v876, 120
      %v977 = vpop.permute.xlu0 %976
      %v981 = vsel %vm786, %v968, 0
      %983 = vmatprep.subr.mxu0 0.0
      %984 = vmatpush1.msra.mxu0 0.0
      %985 = vmatprep.subr.mxu0 0.0
      %986 = vmatpush1.msra.mxu0 0.0
      %987 = vmatprep.subr.mxu0 0.0
      %988 = vmatpush1.msra.mxu0 0.0
      %989 = vmatprep.subr.mxu0 0.0
      %990 = vmatpush1.msra.mxu0 0.0
      %991 = vmatprep.subr.mxu0 0.0
      %992 = vmatpush1.msra.mxu0 0.0
      %993 = vmatprep.subr.mxu0 0.0
      %994 = vmatpush1.msra.mxu0 0.0
      %995 = vmatprep.subr.mxu0 0.0
      %996 = vmatpush1.msra.mxu0 0.0
      %997 = vmatprep.subr.mxu0 0.0
      %998 = vmatpush1.msra.mxu0 0.0
      %999 = vmatprep.subr.mxu0 0.0
      %1000 = vmatpush1.msra.mxu0 0.0
      %1001 = vmatprep.subr.mxu0 0.0
      %1002 = vmatpush1.msra.mxu0 0.0
      %1003 = vmatprep.subr.mxu0 0.0
      %1004 = vmatpush1.msra.mxu0 0.0
      %1005 = vmatprep.subr.mxu0 0.0
      %1006 = vmatpush1.msra.mxu0 0.0
      %1007 = vmatprep.subr.mxu0 0.0
      %1008 = vmatpush1.msra.mxu0 0.0
      %1009 = vmatprep.subr.mxu0 0.0
      %1010 = vmatpush1.msra.mxu0 0.0
      %1011 = vmatprep.subr.mxu0 0.0
      %1012 = vmatpush1.msra.mxu0 %v977
      %1013 = vmatprep.subr.mxu0 0.0
      %1014 = vmatpush1.msra.mxu0 %v975
      %1015 = vmatprep.subr.mxu0 0.0
      %1016 = vmatpush2.msra.mxu0 0.0
      %1017 = vmatprep.subr.mxu0 0.0
      %1018 = vmatpush2.msra.mxu0 0.0
      %1019 = vmatprep.subr.mxu0 0.0
      %1020 = vmatpush2.msra.mxu0 0.0
      %1021 = vmatprep.subr.mxu0 0.0
      %1022 = vmatpush2.msra.mxu0 0.0
      %1023 = vmatprep.subr.mxu0 0.0
      %1024 = vmatpush2.msra.mxu0 0.0
      %1025 = vmatprep.subr.mxu0 0.0
      %1026 = vmatpush2.msra.mxu0 0.0
      %1027 = vmatprep.subr.mxu0 0.0
      %1028 = vmatpush2.msra.mxu0 0.0
      %1029 = vmatprep.subr.mxu0 0.0
      %1030 = vmatpush2.msra.mxu0 0.0
      %1031 = vmatprep.subr.mxu0 0.0
      %1032 = vmatpush2.msra.mxu0 0.0
      %1033 = vmatprep.subr.mxu0 0.0
      %1034 = vmatpush2.msra.mxu0 0.0
      %1035 = vmatprep.subr.mxu0 0.0
      %1036 = vmatpush2.msra.mxu0 0.0
      %1037 = vmatprep.subr.mxu0 0.0
      %1038 = vmatpush2.msra.mxu0 0.0
      %1039 = vmatprep.subr.mxu0 0.0
      %1040 = vmatpush2.msra.mxu0 0.0
      %1041 = vmatprep.subr.mxu0 0.0
      %1042 = vmatpush2.msra.mxu0 0.0
      %1043 = vmatprep.subr.mxu0 0.0
      %1044 = vmatpush2.msra.mxu0 0.0
      %1045 = vmatprep.subr.mxu0 0.0
      %1046 = vmatpush2.msra.mxu0 0.0
      %1047 = vmatprep.mubr.f32.mxu0 0.0
      %1048 = vmatmul.mubr.f32.gmra.mxu0 %v981
      %v1049 = vpop.f32.mrf.mxu0
      %v1050 = vadd.f32 0.0, %v1049
      %v1051 = vpop.f32.mrf.mxu0
      %1052 = vdwg.mxu0
      %v1053 = vrcp.pop %v971
      %v1054 = vmul.f32 %v1050, %v1053
      %1056 = vrot.lane.b32.xlu0 %v1054, 8
      %v1057 = vpop.permute.xlu0 %1056
      %vm1059 = vcmask 130112
      %1060 = vst.msk [vmem:[#allocation5] sm:$0xff] %vm1059, %v1057
      %v1061 = vld [vmem:[#allocation2] sm:$0xff]
      %v1062 = vld [vmem:[#allocation3] sm:$0xff]
      %v1063 = vld [vmem:[#allocation3 + $0x8] sm:$0xff]
      %v1064 = vld [vmem:[#allocation4] sm:$0xff]
      %v1065 = vld [vmem:[#allocation4 + $0x8] sm:$0xff]
      %1067 = vrot.lane.b32.xlu0 %v1061, 112
      %v1068 = vpop.permute.xlu0 %1067
      %1071 = vrot.lane.b32.xlu0 %v1062, 112
      %v1072 = vpop.permute.xlu0 %1071
      %1073 = vrot.lane.b32.xlu0 %v1063, 112
      %v1074 = vpop.permute.xlu0 %1073
      %v1075 = vsel %vm705, %v1068, 0
      %v1077 = vsel %vm705, %v1072, 0
      %v1079 = vsel %vm705, %v1074, 0
      %1081 = vmatprep.subr.mxu0 0.0
      %1082 = vmatpush1.xpose.msra.mxu0 0.0
      %1083 = vmatprep.subr.mxu0 0.0
      %1084 = vmatpush1.xpose.msra.mxu0 0.0
      %1085 = vmatprep.subr.mxu0 0.0
      %1086 = vmatpush1.xpose.msra.mxu0 0.0
      %1087 = vmatprep.subr.mxu0 0.0
      %1088 = vmatpush1.xpose.msra.mxu0 0.0
      %1089 = vmatprep.subr.mxu0 0.0
      %1090 = vmatpush1.xpose.msra.mxu0 0.0
      %1091 = vmatprep.subr.mxu0 0.0
      %1092 = vmatpush1.xpose.msra.mxu0 0.0
      %1093 = vmatprep.subr.mxu0 0.0
      %1094 = vmatpush1.xpose.msra.mxu0 0.0
      %1095 = vmatprep.subr.mxu0 0.0
      %1096 = vmatpush1.xpose.msra.mxu0 0.0
      %1097 = vmatprep.subr.mxu0 0.0
      %1098 = vmatpush1.xpose.msra.mxu0 0.0
      %1099 = vmatprep.subr.mxu0 0.0
      %1100 = vmatpush1.xpose.msra.mxu0 0.0
      %1101 = vmatprep.subr.mxu0 0.0
      %1102 = vmatpush1.xpose.msra.mxu0 0.0
      %1103 = vmatprep.subr.mxu0 0.0
      %1104 = vmatpush1.xpose.msra.mxu0 0.0
      %1105 = vmatprep.subr.mxu0 0.0
      %1106 = vmatpush1.xpose.msra.mxu0 0.0
      %1107 = vmatprep.subr.mxu0 0.0
      %1108 = vmatpush1.xpose.msra.mxu0 0.0
      %1109 = vmatprep.subr.mxu0 0.0
      %1110 = vmatpush1.xpose.msra.mxu0 %v1079
      %1111 = vmatprep.subr.mxu0 0.0
      %1112 = vmatpush1.xpose.msra.mxu0 %v1077
      %1113 = vmatprep.subr.mxu0 0.0
      %1114 = vmatpush2.xpose.msra.mxu0 0.0
      %1115 = vmatprep.subr.mxu0 0.0
      %1116 = vmatpush2.xpose.msra.mxu0 0.0
      %1117 = vmatprep.subr.mxu0 0.0
      %1118 = vmatpush2.xpose.msra.mxu0 0.0
      %1119 = vmatprep.subr.mxu0 0.0
      %1120 = vmatpush2.xpose.msra.mxu0 0.0
      %1121 = vmatprep.subr.mxu0 0.0
      %1122 = vmatpush2.xpose.msra.mxu0 0.0
      %1123 = vmatprep.subr.mxu0 0.0
      %1124 = vmatpush2.xpose.msra.mxu0 0.0
      %1125 = vmatprep.subr.mxu0 0.0
      %1126 = vmatpush2.xpose.msra.mxu0 0.0
      %1127 = vmatprep.subr.mxu0 0.0
      %1128 = vmatpush2.xpose.msra.mxu0 0.0
      %1129 = vmatprep.subr.mxu0 0.0
      %1130 = vmatpush2.xpose.msra.mxu0 0.0
      %1131 = vmatprep.subr.mxu0 0.0
      %1132 = vmatpush2.xpose.msra.mxu0 0.0
      %1133 = vmatprep.subr.mxu0 0.0
      %1134 = vmatpush2.xpose.msra.mxu0 0.0
      %1135 = vmatprep.subr.mxu0 0.0
      %1136 = vmatpush2.xpose.msra.mxu0 0.0
      %1137 = vmatprep.subr.mxu0 0.0
      %1138 = vmatpush2.xpose.msra.mxu0 0.0
      %1139 = vmatprep.subr.mxu0 0.0
      %1140 = vmatpush2.xpose.msra.mxu0 0.0
      %1141 = vmatprep.subr.mxu0 0.0
      %1142 = vmatpush2.xpose.msra.mxu0 0.0
      %1143 = vmatprep.subr.mxu0 0.0
      %1144 = vmatpush2.xpose.msra.mxu0 0.0
      %1145 = vmatprep.mubr.f32.mxu0 0.0
      %1146 = vmatmul.mubr.f32.gmra.mxu0 %v1075
      %v1147 = vpop.f32.mrf.mxu0
      %v1148 = vadd.f32 0.0, %v1147
      %v1149 = vpop.f32.mrf.mxu0
      %1150 = vdwg.mxu0
      %v1151 = vmul.f32 %v1148, 0.35355338
      %v1152 = vsel %vm786, %v1151, -inf
      %1153 = vmax.xlane.f32.xlu0 %v1152
      %v1154 = vpop.xlane.xlu0 %1153
      %v1155 = vsub.f32 %v1151, %v1154
      %v1156 = vmul.f32 %v1155, 1.442695
      %v1157 = vpow.pop %v1156
      %v1158 = vsel %vm786, %v1157, 0.0
      %1159 = vadd.xlane.f32.xlu0 %v1158
      %v1160 = vpop.xlane.xlu0 %1159
      %1163 = vrot.lane.b32.xlu0 %v1064, 112
      %v1164 = vpop.permute.xlu0 %1163
      %1165 = vrot.lane.b32.xlu0 %v1065, 112
      %v1166 = vpop.permute.xlu0 %1165
      %v1170 = vsel %vm786, %v1157, 0
      %1172 = vmatprep.subr.mxu0 0.0
      %1173 = vmatpush1.msra.mxu0 0.0
      %1174 = vmatprep.subr.mxu0 0.0
      %1175 = vmatpush1.msra.mxu0 0.0
      %1176 = vmatprep.subr.mxu0 0.0
      %1177 = vmatpush1.msra.mxu0 0.0
      %1178 = vmatprep.subr.mxu0 0.0
      %1179 = vmatpush1.msra.mxu0 0.0
      %1180 = vmatprep.subr.mxu0 0.0
      %1181 = vmatpush1.msra.mxu0 0.0
      %1182 = vmatprep.subr.mxu0 0.0
      %1183 = vmatpush1.msra.mxu0 0.0
      %1184 = vmatprep.subr.mxu0 0.0
      %1185 = vmatpush1.msra.mxu0 0.0
      %1186 = vmatprep.subr.mxu0 0.0
      %1187 = vmatpush1.msra.mxu0 0.0
      %1188 = vmatprep.subr.mxu0 0.0
      %1189 = vmatpush1.msra.mxu0 0.0
      %1190 = vmatprep.subr.mxu0 0.0
      %1191 = vmatpush1.msra.mxu0 0.0
      %1192 = vmatprep.subr.mxu0 0.0
      %1193 = vmatpush1.msra.mxu0 0.0
      %1194 = vmatprep.subr.mxu0 0.0
      %1195 = vmatpush1.msra.mxu0 0.0
      %1196 = vmatprep.subr.mxu0 0.0
      %1197 = vmatpush1.msra.mxu0 0.0
      %1198 = vmatprep.subr.mxu0 0.0
      %1199 = vmatpush1.msra.mxu0 0.0
      %1200 = vmatprep.subr.mxu0 0.0
      %1201 = vmatpush1.msra.mxu0 %v1166
      %1202 = vmatprep.subr.mxu0 0.0
      %1203 = vmatpush1.msra.mxu0 %v1164
      %1204 = vmatprep.subr.mxu0 0.0
      %1205 = vmatpush2.msra.mxu0 0.0
      %1206 = vmatprep.subr.mxu0 0.0
      %1207 = vmatpush2.msra.mxu0 0.0
      %1208 = vmatprep.subr.mxu0 0.0
      %1209 = vmatpush2.msra.mxu0 0.0
      %1210 = vmatprep.subr.mxu0 0.0
      %1211 = vmatpush2.msra.mxu0 0.0
      %1212 = vmatprep.subr.mxu0 0.0
      %1213 = vmatpush2.msra.mxu0 0.0
      %1214 = vmatprep.subr.mxu0 0.0
      %1215 = vmatpush2.msra.mxu0 0.0
      %1216 = vmatprep.subr.mxu0 0.0
      %1217 = vmatpush2.msra.mxu0 0.0
      %1218 = vmatprep.subr.mxu0 0.0
      %1219 = vmatpush2.msra.mxu0 0.0
      %1220 = vmatprep.subr.mxu0 0.0
      %1221 = vmatpush2.msra.mxu0 0.0
      %1222 = vmatprep.subr.mxu0 0.0
      %1223 = vmatpush2.msra.mxu0 0.0
      %1224 = vmatprep.subr.mxu0 0.0
      %1225 = vmatpush2.msra.mxu0 0.0
      %1226 = vmatprep.subr.mxu0 0.0
      %1227 = vmatpush2.msra.mxu0 0.0
      %1228 = vmatprep.subr.mxu0 0.0
      %1229 = vmatpush2.msra.mxu0 0.0
      %1230 = vmatprep.subr.mxu0 0.0
      %1231 = vmatpush2.msra.mxu0 0.0
      %1232 = vmatprep.subr.mxu0 0.0
      %1233 = vmatpush2.msra.mxu0 0.0
      %1234 = vmatprep.subr.mxu0 0.0
      %1235 = vmatpush2.msra.mxu0 0.0
      %1236 = vmatprep.mubr.f32.mxu0 0.0
      %1237 = vmatmul.mubr.f32.gmra.mxu0 %v1170
      %v1238 = vpop.f32.mrf.mxu0
      %v1239 = vadd.f32 0.0, %v1238
      %v1240 = vpop.f32.mrf.mxu0
      %1241 = vdwg.mxu0
      %v1242 = vrcp.pop %v1160
      %v1243 = vmul.f32 %v1239, %v1242
      %1245 = vrot.lane.b32.xlu0 %v1243, 16
      %v1246 = vpop.permute.xlu0 %1245
      %vm1248 = vcmask 195712
      %1249 = vst.msk [vmem:[#allocation5] sm:$0xff] %vm1248, %v1246
      %v1250 = vld [vmem:[#allocation2] sm:$0xff]
      %v1251 = vld [vmem:[#allocation3] sm:$0xff]
      %v1252 = vld [vmem:[#allocation3 + $0x8] sm:$0xff]
      %v1253 = vld [vmem:[#allocation4] sm:$0xff]
      %v1254 = vld [vmem:[#allocation4 + $0x8] sm:$0xff]
      %1256 = vrot.lane.b32.xlu0 %v1250, 104
      %v1257 = vpop.permute.xlu0 %1256
      %1260 = vrot.lane.b32.xlu0 %v1251, 104
      %v1261 = vpop.permute.xlu0 %1260
      %1262 = vrot.lane.b32.xlu0 %v1252, 104
      %v1263 = vpop.permute.xlu0 %1262
      %v1264 = vsel %vm705, %v1257, 0
      %v1266 = vsel %vm705, %v1261, 0
      %v1268 = vsel %vm705, %v1263, 0
      %1270 = vmatprep.subr.mxu0 0.0
      %1271 = vmatpush1.xpose.msra.mxu0 0.0
      %1272 = vmatprep.subr.mxu0 0.0
      %1273 = vmatpush1.xpose.msra.mxu0 0.0
      %1274 = vmatprep.subr.mxu0 0.0
      %1275 = vmatpush1.xpose.msra.mxu0 0.0
      %1276 = vmatprep.subr.mxu0 0.0
      %1277 = vmatpush1.xpose.msra.mxu0 0.0
      %1278 = vmatprep.subr.mxu0 0.0
      %1279 = vmatpush1.xpose.msra.mxu0 0.0
      %1280 = vmatprep.subr.mxu0 0.0
      %1281 = vmatpush1.xpose.msra.mxu0 0.0
      %1282 = vmatprep.subr.mxu0 0.0
      %1283 = vmatpush1.xpose.msra.mxu0 0.0
      %1284 = vmatprep.subr.mxu0 0.0
      %1285 = vmatpush1.xpose.msra.mxu0 0.0
      %1286 = vmatprep.subr.mxu0 0.0
      %1287 = vmatpush1.xpose.msra.mxu0 0.0
      %1288 = vmatprep.subr.mxu0 0.0
      %1289 = vmatpush1.xpose.msra.mxu0 0.0
      %1290 = vmatprep.subr.mxu0 0.0
      %1291 = vmatpush1.xpose.msra.mxu0 0.0
      %1292 = vmatprep.subr.mxu0 0.0
      %1293 = vmatpush1.xpose.msra.mxu0 0.0
      %1294 = vmatprep.subr.mxu0 0.0
      %1295 = vmatpush1.xpose.msra.mxu0 0.0
      %1296 = vmatprep.subr.mxu0 0.0
      %1297 = vmatpush1.xpose.msra.mxu0 0.0
      %1298 = vmatprep.subr.mxu0 0.0
      %1299 = vmatpush1.xpose.msra.mxu0 %v1268
      %1300 = vmatprep.subr.mxu0 0.0
      %1301 = vmatpush1.xpose.msra.mxu0 %v1266
      %1302 = vmatprep.subr.mxu0 0.0
      %1303 = vmatpush2.xpose.msra.mxu0 0.0
      %1304 = vmatprep.subr.mxu0 0.0
      %1305 = vmatpush2.xpose.msra.mxu0 0.0
      %1306 = vmatprep.subr.mxu0 0.0
      %1307 = vmatpush2.xpose.msra.mxu0 0.0
      %1308 = vmatprep.subr.mxu0 0.0
      %1309 = vmatpush2.xpose.msra.mxu0 0.0
      %1310 = vmatprep.subr.mxu0 0.0
      %1311 = vmatpush2.xpose.msra.mxu0 0.0
      %1312 = vmatprep.subr.mxu0 0.0
      %1313 = vmatpush2.xpose.msra.mxu0 0.0
      %1314 = vmatprep.subr.mxu0 0.0
      %1315 = vmatpush2.xpose.msra.mxu0 0.0
      %1316 = vmatprep.subr.mxu0 0.0
      %1317 = vmatpush2.xpose.msra.mxu0 0.0
      %1318 = vmatprep.subr.mxu0 0.0
      %1319 = vmatpush2.xpose.msra.mxu0 0.0
      %1320 = vmatprep.subr.mxu0 0.0
      %1321 = vmatpush2.xpose.msra.mxu0 0.0
      %1322 = vmatprep.subr.mxu0 0.0
      %1323 = vmatpush2.xpose.msra.mxu0 0.0
      %1324 = vmatprep.subr.mxu0 0.0
      %1325 = vmatpush2.xpose.msra.mxu0 0.0
      %1326 = vmatprep.subr.mxu0 0.0
      %1327 = vmatpush2.xpose.msra.mxu0 0.0
      %1328 = vmatprep.subr.mxu0 0.0
      %1329 = vmatpush2.xpose.msra.mxu0 0.0
      %1330 = vmatprep.subr.mxu0 0.0
      %1331 = vmatpush2.xpose.msra.mxu0 0.0
      %1332 = vmatprep.subr.mxu0 0.0
      %1333 = vmatpush2.xpose.msra.mxu0 0.0
      %1334 = vmatprep.mubr.f32.mxu0 0.0
      %1335 = vmatmul.mubr.f32.gmra.mxu0 %v1264
      %v1336 = vpop.f32.mrf.mxu0
      %v1337 = vadd.f32 0.0, %v1336
      %v1338 = vpop.f32.mrf.mxu0
      %1339 = vdwg.mxu0
      %v1340 = vmul.f32 %v1337, 0.35355338
      %v1341 = vsel %vm786, %v1340, -inf
      %1342 = vmax.xlane.f32.xlu0 %v1341
      %v1343 = vpop.xlane.xlu0 %1342
      %v1344 = vsub.f32 %v1340, %v1343
      %v1345 = vmul.f32 %v1344, 1.442695
      %v1346 = vpow.pop %v1345
      %v1347 = vsel %vm786, %v1346, 0.0
      %1348 = vadd.xlane.f32.xlu0 %v1347
      %v1349 = vpop.xlane.xlu0 %1348
      %1352 = vrot.lane.b32.xlu0 %v1253, 104
      %v1353 = vpop.permute.xlu0 %1352
      %1354 = vrot.lane.b32.xlu0 %v1254, 104
      %v1355 = vpop.permute.xlu0 %1354
      %v1359 = vsel %vm786, %v1346, 0
      %1361 = vmatprep.subr.mxu0 0.0
      %1362 = vmatpush1.msra.mxu0 0.0
      %1363 = vmatprep.subr.mxu0 0.0
      %1364 = vmatpush1.msra.mxu0 0.0
      %1365 = vmatprep.subr.mxu0 0.0
      %1366 = vmatpush1.msra.mxu0 0.0
      %1367 = vmatprep.subr.mxu0 0.0
      %1368 = vmatpush1.msra.mxu0 0.0
      %1369 = vmatprep.subr.mxu0 0.0
      %1370 = vmatpush1.msra.mxu0 0.0
      %1371 = vmatprep.subr.mxu0 0.0
      %1372 = vmatpush1.msra.mxu0 0.0
      %1373 = vmatprep.subr.mxu0 0.0
      %1374 = vmatpush1.msra.mxu0 0.0
      %1375 = vmatprep.subr.mxu0 0.0
      %1376 = vmatpush1.msra.mxu0 0.0
      %1377 = vmatprep.subr.mxu0 0.0
      %1378 = vmatpush1.msra.mxu0 0.0
      %1379 = vmatprep.subr.mxu0 0.0
      %1380 = vmatpush1.msra.mxu0 0.0
      %1381 = vmatprep.subr.mxu0 0.0
      %1382 = vmatpush1.msra.mxu0 0.0
      %1383 = vmatprep.subr.mxu0 0.0
      %1384 = vmatpush1.msra.mxu0 0.0
      %1385 = vmatprep.subr.mxu0 0.0
      %1386 = vmatpush1.msra.mxu0 0.0
      %1387 = vmatprep.subr.mxu0 0.0
      %1388 = vmatpush1.msra.mxu0 0.0
      %1389 = vmatprep.subr.mxu0 0.0
      %1390 = vmatpush1.msra.mxu0 %v1355
      %1391 = vmatprep.subr.mxu0 0.0
      %1392 = vmatpush1.msra.mxu0 %v1353
      %1393 = vmatprep.subr.mxu0 0.0
      %1394 = vmatpush2.msra.mxu0 0.0
      %1395 = vmatprep.subr.mxu0 0.0
      %1396 = vmatpush2.msra.mxu0 0.0
      %1397 = vmatprep.subr.mxu0 0.0
      %1398 = vmatpush2.msra.mxu0 0.0
      %1399 = vmatprep.subr.mxu0 0.0
      %1400 = vmatpush2.msra.mxu0 0.0
      %1401 = vmatprep.subr.mxu0 0.0
      %1402 = vmatpush2.msra.mxu0 0.0
      %1403 = vmatprep.subr.mxu0 0.0
      %1404 = vmatpush2.msra.mxu0 0.0
      %1405 = vmatprep.subr.mxu0 0.0
      %1406 = vmatpush2.msra.mxu0 0.0
      %1407 = vmatprep.subr.mxu0 0.0
      %1408 = vmatpush2.msra.mxu0 0.0
      %1409 = vmatprep.subr.mxu0 0.0
      %1410 = vmatpush2.msra.mxu0 0.0
      %1411 = vmatprep.subr.mxu0 0.0
      %1412 = vmatpush2.msra.mxu0 0.0
      %1413 = vmatprep.subr.mxu0 0.0
      %1414 = vmatpush2.msra.mxu0 0.0
      %1415 = vmatprep.subr.mxu0 0.0
      %1416 = vmatpush2.msra.mxu0 0.0
      %1417 = vmatprep.subr.mxu0 0.0
      %1418 = vmatpush2.msra.mxu0 0.0
      %1419 = vmatprep.subr.mxu0 0.0
      %1420 = vmatpush2.msra.mxu0 0.0
      %1421 = vmatprep.subr.mxu0 0.0
      %1422 = vmatpush2.msra.mxu0 0.0
      %1423 = vmatprep.subr.mxu0 0.0
      %1424 = vmatpush2.msra.mxu0 0.0
      %1425 = vmatprep.mubr.f32.mxu0 0.0
      %1426 = vmatmul.mubr.f32.gmra.mxu0 %v1359
      %v1427 = vpop.f32.mrf.mxu0
      %v1428 = vadd.f32 0.0, %v1427
      %v1429 = vpop.f32.mrf.mxu0
      %1430 = vdwg.mxu0
      %v1431 = vrcp.pop %v1349
      %v1432 = vmul.f32 %v1428, %v1431
      %1434 = vrot.lane.b32.xlu0 %v1432, 24
      %v1435 = vpop.permute.xlu0 %1434
      %vm1437 = vcmask 261312
      %1438 = vst.msk [vmem:[#allocation5] sm:$0xff] %vm1437, %v1435
      %v1439 = vld [vmem:[#allocation5] sm:$0xff]
      %v1440 = vld [vmem:[%s8] sm:$0xff]
      %v1441 = vld [vmem:[%s8 + $0x8] sm:$0xff]
      %v1442 = vld [vmem:[%s8 + $0x10] sm:$0xff]
      %v1443 = vld [vmem:[%s8 + $0x18] sm:$0xff]
      %v1444 = vld [vmem:[%s9] sm:$0x1]
      %v1446 = vlaneseq
      %v1447 = vshrl.u32 %v1446, 7
      %v1448 = vsub.s32 0, %v1447
      %v1449 = vrot.slane %v1444, %v1448
      %v1452 = vsel %vm443, %v1439, 0
      %1454 = vmatprep.subr.mxu0 0.0
      %1455 = vmatpush1.msra.mxu0 0.0
      %1456 = vmatprep.subr.mxu0 0.0
      %1457 = vmatpush1.msra.mxu0 0.0
      %1458 = vmatprep.subr.mxu0 0.0
      %1459 = vmatpush1.msra.mxu0 0.0
      %1460 = vmatprep.subr.mxu0 0.0
      %1461 = vmatpush1.msra.mxu0 0.0
      %1462 = vmatprep.subr.mxu0 0.0
      %1463 = vmatpush1.msra.mxu0 0.0
      %1464 = vmatprep.subr.mxu0 0.0
      %1465 = vmatpush1.msra.mxu0 0.0
      %1466 = vmatprep.subr.mxu0 0.0
      %1467 = vmatpush1.msra.mxu0 0.0
      %1468 = vmatprep.subr.mxu0 0.0
      %1469 = vmatpush1.msra.mxu0 0.0
      %1470 = vmatprep.subr.mxu0 0.0
      %1471 = vmatpush1.msra.mxu0 0.0
      %1472 = vmatprep.subr.mxu0 0.0
      %1473 = vmatpush1.msra.mxu0 0.0
      %1474 = vmatprep.subr.mxu0 0.0
      %1475 = vmatpush1.msra.mxu0 0.0
      %1476 = vmatprep.subr.mxu0 0.0
      %1477 = vmatpush1.msra.mxu0 0.0
      %1478 = vmatprep.subr.mxu0 0.0
      %1479 = vmatpush1.msra.mxu0 %v1443
      %1480 = vmatprep.subr.mxu0 0.0
      %1481 = vmatpush1.msra.mxu0 %v1442
      %1482 = vmatprep.subr.mxu0 0.0
      %1483 = vmatpush1.msra.mxu0 %v1441
      %1484 = vmatprep.subr.mxu0 0.0
      %1485 = vmatpush1.msra.mxu0 %v1440
      %1486 = vmatprep.subr.mxu0 0.0
      %1487 = vmatpush2.msra.mxu0 0.0
      %1488 = vmatprep.subr.mxu0 0.0
      %1489 = vmatpush2.msra.mxu0 0.0
      %1490 = vmatprep.subr.mxu0 0.0
      %1491 = vmatpush2.msra.mxu0 0.0
      %1492 = vmatprep.subr.mxu0 0.0
      %1493 = vmatpush2.msra.mxu0 0.0
      %1494 = vmatprep.subr.mxu0 0.0
      %1495 = vmatpush2.msra.mxu0 0.0
      %1496 = vmatprep.subr.mxu0 0.0
      %1497 = vmatpush2.msra.mxu0 0.0
      %1498 = vmatprep.subr.mxu0 0.0
      %1499 = vmatpush2.msra.mxu0 0.0
      %1500 = vmatprep.subr.mxu0 0.0
      %1501 = vmatpush2.msra.mxu0 0.0
      %1502 = vmatprep.subr.mxu0 0.0
      %1503 = vmatpush2.msra.mxu0 0.0
      %1504 = vmatprep.subr.mxu0 0.0
      %1505 = vmatpush2.msra.mxu0 0.0
      %1506 = vmatprep.subr.mxu0 0.0
      %1507 = vmatpush2.msra.mxu0 0.0
      %1508 = vmatprep.subr.mxu0 0.0
      %1509 = vmatpush2.msra.mxu0 0.0
      %1510 = vmatprep.subr.mxu0 0.0
      %1511 = vmatpush2.msra.mxu0 0.0
      %1512 = vmatprep.subr.mxu0 0.0
      %1513 = vmatpush2.msra.mxu0 0.0
      %1514 = vmatprep.subr.mxu0 0.0
      %1515 = vmatpush2.msra.mxu0 0.0
      %1516 = vmatprep.subr.mxu0 0.0
      %1517 = vmatpush2.msra.mxu0 0.0
      %1518 = vmatprep.mubr.f32.mxu0 0.0
      %1519 = vmatmul.mubr.f32.gmra.mxu0 %v1452
      %v1520 = vpop.f32.mrf.mxu0
      %v1521 = vadd.f32 %v1449, %v1520
      %v1522 = vpop.f32.mrf.mxu0
      %1523 = vdwg.mxu0
      %v1524 = vadd.f32 %v429, %v1521
      %v1525 = vsel %vm443, %v1524, 0.0
      %1526 = vadd.xlane.f32.xlu0 %v1525
      %v1527 = vpop.xlane.xlu0 %1526
      %v1528 = vrcp.pop 32.0
      %v1529 = vmul.f32 %v1527, %v1528
      %v1530 = vsub.f32 %v1524, %v1529
      %v1531 = vmul.f32 %v1530, %v1530
      %v1532 = vsel %vm443, %v1531, 0.0
      %1533 = vadd.xlane.f32.xlu0 %v1532
      %v1534 = vpop.xlane.xlu0 %1533
      %v1535 = vmul.f32 %v1534, %v1528
      %v1536 = vadd.f32 %v1535, 1e-05
      %v1537 = vrsqrt.pop %v1536
      %v1538 = vmul.f32 %v1530, %v1537
      %v1539 = vld [vmem:[%s10] sm:$0x1]
      %v1541 = vlaneseq
      %v1542 = vshrl.u32 %v1541, 7
      %v1543 = vsub.s32 0, %v1542
      %v1544 = vrot.slane %v1539, %v1543
      %v1546 = vmul.f32 %v1538, %v1544
      %v1547 = vld [vmem:[%s11] sm:$0x1]
      %v1549 = vlaneseq
      %v1550 = vshrl.u32 %v1549, 7
      %v1551 = vsub.s32 0, %v1550
      %v1552 = vrot.slane %v1547, %v1551
      %v1554 = vadd.f32 %v1546, %v1552
      %1555 = vst.msk [vmem:[%s428] sm:$0xff] %vm443, %v1554
      %p1556 = scmp.lt.s32.totalorder %s23, 1
      %s1557 = scalar_select %p1556, %s23, 1
      %s1558 = smul.addr %s1557, 8
      %s1559 = scalar_lea.vmem %s12, %s1558
      // Predicated region
      $region69: #{decoder_layer_forward.4} parent=67 // pred_check
        %p1560 = pneg %p303
      $region70: #{decoder_layer_forward.4} parent=67 // pred_check_branch
        %1562 = sbr.rel (%p1560) target = $region72
      $region71: #{decoder_layer_forward.4} parent=67 // pred_region
        _
      $region72: #{decoder_layer_forward.4} parent=67 // pred_fallthru
        _
    $region68: #{decoder_layer_forward.4} parent=5 // pred_fallthru
      _
    %p1563 = scmp.le.s32.totalorder 2, %s18
    // Predicated region
    $region73: #{decoder_layer_forward.4} parent=5 // pred_check
      %p1564 = pneg %p1563
    $region74: #{decoder_layer_forward.4} parent=5 // pred_check_branch
      %1566 = sbr.rel (%p1564) target = $region76
    $region75: #{decoder_layer_forward.4} parent=5 // pred_region
      %s1567 = ssub.s32 %s18, 2
      // Predicated region
      $region77: #{decoder_layer_forward.4} parent=75 // pred_check
        %p1568 = pneg %p309
      $region78: #{decoder_layer_forward.4} parent=75 // pred_check_branch
        %1570 = sbr.rel (%p1568) target = $region80
      $region79: #{decoder_layer_forward.4} parent=75 // pred_region
        %p1571 = scmp.lt.s32.totalorder %s24, 1
        %s1572 = scalar_select %p1571, %s24, 1
        %s1573 = smul.addr %s1572, 8
        %s1574 = scalar_lea.vmem %s12, %s1573
      $region80: #{decoder_layer_forward.4} parent=75 // pred_fallthru
        _
    $region76: #{decoder_layer_forward.4} parent=5 // pred_fallthru
      _
  $region6: #{decoder_layer_forward.4} parent=0 // loop_footer
    %s22 = sadd.s32 1, %s18
  $region7: #{decoder_layer_forward.4} parent=0 // loop_footer_branch
    %17 = sbr.rel target = $region3
  $region8: #{decoder_layer_forward.4} parent=0 // loop_exit
    _

// kernel: decoder_layer_forward.3
$region0: #{decoder_layer_forward.3}
  #allocation0 [shape = 'u32[]', space=smem, size = 0x4, offset = 0x4, fixed_abs, tag = 'smem constant byte address 0x4 - core index']
  #allocation1 [shape = 'u32[144,128]{1,0:T(1,128)}', space=vmem, size = 0x12000, scoped, tag = 'internal scratch']
  #allocation2 [shape = 'f32[8,32]{1,0:T(8,128)}', space=vmem, size = 0x1000, scoped, tag = 'scratch operand']
  #allocation3 [shape = 'f32[8,32]{1,0:T(8,128)}', space=vmem, size = 0x1000, scoped, tag = 'scratch operand']
  #allocation4 [shape = 'f32[8,32]{1,0:T(8,128)}', space=vmem, size = 0x1000, scoped, tag = 'scratch operand']
  #allocation5 [shape = 'f32[8,32]{1,0:T(8,128)}', space=vmem, size = 0x1000, scoped, tag = 'scratch operand']
  %s0 = inlined_call_operand.hbm [shape: f32[2,8,32], index: 0, kind: input, shape index: {}, may-alias: {0,1}]
  %s1 = inlined_call_operand.hbm [shape: f32[2,8,32], index: 1, kind: input, shape index: {}, may-alias: {0,1}]
  %s2 = inlined_call_operand.vmem [shape: f32[32,32], index: 2, kind: input, shape index: {}]
  %s3 = inlined_call_operand.vmem [shape: f32[1,32], index: 3, kind: input, shape index: {}]
  %s4 = inlined_call_operand.hbm [shape: f32[32,32], index: 4, kind: input, shape index: {}]
  %s5 = inlined_call_operand.vmem [shape: f32[1,32], index: 5, kind: input, shape index: {}]
  %s6 = inlined_call_operand.hbm [shape: f32[32,32], index: 6, kind: input, shape index: {}]
  %s7 = inlined_call_operand.vmem [shape: f32[1,32], index: 7, kind: input, shape index: {}]
  %s8 = inlined_call_operand.hbm [shape: f32[32,32], index: 8, kind: input, shape index: {}]
  %s9 = inlined_call_operand.vmem [shape: f32[1,32], index: 9, kind: input, shape index: {}]
  %s10 = inlined_call_operand.vmem [shape: f32[1,32], index: 10, kind: input, shape index: {}]
  %s11 = inlined_call_operand.vmem [shape: f32[1,32], index: 11, kind: input, shape index: {}]
  %s12 = inlined_call_operand.vmem [shape: f32[2,8,32], index: 12, kind: output, shape index: {}]
  %s13 = sld [smem:[#allocation0]]
  $region101: #{decoder_layer_forward.3} parent=0
    _
  %s15 = ssub.s32 1, %s13
  %s16 = scalar_select 0, %s15, %s13
  $region1: #{decoder_layer_forward.3} parent=0
    #allocation6 [shape = 'u8[8192]{0}', space=vmem, size = 0x2000, scoped, tag = 'input window, operand 0']
    #allocation7 [shape = 's32[2]{0}', space=sflag, size = 0x8, scoped, tag = 'scoped memory for decoder_layer_forward.3']
    #allocation8 [shape = 'u8[8192]{0}', space=vmem, size = 0x2000, scoped, tag = 'input window, operand 1']
    #allocation9 [shape = 's32[2]{0}', space=sflag, size = 0x8, scoped, tag = 'scoped memory for decoder_layer_forward.3']
    #allocation10 [shape = 'u8[16384]{0}', space=vmem, size = 0x4000, scoped, tag = 'input window, operand 4, single buffered']
    #allocation11 [shape = 'u8[16384]{0}', space=vmem, size = 0x4000, scoped, tag = 'input window, operand 6, single buffered']
    #allocation12 [shape = 's32[1]{0}', space=sflag, size = 0x4, scoped, tag = 'scoped memory for decoder_layer_forward.3']
    #allocation13 [shape = 'u8[16384]{0}', space=vmem, size = 0x4000, scoped, tag = 'input window, operand 8, single buffered']
    %17 = vsyncpa [#allocation7], 0
    %s18 = scalar_lea.sflag [#allocation7], 1
    %19 = vsyncpa %s18, 0
    %20 = vsyncpa [#allocation9], 0
    %s21 = scalar_lea.sflag [#allocation9], 1
    %22 = vsyncpa %s21, 0
    %23 = vsyncpa [#allocation12], 0
    loop: start=0, step=1, limit=4
    $region2: #{decoder_layer_forward.3} parent=1 // loop_pre_header
      _
    $region3: #{decoder_layer_forward.3} parent=1 // loop_header
      %s25 = sphi 0, %s29
      %p26 = scmp.ge.s32.totalorder %s25, 4
      %s35 = sphi 0, %s37
      %s38 = sphi 0, %s35
      %s39 = sphi 0, %s38
      %s55 = sphi 0, %s39
      %s61 = sphi 0, %s63
      %s64 = sphi 0, %s61
      %s65 = sphi 0, %s64
      %s81 = sphi 0, %s65
      %s85 = sphi 0, %s85
      %s87 = sphi 0, %s85
      %s88 = sphi 0, %s87
      %s102 = sphi 0, %s88
      %s106 = sphi 0, %s106
      %s108 = sphi 0, %s106
      %s109 = sphi 0, %s108
      %s123 = sphi 0, %s109
      %s127 = sphi 0, %s127
      %s129 = sphi 0, %s127
      %s130 = sphi 0, %s129
      %s144 = sphi 0, %s130
      %s148 = sphi 0, %s148
      %s150 = sphi 0, %s148
      %s151 = sphi 0, %s150
      %s165 = sphi 0, %s151
      %s169 = sphi 0, %s169
      %s171 = sphi 0, %s169
      %s172 = sphi 0, %s171
      %s186 = sphi 0, %s172
      %s190 = sphi 0, %s190
      %s192 = sphi 0, %s190
      %s193 = sphi 0, %s192
      %s207 = sphi 0, %s193
      %s211 = sphi 0, %s211
      %s213 = sphi 0, %s211
      %s214 = sphi 0, %s213
      %s228 = sphi 0, %s214
      %s232 = sphi 0, %s232
      %s234 = sphi 0, %s232
      %s235 = sphi 0, %s234
      %s249 = sphi 0, %s235
      %s253 = sphi 0, %s253
      %s255 = sphi 0, %s253
      %s256 = sphi 0, %s255
      %s270 = sphi 0, %s256
      %s274 = sphi 0, %s274
      %s276 = sphi 0, %s274
      %s277 = sphi 0, %s276
      %s291 = sphi 0, %s277
      %s297 = sphi 0, %s299
      %s300 = sphi 0, %s297
      %s301 = sphi 0, %s300
      %s317 = sphi 0, %s301
    $region4: #{decoder_layer_forward.3} parent=1 // loop_header_branch
      %28 = sbr.rel (%p26) target = $region8
    $region5: #{decoder_layer_forward.3} parent=1 // loop_body
      %s30 = ssub.s32 %s25, 1
      %s31 = ssub.s32 %s25, 2
      %s32 = sadd.s32 %s25, 1
      %s33 = ssub.s32 %s25, %s32
      %p34 = scmp.eq.s32.totalorder %s33, 0
      %s36 = sadd.s32 %s35, 1
      %s37 = scalar_select %p34, %s35, %s36
      %p40 = pneg %p34
      %p41 = scmp.eq.s32.totalorder %s25, 1
      %p42 = por %p40, %p41
      %p43 = scmp.ne.s32.totalorder %s35, %s38
      %p44 = scmp.eq.s32.totalorder %s25, 0
      %p45 = por %p43, %p44
      %p46 = scmp.ne.s32.totalorder %s35, %s38
      %p47 = scmp.eq.s32.totalorder %s30, 1
      %p48 = por %p46, %p47
      %p49 = scmp.ne.s32.totalorder %s38, %s39
      %p50 = scmp.eq.s32.totalorder %s30, 0
      %p51 = por %p49, %p50
      %p52 = scmp.ne.s32.totalorder %s38, %s39
      %p53 = scmp.eq.s32.totalorder %s31, 1
      %p54 = por %p52, %p53
      %p56 = scmp.ne.s32.totalorder %s39, %s55
      %p57 = scmp.eq.s32.totalorder %s31, 0
      %p58 = por %p56, %p57
      %s59 = ssub.s32 %s25, %s32
      %p60 = scmp.eq.s32.totalorder %s59, 0
      %s62 = sadd.s32 %s61, 1
      %s63 = scalar_select %p60, %s61, %s62
      %p66 = pneg %p60
      %p67 = scmp.eq.s32.totalorder %s25, 1
      %p68 = por %p66, %p67
      %p69 = scmp.ne.s32.totalorder %s61, %s64
      %p70 = scmp.eq.s32.totalorder %s25, 0
      %p71 = por %p69, %p70
      %p72 = scmp.ne.s32.totalorder %s61, %s64
      %p73 = scmp.eq.s32.totalorder %s30, 1
      %p74 = por %p72, %p73
      %p75 = scmp.ne.s32.totalorder %s64, %s65
      %p76 = scmp.eq.s32.totalorder %s30, 0
      %p77 = por %p75, %p76
      %p78 = scmp.ne.s32.totalorder %s64, %s65
      %p79 = scmp.eq.s32.totalorder %s31, 1
      %p80 = por %p78, %p79
      %p82 = scmp.ne.s32.totalorder %s65, %s81
      %p83 = scmp.eq.s32.totalorder %s31, 0
      %p84 = por %p82, %p83
      %s86 = sadd.s32 %s85, 1
      %p89 = scmp.eq.s32.totalorder %s25, 1
      %p90 = scmp.ne.s32.totalorder %s85, %s87
      %p91 = scmp.eq.s32.totalorder %s25, 0
      %p92 = por %p90, %p91
      %p93 = scmp.ne.s32.totalorder %s85, %s87
      %p94 = scmp.eq.s32.totalorder %s30, 1
      %p95 = por %p93, %p94
      %p96 = scmp.ne.s32.totalorder %s87, %s88
      %p97 = scmp.eq.s32.totalorder %s30, 0
      %p98 = por %p96, %p97
      %p99 = scmp.ne.s32.totalorder %s87, %s88
      %p100 = scmp.eq.s32.totalorder %s31, 1
      %p101 = por %p99, %p100
      %p103 = scmp.ne.s32.totalorder %s88, %s102
      %p104 = scmp.eq.s32.totalorder %s31, 0
      %p105 = por %p103, %p104
      %s107 = sadd.s32 %s106, 1
      %p110 = scmp.eq.s32.totalorder %s25, 1
      %p111 = scmp.ne.s32.totalorder %s106, %s108
      %p112 = scmp.eq.s32.totalorder %s25, 0
      %p113 = por %p111, %p112
      %p114 = scmp.ne.s32.totalorder %s106, %s108
      %p115 = scmp.eq.s32.totalorder %s30, 1
      %p116 = por %p114, %p115
      %p117 = scmp.ne.s32.totalorder %s108, %s109
      %p118 = scmp.eq.s32.totalorder %s30, 0
      %p119 = por %p117, %p118
      %p120 = scmp.ne.s32.totalorder %s108, %s109
      %p121 = scmp.eq.s32.totalorder %s31, 1
      %p122 = por %p120, %p121
      %p124 = scmp.ne.s32.totalorder %s109, %s123
      %p125 = scmp.eq.s32.totalorder %s31, 0
      %p126 = por %p124, %p125
      %s128 = sadd.s32 %s127, 1
      %p131 = scmp.eq.s32.totalorder %s25, 1
      %p132 = scmp.ne.s32.totalorder %s127, %s129
      %p133 = scmp.eq.s32.totalorder %s25, 0
      %p134 = por %p132, %p133
      %p135 = scmp.ne.s32.totalorder %s127, %s129
      %p136 = scmp.eq.s32.totalorder %s30, 1
      %p137 = por %p135, %p136
      %p138 = scmp.ne.s32.totalorder %s129, %s130
      %p139 = scmp.eq.s32.totalorder %s30, 0
      %p140 = por %p138, %p139
      %p141 = scmp.ne.s32.totalorder %s129, %s130
      %p142 = scmp.eq.s32.totalorder %s31, 1
      %p143 = por %p141, %p142
      %p145 = scmp.ne.s32.totalorder %s130, %s144
      %p146 = scmp.eq.s32.totalorder %s31, 0
      %p147 = por %p145, %p146
      %s149 = sadd.s32 %s148, 1
      %p152 = scmp.eq.s32.totalorder %s25, 1
      %p153 = scmp.ne.s32.totalorder %s148, %s150
      %p154 = scmp.eq.s32.totalorder %s25, 0
      %p155 = por %p153, %p154
      %p156 = scmp.ne.s32.totalorder %s148, %s150
      %p157 = scmp.eq.s32.totalorder %s30, 1
      %p158 = por %p156, %p157
      %p159 = scmp.ne.s32.totalorder %s150, %s151
      %p160 = scmp.eq.s32.totalorder %s30, 0
      %p161 = por %p159, %p160
      %p162 = scmp.ne.s32.totalorder %s150, %s151
      %p163 = scmp.eq.s32.totalorder %s31, 1
      %p164 = por %p162, %p163
      %p166 = scmp.ne.s32.totalorder %s151, %s165
      %p167 = scmp.eq.s32.totalorder %s31, 0
      %p168 = por %p166, %p167
      %s170 = sadd.s32 %s169, 1
      %p173 = scmp.eq.s32.totalorder %s25, 1
      %p174 = scmp.ne.s32.totalorder %s169, %s171
      %p175 = scmp.eq.s32.totalorder %s25, 0
      %p176 = por %p174, %p175
      %p177 = scmp.ne.s32.totalorder %s169, %s171
      %p178 = scmp.eq.s32.totalorder %s30, 1
      %p179 = por %p177, %p178
      %p180 = scmp.ne.s32.totalorder %s171, %s172
      %p181 = scmp.eq.s32.totalorder %s30, 0
      %p182 = por %p180, %p181
      %p183 = scmp.ne.s32.totalorder %s171, %s172
      %p184 = scmp.eq.s32.totalorder %s31, 1
      %p185 = por %p183, %p184
      %p187 = scmp.ne.s32.totalorder %s172, %s186
      %p188 = scmp.eq.s32.totalorder %s31, 0
      %p189 = por %p187, %p188
      %s191 = sadd.s32 %s190, 1
      %p194 = scmp.eq.s32.totalorder %s25, 1
      %p195 = scmp.ne.s32.totalorder %s190, %s192
      %p196 = scmp.eq.s32.totalorder %s25, 0
      %p197 = por %p195, %p196
      %p198 = scmp.ne.s32.totalorder %s190, %s192
      %p199 = scmp.eq.s32.totalorder %s30, 1
      %p200 = por %p198, %p199
      %p201 = scmp.ne.s32.totalorder %s192, %s193
      %p202 = scmp.eq.s32.totalorder %s30, 0
      %p203 = por %p201, %p202
      %p204 = scmp.ne.s32.totalorder %s192, %s193
      %p205 = scmp.eq.s32.totalorder %s31, 1
      %p206 = por %p204, %p205
      %p208 = scmp.ne.s32.totalorder %s193, %s207
      %p209 = scmp.eq.s32.totalorder %s31, 0
      %p210 = por %p208, %p209
      %s212 = sadd.s32 %s211, 1
      %p215 = scmp.eq.s32.totalorder %s25, 1
      %p216 = scmp.ne.s32.totalorder %s211, %s213
      %p217 = scmp.eq.s32.totalorder %s25, 0
      %p218 = por %p216, %p217
      %p219 = scmp.ne.s32.totalorder %s211, %s213
      %p220 = scmp.eq.s32.totalorder %s30, 1
      %p221 = por %p219, %p220
      %p222 = scmp.ne.s32.totalorder %s213, %s214
      %p223 = scmp.eq.s32.totalorder %s30, 0
      %p224 = por %p222, %p223
      %p225 = scmp.ne.s32.totalorder %s213, %s214
      %p226 = scmp.eq.s32.totalorder %s31, 1
      %p227 = por %p225, %p226
      %p229 = scmp.ne.s32.totalorder %s214, %s228
      %p230 = scmp.eq.s32.totalorder %s31, 0
      %p231 = por %p229, %p230
      %s233 = sadd.s32 %s232, 1
      %p236 = scmp.eq.s32.totalorder %s25, 1
      %p237 = scmp.ne.s32.totalorder %s232, %s234
      %p238 = scmp.eq.s32.totalorder %s25, 0
      %p239 = por %p237, %p238
      %p240 = scmp.ne.s32.totalorder %s232, %s234
      %p241 = scmp.eq.s32.totalorder %s30, 1
      %p242 = por %p240, %p241
      %p243 = scmp.ne.s32.totalorder %s234, %s235
      %p244 = scmp.eq.s32.totalorder %s30, 0
      %p245 = por %p243, %p244
      %p246 = scmp.ne.s32.totalorder %s234, %s235
      %p247 = scmp.eq.s32.totalorder %s31, 1
      %p248 = por %p246, %p247
      %p250 = scmp.ne.s32.totalorder %s235, %s249
      %p251 = scmp.eq.s32.totalorder %s31, 0
      %p252 = por %p250, %p251
      %s254 = sadd.s32 %s253, 1
      %p257 = scmp.eq.s32.totalorder %s25, 1
      %p258 = scmp.ne.s32.totalorder %s253, %s255
      %p259 = scmp.eq.s32.totalorder %s25, 0
      %p260 = por %p258, %p259
      %p261 = scmp.ne.s32.totalorder %s253, %s255
      %p262 = scmp.eq.s32.totalorder %s30, 1
      %p263 = por %p261, %p262
      %p264 = scmp.ne.s32.totalorder %s255, %s256
      %p265 = scmp.eq.s32.totalorder %s30, 0
      %p266 = por %p264, %p265
      %p267 = scmp.ne.s32.totalorder %s255, %s256
      %p268 = scmp.eq.s32.totalorder %s31, 1
      %p269 = por %p267, %p268
      %p271 = scmp.ne.s32.totalorder %s256, %s270
      %p272 = scmp.eq.s32.totalorder %s31, 0
      %p273 = por %p271, %p272
      %s275 = sadd.s32 %s274, 1
      %p278 = scmp.eq.s32.totalorder %s25, 1
      %p279 = scmp.ne.s32.totalorder %s274, %s276
      %p280 = scmp.eq.s32.totalorder %s25, 0
      %p281 = por %p279, %p280
      %p282 = scmp.ne.s32.totalorder %s274, %s276
      %p283 = scmp.eq.s32.totalorder %s30, 1
      %p284 = por %p282, %p283
      %p285 = scmp.ne.s32.totalorder %s276, %s277
      %p286 = scmp.eq.s32.totalorder %s30, 0
      %p287 = por %p285, %p286
      %p288 = scmp.ne.s32.totalorder %s276, %s277
      %p289 = scmp.eq.s32.totalorder %s31, 1
      %p290 = por %p288, %p289
      %p292 = scmp.ne.s32.totalorder %s277, %s291
      %p293 = scmp.eq.s32.totalorder %s31, 0
      %p294 = por %p292, %p293
      %s295 = ssub.s32 %s25, %s32
      %p296 = scmp.eq.s32.totalorder %s295, 0
      %s298 = sadd.s32 %s297, 1
      %s299 = scalar_select %p296, %s297, %s298
      %p302 = pneg %p296
      %p303 = scmp.eq.s32.totalorder %s25, 1
      %p304 = por %p302, %p303
      %p305 = scmp.ne.s32.totalorder %s297, %s300
      %p306 = scmp.eq.s32.totalorder %s25, 0
      %p307 = por %p305, %p306
      %p308 = scmp.ne.s32.totalorder %s297, %s300
      %p309 = scmp.eq.s32.totalorder %s30, 1
      %p310 = por %p308, %p309
      %p311 = scmp.ne.s32.totalorder %s300, %s301
      %p312 = scmp.eq.s32.totalorder %s30, 0
      %p313 = por %p311, %p312
      %p314 = scmp.ne.s32.totalorder %s300, %s301
      %p315 = scmp.eq.s32.totalorder %s31, 1
      %p316 = por %p314, %p315
      %p318 = scmp.ne.s32.totalorder %s301, %s317
      %p319 = scmp.eq.s32.totalorder %s31, 0
      %p320 = por %p318, %p319
      %p321 = scmp.le.s32.totalorder 1, %s25
      %p322 = scmp.lt.s32.totalorder %s25, 3
      %p323 = pnand %p321, %p322
      %p324 = pneg %p323
      // Predicated region
      $region9: #{decoder_layer_forward.3} parent=5 // pred_check
        _
      $region10: #{decoder_layer_forward.3} parent=5 // pred_check_branch
        %326 = sbr.rel (%p323) target = $region12
      $region11: #{decoder_layer_forward.3} parent=5 // pred_region
        %s327 = ssub.s32 %s25, 1
        // Predicated region
        $region13: #{decoder_layer_forward.3} parent=11 // pred_check
          %p328 = pneg %p98
        $region14: #{decoder_layer_forward.3} parent=11 // pred_check_branch
          %330 = sbr.rel (%p328) target = $region16
        $region15: #{decoder_layer_forward.3} parent=11 // pred_region
          _
        $region16: #{decoder_layer_forward.3} parent=11 // pred_fallthru
          _
        // Predicated region
        $region17: #{decoder_layer_forward.3} parent=11 // pred_check
          %p331 = pneg %p119
        $region18: #{decoder_layer_forward.3} parent=11 // pred_check_branch
          %333 = sbr.rel (%p331) target = $region20
        $region19: #{decoder_layer_forward.3} parent=11 // pred_region
          _
        $region20: #{decoder_layer_forward.3} parent=11 // pred_fallthru
          _
        // Predicated region
        $region21: #{decoder_layer_forward.3} parent=11 // pred_check
          %p334 = pneg %p140
        $region22: #{decoder_layer_forward.3} parent=11 // pred_check_branch
          %336 = sbr.rel (%p334) target = $region24
        $region23: #{decoder_layer_forward.3} parent=11 // pred_region
          %s338 = ssub.s32 512, 512
          %339 = vsyncadd [#allocation9], %s338
          %s340 = sshll.u32 [#allocation10], 4
          %s341 = int_to_ptr.vmem [resolvable:$true] %s340
          %346 = dma.hbm_to_vmem [thread:$0]  %s4, 512, %s341, [#allocation9], 128, 128, 8
        $region24: #{decoder_layer_forward.3} parent=11 // pred_fallthru
          _
        // Predicated region
        $region25: #{decoder_layer_forward.3} parent=11 // pred_check
          %p347 = pneg %p161
        $region26: #{decoder_layer_forward.3} parent=11 // pred_check_branch
          %349 = sbr.rel (%p347) target = $region28
        $region27: #{decoder_layer_forward.3} parent=11 // pred_region
          _
        $region28: #{decoder_layer_forward.3} parent=11 // pred_fallthru
          _
        // Predicated region
        $region29: #{decoder_layer_forward.3} parent=11 // pred_check
          %p350 = pneg %p182
        $region30: #{decoder_layer_forward.3} parent=11 // pred_check_branch
          %352 = sbr.rel (%p350) target = $region32
        $region31: #{decoder_layer_forward.3} parent=11 // pred_region
          %s354 = ssub.s32 512, 512
          %355 = vsyncadd [#allocation12], %s354
          %s356 = sshll.u32 [#allocation11], 4
          %s357 = int_to_ptr.vmem [resolvable:$true] %s356
          %362 = dma.hbm_to_vmem [thread:$0]  %s6, 512, %s357, [#allocation12], 128, 128, 8
        $region32: #{decoder_layer_forward.3} parent=11 // pred_fallthru
          _
        // Predicated region
        $region33: #{decoder_layer_forward.3} parent=11 // pred_check
          %p363 = pneg %p203
        $region34: #{decoder_layer_forward.3} parent=11 // pred_check_branch
          %365 = sbr.rel (%p363) target = $region36
        $region35: #{decoder_layer_forward.3} parent=11 // pred_region
          _
        $region36: #{decoder_layer_forward.3} parent=11 // pred_fallthru
          _
        // Predicated region
        $region37: #{decoder_layer_forward.3} parent=11 // pred_check
          %p366 = pneg %p224
        $region38: #{decoder_layer_forward.3} parent=11 // pred_check_branch
          %368 = sbr.rel (%p366) target = $region40
        $region39: #{decoder_layer_forward.3} parent=11 // pred_region
          %s370 = ssub.s32 512, 512
          %371 = vsyncadd [#allocation12], %s370
          %s372 = sshll.u32 [#allocation13], 4
          %s373 = int_to_ptr.vmem [resolvable:$true] %s372
          %378 = dma.hbm_to_vmem [thread:$0]  %s8, 512, %s373, [#allocation12], 128, 128, 8
        $region40: #{decoder_layer_forward.3} parent=11 // pred_fallthru
          _
        // Predicated region
        $region41: #{decoder_layer_forward.3} parent=11 // pred_check
          %p379 = pneg %p245
        $region42: #{decoder_layer_forward.3} parent=11 // pred_check_branch
          %381 = sbr.rel (%p379) target = $region44
        $region43: #{decoder_layer_forward.3} parent=11 // pred_region
          _
        $region44: #{decoder_layer_forward.3} parent=11 // pred_fallthru
          _
        // Predicated region
        $region45: #{decoder_layer_forward.3} parent=11 // pred_check
          %p382 = pneg %p266
        $region46: #{decoder_layer_forward.3} parent=11 // pred_check_branch
          %384 = sbr.rel (%p382) target = $region48
        $region47: #{decoder_layer_forward.3} parent=11 // pred_region
          _
        $region48: #{decoder_layer_forward.3} parent=11 // pred_fallthru
          _
        // Predicated region
        $region49: #{decoder_layer_forward.3} parent=11 // pred_check
          %p385 = pneg %p287
        $region50: #{decoder_layer_forward.3} parent=11 // pred_check_branch
          %387 = sbr.rel (%p385) target = $region52
        $region51: #{decoder_layer_forward.3} parent=11 // pred_region
          _
        $region52: #{decoder_layer_forward.3} parent=11 // pred_fallthru
          _
      $region12: #{decoder_layer_forward.3} parent=5 // pred_fallthru
        _
      %p388 = scmp.lt.s32.totalorder %s25, 2
      // Predicated region
      $region53: #{decoder_layer_forward.3} parent=5 // pred_check
        %p389 = pneg %p388
      $region54: #{decoder_layer_forward.3} parent=5 // pred_check_branch
        %391 = sbr.rel (%p389) target = $region56
      $region55: #{decoder_layer_forward.3} parent=5 // pred_region
        // Predicated region
        $region57: #{decoder_layer_forward.3} parent=55 // pred_check
          %p392 = pneg %p45
        $region58: #{decoder_layer_forward.3} parent=55 // pred_check_branch
          %394 = sbr.rel (%p392) target = $region60
        $region59: #{decoder_layer_forward.3} parent=55 // pred_region
          %s395 = sand.u32 %s35, 1
          %s396 = scalar_lea.sflag [#allocation7], %s395
          %s397 = sand.u32 %s35, 1
          %s398 = smul.addr %s397, 8
          %s399 = scalar_lea.vmem [#allocation6], %s398
          %s401 = ssub.s32 128, 128
          %402 = vsyncadd %s396, %s401
          %s403 = smul.addr %s25, 128
          %s404 = scalar_lea.hbm %s0, %s403
          %s406 = sshll.u32 %s399, 4
          %s407 = int_to_ptr.vmem [resolvable:$true] %s406
          %409 = dma.hbm_to_vmem [thread:$0]  %s404, 128, %s407, %s396
        $region60: #{decoder_layer_forward.3} parent=55 // pred_fallthru
          _
        // Predicated region
        $region61: #{decoder_layer_forward.3} parent=55 // pred_check
          %p410 = pneg %p71
        $region62: #{decoder_layer_forward.3} parent=55 // pred_check_branch
          %412 = sbr.rel (%p410) target = $region64
        $region63: #{decoder_layer_forward.3} parent=55 // pred_region
          %s413 = sand.u32 %s25, 1
          %s414 = scalar_lea.sflag [#allocation9], %s413
          %s415 = sand.u32 %s61, 1
          %s416 = smul.addr %s415, 8
          %s417 = scalar_lea.vmem [#allocation8], %s416
          %s419 = ssub.s32 128, 128
          %420 = vsyncadd %s414, %s419
          %s421 = smul.addr %s25, 128
          %s422 = scalar_lea.hbm %s1, %s421
          %s424 = sshll.u32 %s417, 4
          %s425 = int_to_ptr.vmem [resolvable:$true] %s424
          %427 = dma.hbm_to_vmem [thread:$0]  %s422, 128, %s425, %s414
        $region64: #{decoder_layer_forward.3} parent=55 // pred_fallthru
          _
      $region56: #{decoder_layer_forward.3} parent=5 // pred_fallthru
        _
      %p428 = scmp.le.s32.totalorder 1, %s25
      %p429 = scmp.lt.s32.totalorder %s25, 3
      %p430 = pnand %p428, %p429
      %p431 = pneg %p430
      // Predicated region
      $region65: #{decoder_layer_forward.3} parent=5 // pred_check
        _
      $region66: #{decoder_layer_forward.3} parent=5 // pred_check_branch
        %433 = sbr.rel (%p430) target = $region68
      $region67: #{decoder_layer_forward.3} parent=5 // pred_region
        %s434 = ssub.s32 %s25, 1
        %s435 = sand.u32 %s38, 1
        %s436 = scalar_lea.sflag [#allocation7], %s435
        %s437 = sand.u32 %s38, 1
        %s438 = smul.addr %s437, 8
        %s439 = scalar_lea.vmem [#allocation6], %s438
        // Predicated region
        $region69: #{decoder_layer_forward.3} parent=67 // pred_check
          %p440 = pneg %p51
        $region70: #{decoder_layer_forward.3} parent=67 // pred_check_branch
          %442 = sbr.rel (%p440) target = $region72
        $region71: #{decoder_layer_forward.3} parent=67 // pred_region
          %443 = dma.done %s436, 128
        $region72: #{decoder_layer_forward.3} parent=67 // pred_fallthru
          _
        %s444 = sand.u32 %s30, 1
        %s445 = scalar_lea.sflag [#allocation9], %s444
        %s446 = sand.u32 %s64, 1
        %s447 = smul.addr %s446, 8
        %s448 = scalar_lea.vmem [#allocation8], %s447
        // Predicated region
        $region73: #{decoder_layer_forward.3} parent=67 // pred_check
          %p449 = pneg %p77
        $region74: #{decoder_layer_forward.3} parent=67 // pred_check_branch
          %451 = sbr.rel (%p449) target = $region76
        $region75: #{decoder_layer_forward.3} parent=67 // pred_region
          %452 = dma.done %s445, 128
        $region76: #{decoder_layer_forward.3} parent=67 // pred_fallthru
          _
        // Predicated region
        $region77: #{decoder_layer_forward.3} parent=67 // pred_check
          %p453 = pneg %p140
        $region78: #{decoder_layer_forward.3} parent=67 // pred_check_branch
          %455 = sbr.rel (%p453) target = $region80
        $region79: #{decoder_layer_forward.3} parent=67 // pred_region
          %456 = dma.done [#allocation9], 512
        $region80: #{decoder_layer_forward.3} parent=67 // pred_fallthru
          _
        // Predicated region
        $region81: #{decoder_layer_forward.3} parent=67 // pred_check
          %p457 = pneg %p182
        $region82: #{decoder_layer_forward.3} parent=67 // pred_check_branch
          %459 = sbr.rel (%p457) target = $region84
        $region83: #{decoder_layer_forward.3} parent=67 // pred_region
          %460 = dma.done [#allocation12], 512
        $region84: #{decoder_layer_forward.3} parent=67 // pred_fallthru
          _
        // Predicated region
        $region85: #{decoder_layer_forward.3} parent=67 // pred_check
          %p461 = pneg %p224
        $region86: #{decoder_layer_forward.3} parent=67 // pred_check_branch
          %463 = sbr.rel (%p461) target = $region88
        $region87: #{decoder_layer_forward.3} parent=67 // pred_region
          %464 = dma.done [#allocation12], 512
        $region88: #{decoder_layer_forward.3} parent=67 // pred_fallthru
          _
        %s465 = sand.u32 %s38, 1
        %s466 = scalar_lea.sflag [#allocation7], %s465
        %s467 = sand.u32 %s38, 1
        %s468 = smul.addr %s467, 8
        %s469 = scalar_lea.vmem [#allocation6], %s468
        %p470 = pneg %p51
        %p471 = pneg %p48
        %s472 = sand.u32 %s30, 1
        %s473 = scalar_lea.sflag [#allocation9], %s472
        %s474 = sand.u32 %s64, 1
        %s475 = smul.addr %s474, 8
        %s476 = scalar_lea.vmem [#allocation8], %s475
        %p477 = pneg %p77
        %p478 = pneg %p74
        %p479 = pneg %p98
        %p480 = pneg %p95
        %p481 = pneg %p119
        %p482 = pneg %p116
        %p483 = pneg %p140
        %p484 = pneg %p137
        %p485 = pneg %p161
        %p486 = pneg %p158
        %p487 = pneg %p182
        %p488 = pneg %p179
        %p489 = pneg %p203
        %p490 = pneg %p200
        %p491 = pneg %p224
        %p492 = pneg %p221
        %p493 = pneg %p245
        %p494 = pneg %p242
        %p495 = pneg %p266
        %p496 = pneg %p263
        %p497 = pneg %p287
        %p498 = pneg %p284
        %p499 = pneg %p313
        %p500 = pneg %p310
        %p501 = scmp.lt.s32.totalorder %s30, 1
        %s502 = scalar_select %p501, %s30, 1
        %s503 = smul.addr %s502, 8
        %s504 = scalar_lea.vmem %s12, %s503
        %p505 = scmp.lt.s32.totalorder %s30, 1
        %s506 = scalar_select %p505, %s30, 1
        %s507 = smul.addr %s506, 8
        %s508 = scalar_lea.vmem %s12, %s507
        %v509 = vld [vmem:[%s439] sm:$0xff]
        %v510 = vld [vmem:[%s448] sm:$0xff]
        %v511 = vld [vmem:[%s2] sm:$0xff]
        %v512 = vld [vmem:[%s2 + $0x8] sm:$0xff]
        %v513 = vld [vmem:[%s2 + $0x10] sm:$0xff]
        %v514 = vld [vmem:[%s2 + $0x18] sm:$0xff]
        %v515 = vld [vmem:[%s3] sm:$0x1]
        %v517 = vlaneseq
        %v518 = vshrl.u32 %v517, 7
        %v519 = vsub.s32 0, %v518
        %v520 = vrot.slane %v515, %v519
        %vm522 = vcmask 261120
        %v524 = vsel %vm522, %v509, 0
        %526 = vmatprep.subr.mxu0 0.0
        %527 = vmatpush1.msra.mxu0 0.0
        %528 = vmatprep.subr.mxu0 0.0
        %529 = vmatpush1.msra.mxu0 0.0
        %530 = vmatprep.subr.mxu0 0.0
        %531 = vmatpush1.msra.mxu0 0.0
        %532 = vmatprep.subr.mxu0 0.0
        %533 = vmatpush1.msra.mxu0 0.0
        %534 = vmatprep.subr.mxu0 0.0
        %535 = vmatpush1.msra.mxu0 0.0
        %536 = vmatprep.subr.mxu0 0.0
        %537 = vmatpush1.msra.mxu0 0.0
        %538 = vmatprep.subr.mxu0 0.0
        %539 = vmatpush1.msra.mxu0 0.0
        %540 = vmatprep.subr.mxu0 0.0
        %541 = vmatpush1.msra.mxu0 0.0
        %542 = vmatprep.subr.mxu0 0.0
        %543 = vmatpush1.msra.mxu0 0.0
        %544 = vmatprep.subr.mxu0 0.0
        %545 = vmatpush1.msra.mxu0 0.0
        %546 = vmatprep.subr.mxu0 0.0
        %547 = vmatpush1.msra.mxu0 0.0
        %548 = vmatprep.subr.mxu0 0.0
        %549 = vmatpush1.msra.mxu0 0.0
        %550 = vmatprep.subr.mxu0 0.0
        %551 = vmatpush1.msra.mxu0 %v514
        %552 = vmatprep.subr.mxu0 0.0
        %553 = vmatpush1.msra.mxu0 %v513
        %554 = vmatprep.subr.mxu0 0.0
        %555 = vmatpush1.msra.mxu0 %v512
        %556 = vmatprep.subr.mxu0 0.0
        %557 = vmatpush1.msra.mxu0 %v511
        %558 = vmatprep.subr.mxu0 0.0
        %559 = vmatpush2.msra.mxu0 0.0
        %560 = vmatprep.subr.mxu0 0.0
        %561 = vmatpush2.msra.mxu0 0.0
        %562 = vmatprep.subr.mxu0 0.0
        %563 = vmatpush2.msra.mxu0 0.0
        %564 = vmatprep.subr.mxu0 0.0
        %565 = vmatpush2.msra.mxu0 0.0
        %566 = vmatprep.subr.mxu0 0.0
        %567 = vmatpush2.msra.mxu0 0.0
        %568 = vmatprep.subr.mxu0 0.0
        %569 = vmatpush2.msra.mxu0 0.0
        %570 = vmatprep.subr.mxu0 0.0
        %571 = vmatpush2.msra.mxu0 0.0
        %572 = vmatprep.subr.mxu0 0.0
        %573 = vmatpush2.msra.mxu0 0.0
        %574 = vmatprep.subr.mxu0 0.0
        %575 = vmatpush2.msra.mxu0 0.0
        %576 = vmatprep.subr.mxu0 0.0
        %577 = vmatpush2.msra.mxu0 0.0
        %578 = vmatprep.subr.mxu0 0.0
        %579 = vmatpush2.msra.mxu0 0.0
        %580 = vmatprep.subr.mxu0 0.0
        %581 = vmatpush2.msra.mxu0 0.0
        %582 = vmatprep.subr.mxu0 0.0
        %583 = vmatpush2.msra.mxu0 0.0
        %584 = vmatprep.subr.mxu0 0.0
        %585 = vmatpush2.msra.mxu0 0.0
        %586 = vmatprep.subr.mxu0 0.0
        %587 = vmatpush2.msra.mxu0 0.0
        %588 = vmatprep.subr.mxu0 0.0
        %589 = vmatpush2.msra.mxu0 0.0
        %590 = vmatprep.mubr.f32.mxu0 0.0
        %591 = vmatmul.mubr.f32.gmra.mxu0 %v524
        %v592 = vpop.f32.mrf.mxu0
        %v593 = vadd.f32 %v520, %v592
        %v594 = vpop.f32.mrf.mxu0
        %595 = vdwg.mxu0
        %596 = vst.msk [vmem:[#allocation2] sm:$0xff] %vm522, %v593
        %v597 = vld [vmem:[#allocation10] sm:$0xff]
        %v598 = vld [vmem:[#allocation10 + $0x8] sm:$0xff]
        %v599 = vld [vmem:[#allocation10 + $0x10] sm:$0xff]
        %v600 = vld [vmem:[#allocation10 + $0x18] sm:$0xff]
        %v601 = vld [vmem:[%s5] sm:$0x1]
        %v603 = vlaneseq
        %v604 = vshrl.u32 %v603, 7
        %v605 = vsub.s32 0, %v604
        %v606 = vrot.slane %v601, %v605
        %v609 = vsel %vm522, %v510, 0
        %611 = vmatprep.subr.mxu0 0.0
        %612 = vmatpush1.msra.mxu0 0.0
        %613 = vmatprep.subr.mxu0 0.0
        %614 = vmatpush1.msra.mxu0 0.0
        %615 = vmatprep.subr.mxu0 0.0
        %616 = vmatpush1.msra.mxu0 0.0
        %617 = vmatprep.subr.mxu0 0.0
        %618 = vmatpush1.msra.mxu0 0.0
        %619 = vmatprep.subr.mxu0 0.0
        %620 = vmatpush1.msra.mxu0 0.0
        %621 = vmatprep.subr.mxu0 0.0
        %622 = vmatpush1.msra.mxu0 0.0
        %623 = vmatprep.subr.mxu0 0.0
        %624 = vmatpush1.msra.mxu0 0.0
        %625 = vmatprep.subr.mxu0 0.0
        %626 = vmatpush1.msra.mxu0 0.0
        %627 = vmatprep.subr.mxu0 0.0
        %628 = vmatpush1.msra.mxu0 0.0
        %629 = vmatprep.subr.mxu0 0.0
        %630 = vmatpush1.msra.mxu0 0.0
        %631 = vmatprep.subr.mxu0 0.0
        %632 = vmatpush1.msra.mxu0 0.0
        %633 = vmatprep.subr.mxu0 0.0
        %634 = vmatpush1.msra.mxu0 0.0
        %635 = vmatprep.subr.mxu0 0.0
        %636 = vmatpush1.msra.mxu0 %v600
        %637 = vmatprep.subr.mxu0 0.0
        %638 = vmatpush1.msra.mxu0 %v599
        %639 = vmatprep.subr.mxu0 0.0
        %640 = vmatpush1.msra.mxu0 %v598
        %641 = vmatprep.subr.mxu0 0.0
        %642 = vmatpush1.msra.mxu0 %v597
        %643 = vmatprep.subr.mxu0 0.0
        %644 = vmatpush2.msra.mxu0 0.0
        %645 = vmatprep.subr.mxu0 0.0
        %646 = vmatpush2.msra.mxu0 0.0
        %647 = vmatprep.subr.mxu0 0.0
        %648 = vmatpush2.msra.mxu0 0.0
        %649 = vmatprep.subr.mxu0 0.0
        %650 = vmatpush2.msra.mxu0 0.0
        %651 = vmatprep.subr.mxu0 0.0
        %652 = vmatpush2.msra.mxu0 0.0
        %653 = vmatprep.subr.mxu0 0.0
        %654 = vmatpush2.msra.mxu0 0.0
        %655 = vmatprep.subr.mxu0 0.0
        %656 = vmatpush2.msra.mxu0 0.0
        %657 = vmatprep.subr.mxu0 0.0
        %658 = vmatpush2.msra.mxu0 0.0
        %659 = vmatprep.subr.mxu0 0.0
        %660 = vmatpush2.msra.mxu0 0.0
        %661 = vmatprep.subr.mxu0 0.0
        %662 = vmatpush2.msra.mxu0 0.0
        %663 = vmatprep.subr.mxu0 0.0
        %664 = vmatpush2.msra.mxu0 0.0
        %665 = vmatprep.subr.mxu0 0.0
        %666 = vmatpush2.msra.mxu0 0.0
        %667 = vmatprep.subr.mxu0 0.0
        %668 = vmatpush2.msra.mxu0 0.0
        %669 = vmatprep.subr.mxu0 0.0
        %670 = vmatpush2.msra.mxu0 0.0
        %671 = vmatprep.subr.mxu0 0.0
        %672 = vmatpush2.msra.mxu0 0.0
        %673 = vmatprep.subr.mxu0 0.0
        %674 = vmatpush2.msra.mxu0 0.0
        %675 = vmatprep.mubr.f32.mxu0 0.0
        %676 = vmatmul.mubr.f32.gmra.mxu0 %v609
        %v677 = vpop.f32.mrf.mxu0
        %v678 = vadd.f32 %v606, %v677
        %v679 = vpop.f32.mrf.mxu0
        %680 = vdwg.mxu0
        %681 = vst.msk [vmem:[#allocation3] sm:$0xff] %vm522, %v678
        %v682 = vld [vmem:[#allocation11] sm:$0xff]
        %v683 = vld [vmem:[#allocation11 + $0x8] sm:$0xff]
        %v684 = vld [vmem:[#allocation11 + $0x10] sm:$0xff]
        %v685 = vld [vmem:[#allocation11 + $0x18] sm:$0xff]
        %v686 = vld [vmem:[%s7] sm:$0x1]
        %v688 = vlaneseq
        %v689 = vshrl.u32 %v688, 7
        %v690 = vsub.s32 0, %v689
        %v691 = vrot.slane %v686, %v690
        %693 = vmatprep.subr.mxu0 0.0
        %694 = vmatpush1.msra.mxu0 0.0
        %695 = vmatprep.subr.mxu0 0.0
        %696 = vmatpush1.msra.mxu0 0.0
        %697 = vmatprep.subr.mxu0 0.0
        %698 = vmatpush1.msra.mxu0 0.0
        %699 = vmatprep.subr.mxu0 0.0
        %700 = vmatpush1.msra.mxu0 0.0
        %701 = vmatprep.subr.mxu0 0.0
        %702 = vmatpush1.msra.mxu0 0.0
        %703 = vmatprep.subr.mxu0 0.0
        %704 = vmatpush1.msra.mxu0 0.0
        %705 = vmatprep.subr.mxu0 0.0
        %706 = vmatpush1.msra.mxu0 0.0
        %707 = vmatprep.subr.mxu0 0.0
        %708 = vmatpush1.msra.mxu0 0.0
        %709 = vmatprep.subr.mxu0 0.0
        %710 = vmatpush1.msra.mxu0 0.0
        %711 = vmatprep.subr.mxu0 0.0
        %712 = vmatpush1.msra.mxu0 0.0
        %713 = vmatprep.subr.mxu0 0.0
        %714 = vmatpush1.msra.mxu0 0.0
        %715 = vmatprep.subr.mxu0 0.0
        %716 = vmatpush1.msra.mxu0 0.0
        %717 = vmatprep.subr.mxu0 0.0
        %718 = vmatpush1.msra.mxu0 %v685
        %719 = vmatprep.subr.mxu0 0.0
        %720 = vmatpush1.msra.mxu0 %v684
        %721 = vmatprep.subr.mxu0 0.0
        %722 = vmatpush1.msra.mxu0 %v683
        %723 = vmatprep.subr.mxu0 0.0
        %724 = vmatpush1.msra.mxu0 %v682
        %725 = vmatprep.subr.mxu0 0.0
        %726 = vmatpush2.msra.mxu0 0.0
        %727 = vmatprep.subr.mxu0 0.0
        %728 = vmatpush2.msra.mxu0 0.0
        %729 = vmatprep.subr.mxu0 0.0
        %730 = vmatpush2.msra.mxu0 0.0
        %731 = vmatprep.subr.mxu0 0.0
        %732 = vmatpush2.msra.mxu0 0.0
        %733 = vmatprep.subr.mxu0 0.0
        %734 = vmatpush2.msra.mxu0 0.0
        %735 = vmatprep.subr.mxu0 0.0
        %736 = vmatpush2.msra.mxu0 0.0
        %737 = vmatprep.subr.mxu0 0.0
        %738 = vmatpush2.msra.mxu0 0.0
        %739 = vmatprep.subr.mxu0 0.0
        %740 = vmatpush2.msra.mxu0 0.0
        %741 = vmatprep.subr.mxu0 0.0
        %742 = vmatpush2.msra.mxu0 0.0
        %743 = vmatprep.subr.mxu0 0.0
        %744 = vmatpush2.msra.mxu0 0.0
        %745 = vmatprep.subr.mxu0 0.0
        %746 = vmatpush2.msra.mxu0 0.0
        %747 = vmatprep.subr.mxu0 0.0
        %748 = vmatpush2.msra.mxu0 0.0
        %749 = vmatprep.subr.mxu0 0.0
        %750 = vmatpush2.msra.mxu0 0.0
        %751 = vmatprep.subr.mxu0 0.0
        %752 = vmatpush2.msra.mxu0 0.0
        %753 = vmatprep.subr.mxu0 0.0
        %754 = vmatpush2.msra.mxu0 0.0
        %755 = vmatprep.subr.mxu0 0.0
        %756 = vmatpush2.msra.mxu0 0.0
        %757 = vmatprep.mubr.f32.mxu0 0.0
        %758 = vmatmul.mubr.f32.gmra.mxu0 %v609
        %v759 = vpop.f32.mrf.mxu0
        %v760 = vadd.f32 %v691, %v759
        %v761 = vpop.f32.mrf.mxu0
        %762 = vdwg.mxu0
        %763 = vst.msk [vmem:[#allocation4] sm:$0xff] %vm522, %v760
        %v764 = vld [vmem:[#allocation2] sm:$0xff]
        %v765 = vld [vmem:[#allocation3] sm:$0xff]
        %v766 = vld [vmem:[#allocation4] sm:$0xff]
        %vm767 = vcmask 64512
        %v769 = vsel %vm767, %v764, 0
        %v772 = vsel %vm767, %v765, 0
        %774 = vmatprep.subr.mxu0 0.0
        %775 = vmatpush1.xpose.msra.mxu0 0.0
        %776 = vmatprep.subr.mxu0 0.0
        %777 = vmatpush1.xpose.msra.mxu0 0.0
        %778 = vmatprep.subr.mxu0 0.0
        %779 = vmatpush1.xpose.msra.mxu0 0.0
        %780 = vmatprep.subr.mxu0 0.0
        %781 = vmatpush1.xpose.msra.mxu0 0.0
        %782 = vmatprep.subr.mxu0 0.0
        %783 = vmatpush1.xpose.msra.mxu0 0.0
        %784 = vmatprep.subr.mxu0 0.0
        %785 = vmatpush1.xpose.msra.mxu0 0.0
        %786 = vmatprep.subr.mxu0 0.0
        %787 = vmatpush1.xpose.msra.mxu0 0.0
        %788 = vmatprep.subr.mxu0 0.0
        %789 = vmatpush1.xpose.msra.mxu0 0.0
        %790 = vmatprep.subr.mxu0 0.0
        %791 = vmatpush1.xpose.msra.mxu0 0.0
        %792 = vmatprep.subr.mxu0 0.0
        %793 = vmatpush1.xpose.msra.mxu0 0.0
        %794 = vmatprep.subr.mxu0 0.0
        %795 = vmatpush1.xpose.msra.mxu0 0.0
        %796 = vmatprep.subr.mxu0 0.0
        %797 = vmatpush1.xpose.msra.mxu0 0.0
        %798 = vmatprep.subr.mxu0 0.0
        %799 = vmatpush1.xpose.msra.mxu0 0.0
        %800 = vmatprep.subr.mxu0 0.0
        %801 = vmatpush1.xpose.msra.mxu0 0.0
        %802 = vmatprep.subr.mxu0 0.0
        %803 = vmatpush1.xpose.msra.mxu0 0.0
        %804 = vmatprep.subr.mxu0 0.0
        %805 = vmatpush1.xpose.msra.mxu0 %v772
        %806 = vmatprep.subr.mxu0 0.0
        %807 = vmatpush2.xpose.msra.mxu0 0.0
        %808 = vmatprep.subr.mxu0 0.0
        %809 = vmatpush2.xpose.msra.mxu0 0.0
        %810 = vmatprep.subr.mxu0 0.0
        %811 = vmatpush2.xpose.msra.mxu0 0.0
        %812 = vmatprep.subr.mxu0 0.0
        %813 = vmatpush2.xpose.msra.mxu0 0.0
        %814 = vmatprep.subr.mxu0 0.0
        %815 = vmatpush2.xpose.msra.mxu0 0.0
        %816 = vmatprep.subr.mxu0 0.0
        %817 = vmatpush2.xpose.msra.mxu0 0.0
        %818 = vmatprep.subr.mxu0 0.0
        %819 = vmatpush2.xpose.msra.mxu0 0.0
        %820 = vmatprep.subr.mxu0 0.0
        %821 = vmatpush2.xpose.msra.mxu0 0.0
        %822 = vmatprep.subr.mxu0 0.0
        %823 = vmatpush2.xpose.msra.mxu0 0.0
        %824 = vmatprep.subr.mxu0 0.0
        %825 = vmatpush2.xpose.msra.mxu0 0.0
        %826 = vmatprep.subr.mxu0 0.0
        %827 = vmatpush2.xpose.msra.mxu0 0.0
        %828 = vmatprep.subr.mxu0 0.0
        %829 = vmatpush2.xpose.msra.mxu0 0.0
        %830 = vmatprep.subr.mxu0 0.0
        %831 = vmatpush2.xpose.msra.mxu0 0.0
        %832 = vmatprep.subr.mxu0 0.0
        %833 = vmatpush2.xpose.msra.mxu0 0.0
        %834 = vmatprep.subr.mxu0 0.0
        %835 = vmatpush2.xpose.msra.mxu0 0.0
        %836 = vmatprep.subr.mxu0 0.0
        %837 = vmatpush2.xpose.msra.mxu0 0.0
        %838 = vmatprep.mubr.f32.mxu0 0.0
        %839 = vmatmul.mubr.f32.gmra.mxu0 %v769
        %v840 = vpop.f32.mrf.mxu0
        %v841 = vadd.f32 0.0, %v840
        %v842 = vpop.f32.mrf.mxu0
        %843 = vdwg.mxu0
        %v844 = vmul.f32 %v841, 0.35355338
        %v845 = vsel %vm767, %v844, -inf
        %846 = vmax.xlane.f32.xlu0 %v845
        %v847 = vpop.xlane.xlu0 %846
        %v848 = vsub.f32 %v844, %v847
        %v849 = vmul.f32 %v848, 1.442695
        %v850 = vpow.pop %v849
        %v851 = vsel %vm767, %v850, 0.0
        %852 = vadd.xlane.f32.xlu0 %v851
        %v853 = vpop.xlane.xlu0 %852
        %v855 = vsel %vm767, %v850, 0
        %857 = vmatprep.subr.mxu0 0.0
        %858 = vmatpush1.msra.mxu0 0.0
        %859 = vmatprep.subr.mxu0 0.0
        %860 = vmatpush1.msra.mxu0 0.0
        %861 = vmatprep.subr.mxu0 0.0
        %862 = vmatpush1.msra.mxu0 0.0
        %863 = vmatprep.subr.mxu0 0.0
        %864 = vmatpush1.msra.mxu0 0.0
        %865 = vmatprep.subr.mxu0 0.0
        %866 = vmatpush1.msra.mxu0 0.0
        %867 = vmatprep.subr.mxu0 0.0
        %868 = vmatpush1.msra.mxu0 0.0
        %869 = vmatprep.subr.mxu0 0.0
        %870 = vmatpush1.msra.mxu0 0.0
        %871 = vmatprep.subr.mxu0 0.0
        %872 = vmatpush1.msra.mxu0 0.0
        %873 = vmatprep.subr.mxu0 0.0
        %874 = vmatpush1.msra.mxu0 0.0
        %875 = vmatprep.subr.mxu0 0.0
        %876 = vmatpush1.msra.mxu0 0.0
        %877 = vmatprep.subr.mxu0 0.0
        %878 = vmatpush1.msra.mxu0 0.0
        %879 = vmatprep.subr.mxu0 0.0
        %880 = vmatpush1.msra.mxu0 0.0
        %881 = vmatprep.subr.mxu0 0.0
        %882 = vmatpush1.msra.mxu0 0.0
        %883 = vmatprep.subr.mxu0 0.0
        %884 = vmatpush1.msra.mxu0 0.0
        %885 = vmatprep.subr.mxu0 0.0
        %886 = vmatpush1.msra.mxu0 0.0
        %887 = vmatprep.subr.mxu0 0.0
        %888 = vmatpush1.msra.mxu0 %v766
        %889 = vmatprep.subr.mxu0 0.0
        %890 = vmatpush2.msra.mxu0 0.0
        %891 = vmatprep.subr.mxu0 0.0
        %892 = vmatpush2.msra.mxu0 0.0
        %893 = vmatprep.subr.mxu0 0.0
        %894 = vmatpush2.msra.mxu0 0.0
        %895 = vmatprep.subr.mxu0 0.0
        %896 = vmatpush2.msra.mxu0 0.0
        %897 = vmatprep.subr.mxu0 0.0
        %898 = vmatpush2.msra.mxu0 0.0
        %899 = vmatprep.subr.mxu0 0.0
        %900 = vmatpush2.msra.mxu0 0.0
        %901 = vmatprep.subr.mxu0 0.0
        %902 = vmatpush2.msra.mxu0 0.0
        %903 = vmatprep.subr.mxu0 0.0
        %904 = vmatpush2.msra.mxu0 0.0
        %905 = vmatprep.subr.mxu0 0.0
        %906 = vmatpush2.msra.mxu0 0.0
        %907 = vmatprep.subr.mxu0 0.0
        %908 = vmatpush2.msra.mxu0 0.0
        %909 = vmatprep.subr.mxu0 0.0
        %910 = vmatpush2.msra.mxu0 0.0
        %911 = vmatprep.subr.mxu0 0.0
        %912 = vmatpush2.msra.mxu0 0.0
        %913 = vmatprep.subr.mxu0 0.0
        %914 = vmatpush2.msra.mxu0 0.0
        %915 = vmatprep.subr.mxu0 0.0
        %916 = vmatpush2.msra.mxu0 0.0
        %917 = vmatprep.subr.mxu0 0.0
        %918 = vmatpush2.msra.mxu0 0.0
        %919 = vmatprep.subr.mxu0 0.0
        %920 = vmatpush2.msra.mxu0 0.0
        %921 = vmatprep.mubr.f32.mxu0 0.0
        %922 = vmatmul.mubr.f32.gmra.mxu0 %v855
        %v923 = vpop.f32.mrf.mxu0
        %v924 = vadd.f32 0.0, %v923
        %v925 = vpop.f32.mrf.mxu0
        %926 = vdwg.mxu0
        %v927 = vrcp.pop %v853
        %v928 = vmul.f32 %v924, %v927
        %929 = vst.msk [vmem:[#allocation5] sm:$0xff] %vm767, %v928
        %v930 = vld [vmem:[#allocation2] sm:$0xff]
        %v931 = vld [vmem:[#allocation3] sm:$0xff]
        %v932 = vld [vmem:[#allocation4] sm:$0xff]
        %934 = vrot.lane.b32.xlu0 %v930, 120
        %v935 = vpop.permute.xlu0 %934
        %937 = vrot.lane.b32.xlu0 %v931, 120
        %v938 = vpop.permute.xlu0 %937
        %v939 = vsel %vm767, %v935, 0
        %v941 = vsel %vm767, %v938, 0
        %943 = vmatprep.subr.mxu0 0.0
        %944 = vmatpush1.xpose.msra.mxu0 0.0
        %945 = vmatprep.subr.mxu0 0.0
        %946 = vmatpush1.xpose.msra.mxu0 0.0
        %947 = vmatprep.subr.mxu0 0.0
        %948 = vmatpush1.xpose.msra.mxu0 0.0
        %949 = vmatprep.subr.mxu0 0.0
        %950 = vmatpush1.xpose.msra.mxu0 0.0
        %951 = vmatprep.subr.mxu0 0.0
        %952 = vmatpush1.xpose.msra.mxu0 0.0
        %953 = vmatprep.subr.mxu0 0.0
        %954 = vmatpush1.xpose.msra.mxu0 0.0
        %955 = vmatprep.subr.mxu0 0.0
        %956 = vmatpush1.xpose.msra.mxu0 0.0
        %957 = vmatprep.subr.mxu0 0.0
        %958 = vmatpush1.xpose.msra.mxu0 0.0
        %959 = vmatprep.subr.mxu0 0.0
        %960 = vmatpush1.xpose.msra.mxu0 0.0
        %961 = vmatprep.subr.mxu0 0.0
        %962 = vmatpush1.xpose.msra.mxu0 0.0
        %963 = vmatprep.subr.mxu0 0.0
        %964 = vmatpush1.xpose.msra.mxu0 0.0
        %965 = vmatprep.subr.mxu0 0.0
        %966 = vmatpush1.xpose.msra.mxu0 0.0
        %967 = vmatprep.subr.mxu0 0.0
        %968 = vmatpush1.xpose.msra.mxu0 0.0
        %969 = vmatprep.subr.mxu0 0.0
        %970 = vmatpush1.xpose.msra.mxu0 0.0
        %971 = vmatprep.subr.mxu0 0.0
        %972 = vmatpush1.xpose.msra.mxu0 0.0
        %973 = vmatprep.subr.mxu0 0.0
        %974 = vmatpush1.xpose.msra.mxu0 %v941
        %975 = vmatprep.subr.mxu0 0.0
        %976 = vmatpush2.xpose.msra.mxu0 0.0
        %977 = vmatprep.subr.mxu0 0.0
        %978 = vmatpush2.xpose.msra.mxu0 0.0
        %979 = vmatprep.subr.mxu0 0.0
        %980 = vmatpush2.xpose.msra.mxu0 0.0
        %981 = vmatprep.subr.mxu0 0.0
        %982 = vmatpush2.xpose.msra.mxu0 0.0
        %983 = vmatprep.subr.mxu0 0.0
        %984 = vmatpush2.xpose.msra.mxu0 0.0
        %985 = vmatprep.subr.mxu0 0.0
        %986 = vmatpush2.xpose.msra.mxu0 0.0
        %987 = vmatprep.subr.mxu0 0.0
        %988 = vmatpush2.xpose.msra.mxu0 0.0
        %989 = vmatprep.subr.mxu0 0.0
        %990 = vmatpush2.xpose.msra.mxu0 0.0
        %991 = vmatprep.subr.mxu0 0.0
        %992 = vmatpush2.xpose.msra.mxu0 0.0
        %993 = vmatprep.subr.mxu0 0.0
        %994 = vmatpush2.xpose.msra.mxu0 0.0
        %995 = vmatprep.subr.mxu0 0.0
        %996 = vmatpush2.xpose.msra.mxu0 0.0
        %997 = vmatprep.subr.mxu0 0.0
        %998 = vmatpush2.xpose.msra.mxu0 0.0
        %999 = vmatprep.subr.mxu0 0.0
        %1000 = vmatpush2.xpose.msra.mxu0 0.0
        %1001 = vmatprep.subr.mxu0 0.0
        %1002 = vmatpush2.xpose.msra.mxu0 0.0
        %1003 = vmatprep.subr.mxu0 0.0
        %1004 = vmatpush2.xpose.msra.mxu0 0.0
        %1005 = vmatprep.subr.mxu0 0.0
        %1006 = vmatpush2.xpose.msra.mxu0 0.0
        %1007 = vmatprep.mubr.f32.mxu0 0.0
        %1008 = vmatmul.mubr.f32.gmra.mxu0 %v939
        %v1009 = vpop.f32.mrf.mxu0
        %v1010 = vadd.f32 0.0, %v1009
        %v1011 = vpop.f32.mrf.mxu0
        %1012 = vdwg.mxu0
        %v1013 = vmul.f32 %v1010, 0.35355338
        %v1014 = vsel %vm767, %v1013, -inf
        %1015 = vmax.xlane.f32.xlu0 %v1014
        %v1016 = vpop.xlane.xlu0 %1015
        %v1017 = vsub.f32 %v1013, %v1016
        %v1018 = vmul.f32 %v1017, 1.442695
        %v1019 = vpow.pop %v1018
        %v1020 = vsel %vm767, %v1019, 0.0
        %1021 = vadd.xlane.f32.xlu0 %v1020
        %v1022 = vpop.xlane.xlu0 %1021
        %1024 = vrot.lane.b32.xlu0 %v932, 120
        %v1025 = vpop.permute.xlu0 %1024
        %v1028 = vsel %vm767, %v1019, 0
        %1030 = vmatprep.subr.mxu0 0.0
        %1031 = vmatpush1.msra.mxu0 0.0
        %1032 = vmatprep.subr.mxu0 0.0
        %1033 = vmatpush1.msra.mxu0 0.0
        %1034 = vmatprep.subr.mxu0 0.0
        %1035 = vmatpush1.msra.mxu0 0.0
        %1036 = vmatprep.subr.mxu0 0.0
        %1037 = vmatpush1.msra.mxu0 0.0
        %1038 = vmatprep.subr.mxu0 0.0
        %1039 = vmatpush1.msra.mxu0 0.0
        %1040 = vmatprep.subr.mxu0 0.0
        %1041 = vmatpush1.msra.mxu0 0.0
        %1042 = vmatprep.subr.mxu0 0.0
        %1043 = vmatpush1.msra.mxu0 0.0
        %1044 = vmatprep.subr.mxu0 0.0
        %1045 = vmatpush1.msra.mxu0 0.0
        %1046 = vmatprep.subr.mxu0 0.0
        %1047 = vmatpush1.msra.mxu0 0.0
        %1048 = vmatprep.subr.mxu0 0.0
        %1049 = vmatpush1.msra.mxu0 0.0
        %1050 = vmatprep.subr.mxu0 0.0
        %1051 = vmatpush1.msra.mxu0 0.0
        %1052 = vmatprep.subr.mxu0 0.0
        %1053 = vmatpush1.msra.mxu0 0.0
        %1054 = vmatprep.subr.mxu0 0.0
        %1055 = vmatpush1.msra.mxu0 0.0
        %1056 = vmatprep.subr.mxu0 0.0
        %1057 = vmatpush1.msra.mxu0 0.0
        %1058 = vmatprep.subr.mxu0 0.0
        %1059 = vmatpush1.msra.mxu0 0.0
        %1060 = vmatprep.subr.mxu0 0.0
        %1061 = vmatpush1.msra.mxu0 %v1025
        %1062 = vmatprep.subr.mxu0 0.0
        %1063 = vmatpush2.msra.mxu0 0.0
        %1064 = vmatprep.subr.mxu0 0.0
        %1065 = vmatpush2.msra.mxu0 0.0
        %1066 = vmatprep.subr.mxu0 0.0
        %1067 = vmatpush2.msra.mxu0 0.0
        %1068 = vmatprep.subr.mxu0 0.0
        %1069 = vmatpush2.msra.mxu0 0.0
        %1070 = vmatprep.subr.mxu0 0.0
        %1071 = vmatpush2.msra.mxu0 0.0
        %1072 = vmatprep.subr.mxu0 0.0
        %1073 = vmatpush2.msra.mxu0 0.0
        %1074 = vmatprep.subr.mxu0 0.0
        %1075 = vmatpush2.msra.mxu0 0.0
        %1076 = vmatprep.subr.mxu0 0.0
        %1077 = vmatpush2.msra.mxu0 0.0
        %1078 = vmatprep.subr.mxu0 0.0
        %1079 = vmatpush2.msra.mxu0 0.0
        %1080 = vmatprep.subr.mxu0 0.0
        %1081 = vmatpush2.msra.mxu0 0.0
        %1082 = vmatprep.subr.mxu0 0.0
        %1083 = vmatpush2.msra.mxu0 0.0
        %1084 = vmatprep.subr.mxu0 0.0
        %1085 = vmatpush2.msra.mxu0 0.0
        %1086 = vmatprep.subr.mxu0 0.0
        %1087 = vmatpush2.msra.mxu0 0.0
        %1088 = vmatprep.subr.mxu0 0.0
        %1089 = vmatpush2.msra.mxu0 0.0
        %1090 = vmatprep.subr.mxu0 0.0
        %1091 = vmatpush2.msra.mxu0 0.0
        %1092 = vmatprep.subr.mxu0 0.0
        %1093 = vmatpush2.msra.mxu0 0.0
        %1094 = vmatprep.mubr.f32.mxu0 0.0
        %1095 = vmatmul.mubr.f32.gmra.mxu0 %v1028
        %v1096 = vpop.f32.mrf.mxu0
        %v1097 = vadd.f32 0.0, %v1096
        %v1098 = vpop.f32.mrf.mxu0
        %1099 = vdwg.mxu0
        %v1100 = vrcp.pop %v1022
        %v1101 = vmul.f32 %v1097, %v1100
        %1103 = vrot.lane.b32.xlu0 %v1101, 8
        %v1104 = vpop.permute.xlu0 %1103
        %vm1106 = vcmask 130112
        %1107 = vst.msk [vmem:[#allocation5] sm:$0xff] %vm1106, %v1104
        %v1108 = vld [vmem:[#allocation2] sm:$0xff]
        %v1109 = vld [vmem:[#allocation3] sm:$0xff]
        %v1110 = vld [vmem:[#allocation4] sm:$0xff]
        %1112 = vrot.lane.b32.xlu0 %v1108, 112
        %v1113 = vpop.permute.xlu0 %1112
        %1115 = vrot.lane.b32.xlu0 %v1109, 112
        %v1116 = vpop.permute.xlu0 %1115
        %v1117 = vsel %vm767, %v1113, 0
        %v1119 = vsel %vm767, %v1116, 0
        %1121 = vmatprep.subr.mxu0 0.0
        %1122 = vmatpush1.xpose.msra.mxu0 0.0
        %1123 = vmatprep.subr.mxu0 0.0
        %1124 = vmatpush1.xpose.msra.mxu0 0.0
        %1125 = vmatprep.subr.mxu0 0.0
        %1126 = vmatpush1.xpose.msra.mxu0 0.0
        %1127 = vmatprep.subr.mxu0 0.0
        %1128 = vmatpush1.xpose.msra.mxu0 0.0
        %1129 = vmatprep.subr.mxu0 0.0
        %1130 = vmatpush1.xpose.msra.mxu0 0.0
        %1131 = vmatprep.subr.mxu0 0.0
        %1132 = vmatpush1.xpose.msra.mxu0 0.0
        %1133 = vmatprep.subr.mxu0 0.0
        %1134 = vmatpush1.xpose.msra.mxu0 0.0
        %1135 = vmatprep.subr.mxu0 0.0
        %1136 = vmatpush1.xpose.msra.mxu0 0.0
        %1137 = vmatprep.subr.mxu0 0.0
        %1138 = vmatpush1.xpose.msra.mxu0 0.0
        %1139 = vmatprep.subr.mxu0 0.0
        %1140 = vmatpush1.xpose.msra.mxu0 0.0
        %1141 = vmatprep.subr.mxu0 0.0
        %1142 = vmatpush1.xpose.msra.mxu0 0.0
        %1143 = vmatprep.subr.mxu0 0.0
        %1144 = vmatpush1.xpose.msra.mxu0 0.0
        %1145 = vmatprep.subr.mxu0 0.0
        %1146 = vmatpush1.xpose.msra.mxu0 0.0
        %1147 = vmatprep.subr.mxu0 0.0
        %1148 = vmatpush1.xpose.msra.mxu0 0.0
        %1149 = vmatprep.subr.mxu0 0.0
        %1150 = vmatpush1.xpose.msra.mxu0 0.0
        %1151 = vmatprep.subr.mxu0 0.0
        %1152 = vmatpush1.xpose.msra.mxu0 %v1119
        %1153 = vmatprep.subr.mxu0 0.0
        %1154 = vmatpush2.xpose.msra.mxu0 0.0
        %1155 = vmatprep.subr.mxu0 0.0
        %1156 = vmatpush2.xpose.msra.mxu0 0.0
        %1157 = vmatprep.subr.mxu0 0.0
        %1158 = vmatpush2.xpose.msra.mxu0 0.0
        %1159 = vmatprep.subr.mxu0 0.0
        %1160 = vmatpush2.xpose.msra.mxu0 0.0
        %1161 = vmatprep.subr.mxu0 0.0
        %1162 = vmatpush2.xpose.msra.mxu0 0.0
        %1163 = vmatprep.subr.mxu0 0.0
        %1164 = vmatpush2.xpose.msra.mxu0 0.0
        %1165 = vmatprep.subr.mxu0 0.0
        %1166 = vmatpush2.xpose.msra.mxu0 0.0
        %1167 = vmatprep.subr.mxu0 0.0
        %1168 = vmatpush2.xpose.msra.mxu0 0.0
        %1169 = vmatprep.subr.mxu0 0.0
        %1170 = vmatpush2.xpose.msra.mxu0 0.0
        %1171 = vmatprep.subr.mxu0 0.0
        %1172 = vmatpush2.xpose.msra.mxu0 0.0
        %1173 = vmatprep.subr.mxu0 0.0
        %1174 = vmatpush2.xpose.msra.mxu0 0.0
        %1175 = vmatprep.subr.mxu0 0.0
        %1176 = vmatpush2.xpose.msra.mxu0 0.0
        %1177 = vmatprep.subr.mxu0 0.0
        %1178 = vmatpush2.xpose.msra.mxu0 0.0
        %1179 = vmatprep.subr.mxu0 0.0
        %1180 = vmatpush2.xpose.msra.mxu0 0.0
        %1181 = vmatprep.subr.mxu0 0.0
        %1182 = vmatpush2.xpose.msra.mxu0 0.0
        %1183 = vmatprep.subr.mxu0 0.0
        %1184 = vmatpush2.xpose.msra.mxu0 0.0
        %1185 = vmatprep.mubr.f32.mxu0 0.0
        %1186 = vmatmul.mubr.f32.gmra.mxu0 %v1117
        %v1187 = vpop.f32.mrf.mxu0
        %v1188 = vadd.f32 0.0, %v1187
        %v1189 = vpop.f32.mrf.mxu0
        %1190 = vdwg.mxu0
        %v1191 = vmul.f32 %v1188, 0.35355338
        %v1192 = vsel %vm767, %v1191, -inf
        %1193 = vmax.xlane.f32.xlu0 %v1192
        %v1194 = vpop.xlane.xlu0 %1193
        %v1195 = vsub.f32 %v1191, %v1194
        %v1196 = vmul.f32 %v1195, 1.442695
        %v1197 = vpow.pop %v1196
        %v1198 = vsel %vm767, %v1197, 0.0
        %1199 = vadd.xlane.f32.xlu0 %v1198
        %v1200 = vpop.xlane.xlu0 %1199
        %1202 = vrot.lane.b32.xlu0 %v1110, 112
        %v1203 = vpop.permute.xlu0 %1202
        %v1206 = vsel %vm767, %v1197, 0
        %1208 = vmatprep.subr.mxu0 0.0
        %1209 = vmatpush1.msra.mxu0 0.0
        %1210 = vmatprep.subr.mxu0 0.0
        %1211 = vmatpush1.msra.mxu0 0.0
        %1212 = vmatprep.subr.mxu0 0.0
        %1213 = vmatpush1.msra.mxu0 0.0
        %1214 = vmatprep.subr.mxu0 0.0
        %1215 = vmatpush1.msra.mxu0 0.0
        %1216 = vmatprep.subr.mxu0 0.0
        %1217 = vmatpush1.msra.mxu0 0.0
        %1218 = vmatprep.subr.mxu0 0.0
        %1219 = vmatpush1.msra.mxu0 0.0
        %1220 = vmatprep.subr.mxu0 0.0
        %1221 = vmatpush1.msra.mxu0 0.0
        %1222 = vmatprep.subr.mxu0 0.0
        %1223 = vmatpush1.msra.mxu0 0.0
        %1224 = vmatprep.subr.mxu0 0.0
        %1225 = vmatpush1.msra.mxu0 0.0
        %1226 = vmatprep.subr.mxu0 0.0
        %1227 = vmatpush1.msra.mxu0 0.0
        %1228 = vmatprep.subr.mxu0 0.0
        %1229 = vmatpush1.msra.mxu0 0.0
        %1230 = vmatprep.subr.mxu0 0.0
        %1231 = vmatpush1.msra.mxu0 0.0
        %1232 = vmatprep.subr.mxu0 0.0
        %1233 = vmatpush1.msra.mxu0 0.0
        %1234 = vmatprep.subr.mxu0 0.0
        %1235 = vmatpush1.msra.mxu0 0.0
        %1236 = vmatprep.subr.mxu0 0.0
        %1237 = vmatpush1.msra.mxu0 0.0
        %1238 = vmatprep.subr.mxu0 0.0
        %1239 = vmatpush1.msra.mxu0 %v1203
        %1240 = vmatprep.subr.mxu0 0.0
        %1241 = vmatpush2.msra.mxu0 0.0
        %1242 = vmatprep.subr.mxu0 0.0
        %1243 = vmatpush2.msra.mxu0 0.0
        %1244 = vmatprep.subr.mxu0 0.0
        %1245 = vmatpush2.msra.mxu0 0.0
        %1246 = vmatprep.subr.mxu0 0.0
        %1247 = vmatpush2.msra.mxu0 0.0
        %1248 = vmatprep.subr.mxu0 0.0
        %1249 = vmatpush2.msra.mxu0 0.0
        %1250 = vmatprep.subr.mxu0 0.0
        %1251 = vmatpush2.msra.mxu0 0.0
        %1252 = vmatprep.subr.mxu0 0.0
        %1253 = vmatpush2.msra.mxu0 0.0
        %1254 = vmatprep.subr.mxu0 0.0
        %1255 = vmatpush2.msra.mxu0 0.0
        %1256 = vmatprep.subr.mxu0 0.0
        %1257 = vmatpush2.msra.mxu0 0.0
        %1258 = vmatprep.subr.mxu0 0.0
        %1259 = vmatpush2.msra.mxu0 0.0
        %1260 = vmatprep.subr.mxu0 0.0
        %1261 = vmatpush2.msra.mxu0 0.0
        %1262 = vmatprep.subr.mxu0 0.0
        %1263 = vmatpush2.msra.mxu0 0.0
        %1264 = vmatprep.subr.mxu0 0.0
        %1265 = vmatpush2.msra.mxu0 0.0
        %1266 = vmatprep.subr.mxu0 0.0
        %1267 = vmatpush2.msra.mxu0 0.0
        %1268 = vmatprep.subr.mxu0 0.0
        %1269 = vmatpush2.msra.mxu0 0.0
        %1270 = vmatprep.subr.mxu0 0.0
        %1271 = vmatpush2.msra.mxu0 0.0
        %1272 = vmatprep.mubr.f32.mxu0 0.0
        %1273 = vmatmul.mubr.f32.gmra.mxu0 %v1206
        %v1274 = vpop.f32.mrf.mxu0
        %v1275 = vadd.f32 0.0, %v1274
        %v1276 = vpop.f32.mrf.mxu0
        %1277 = vdwg.mxu0
        %v1278 = vrcp.pop %v1200
        %v1279 = vmul.f32 %v1275, %v1278
        %1281 = vrot.lane.b32.xlu0 %v1279, 16
        %v1282 = vpop.permute.xlu0 %1281
        %vm1284 = vcmask 195712
        %1285 = vst.msk [vmem:[#allocation5] sm:$0xff] %vm1284, %v1282
        %v1286 = vld [vmem:[#allocation2] sm:$0xff]
        %v1287 = vld [vmem:[#allocation3] sm:$0xff]
        %v1288 = vld [vmem:[#allocation4] sm:$0xff]
        %1290 = vrot.lane.b32.xlu0 %v1286, 104
        %v1291 = vpop.permute.xlu0 %1290
        %1293 = vrot.lane.b32.xlu0 %v1287, 104
        %v1294 = vpop.permute.xlu0 %1293
        %v1295 = vsel %vm767, %v1291, 0
        %v1297 = vsel %vm767, %v1294, 0
        %1299 = vmatprep.subr.mxu0 0.0
        %1300 = vmatpush1.xpose.msra.mxu0 0.0
        %1301 = vmatprep.subr.mxu0 0.0
        %1302 = vmatpush1.xpose.msra.mxu0 0.0
        %1303 = vmatprep.subr.mxu0 0.0
        %1304 = vmatpush1.xpose.msra.mxu0 0.0
        %1305 = vmatprep.subr.mxu0 0.0
        %1306 = vmatpush1.xpose.msra.mxu0 0.0
        %1307 = vmatprep.subr.mxu0 0.0
        %1308 = vmatpush1.xpose.msra.mxu0 0.0
        %1309 = vmatprep.subr.mxu0 0.0
        %1310 = vmatpush1.xpose.msra.mxu0 0.0
        %1311 = vmatprep.subr.mxu0 0.0
        %1312 = vmatpush1.xpose.msra.mxu0 0.0
        %1313 = vmatprep.subr.mxu0 0.0
        %1314 = vmatpush1.xpose.msra.mxu0 0.0
        %1315 = vmatprep.subr.mxu0 0.0
        %1316 = vmatpush1.xpose.msra.mxu0 0.0
        %1317 = vmatprep.subr.mxu0 0.0
        %1318 = vmatpush1.xpose.msra.mxu0 0.0
        %1319 = vmatprep.subr.mxu0 0.0
        %1320 = vmatpush1.xpose.msra.mxu0 0.0
        %1321 = vmatprep.subr.mxu0 0.0
        %1322 = vmatpush1.xpose.msra.mxu0 0.0
        %1323 = vmatprep.subr.mxu0 0.0
        %1324 = vmatpush1.xpose.msra.mxu0 0.0
        %1325 = vmatprep.subr.mxu0 0.0
        %1326 = vmatpush1.xpose.msra.mxu0 0.0
        %1327 = vmatprep.subr.mxu0 0.0
        %1328 = vmatpush1.xpose.msra.mxu0 0.0
        %1329 = vmatprep.subr.mxu0 0.0
        %1330 = vmatpush1.xpose.msra.mxu0 %v1297
        %1331 = vmatprep.subr.mxu0 0.0
        %1332 = vmatpush2.xpose.msra.mxu0 0.0
        %1333 = vmatprep.subr.mxu0 0.0
        %1334 = vmatpush2.xpose.msra.mxu0 0.0
        %1335 = vmatprep.subr.mxu0 0.0
        %1336 = vmatpush2.xpose.msra.mxu0 0.0
        %1337 = vmatprep.subr.mxu0 0.0
        %1338 = vmatpush2.xpose.msra.mxu0 0.0
        %1339 = vmatprep.subr.mxu0 0.0
        %1340 = vmatpush2.xpose.msra.mxu0 0.0
        %1341 = vmatprep.subr.mxu0 0.0
        %1342 = vmatpush2.xpose.msra.mxu0 0.0
        %1343 = vmatprep.subr.mxu0 0.0
        %1344 = vmatpush2.xpose.msra.mxu0 0.0
        %1345 = vmatprep.subr.mxu0 0.0
        %1346 = vmatpush2.xpose.msra.mxu0 0.0
        %1347 = vmatprep.subr.mxu0 0.0
        %1348 = vmatpush2.xpose.msra.mxu0 0.0
        %1349 = vmatprep.subr.mxu0 0.0
        %1350 = vmatpush2.xpose.msra.mxu0 0.0
        %1351 = vmatprep.subr.mxu0 0.0
        %1352 = vmatpush2.xpose.msra.mxu0 0.0
        %1353 = vmatprep.subr.mxu0 0.0
        %1354 = vmatpush2.xpose.msra.mxu0 0.0
        %1355 = vmatprep.subr.mxu0 0.0
        %1356 = vmatpush2.xpose.msra.mxu0 0.0
        %1357 = vmatprep.subr.mxu0 0.0
        %1358 = vmatpush2.xpose.msra.mxu0 0.0
        %1359 = vmatprep.subr.mxu0 0.0
        %1360 = vmatpush2.xpose.msra.mxu0 0.0
        %1361 = vmatprep.subr.mxu0 0.0
        %1362 = vmatpush2.xpose.msra.mxu0 0.0
        %1363 = vmatprep.mubr.f32.mxu0 0.0
        %1364 = vmatmul.mubr.f32.gmra.mxu0 %v1295
        %v1365 = vpop.f32.mrf.mxu0
        %v1366 = vadd.f32 0.0, %v1365
        %v1367 = vpop.f32.mrf.mxu0
        %1368 = vdwg.mxu0
        %v1369 = vmul.f32 %v1366, 0.35355338
        %v1370 = vsel %vm767, %v1369, -inf
        %1371 = vmax.xlane.f32.xlu0 %v1370
        %v1372 = vpop.xlane.xlu0 %1371
        %v1373 = vsub.f32 %v1369, %v1372
        %v1374 = vmul.f32 %v1373, 1.442695
        %v1375 = vpow.pop %v1374
        %v1376 = vsel %vm767, %v1375, 0.0
        %1377 = vadd.xlane.f32.xlu0 %v1376
        %v1378 = vpop.xlane.xlu0 %1377
        %1380 = vrot.lane.b32.xlu0 %v1288, 104
        %v1381 = vpop.permute.xlu0 %1380
        %v1384 = vsel %vm767, %v1375, 0
        %1386 = vmatprep.subr.mxu0 0.0
        %1387 = vmatpush1.msra.mxu0 0.0
        %1388 = vmatprep.subr.mxu0 0.0
        %1389 = vmatpush1.msra.mxu0 0.0
        %1390 = vmatprep.subr.mxu0 0.0
        %1391 = vmatpush1.msra.mxu0 0.0
        %1392 = vmatprep.subr.mxu0 0.0
        %1393 = vmatpush1.msra.mxu0 0.0
        %1394 = vmatprep.subr.mxu0 0.0
        %1395 = vmatpush1.msra.mxu0 0.0
        %1396 = vmatprep.subr.mxu0 0.0
        %1397 = vmatpush1.msra.mxu0 0.0
        %1398 = vmatprep.subr.mxu0 0.0
        %1399 = vmatpush1.msra.mxu0 0.0
        %1400 = vmatprep.subr.mxu0 0.0
        %1401 = vmatpush1.msra.mxu0 0.0
        %1402 = vmatprep.subr.mxu0 0.0
        %1403 = vmatpush1.msra.mxu0 0.0
        %1404 = vmatprep.subr.mxu0 0.0
        %1405 = vmatpush1.msra.mxu0 0.0
        %1406 = vmatprep.subr.mxu0 0.0
        %1407 = vmatpush1.msra.mxu0 0.0
        %1408 = vmatprep.subr.mxu0 0.0
        %1409 = vmatpush1.msra.mxu0 0.0
        %1410 = vmatprep.subr.mxu0 0.0
        %1411 = vmatpush1.msra.mxu0 0.0
        %1412 = vmatprep.subr.mxu0 0.0
        %1413 = vmatpush1.msra.mxu0 0.0
        %1414 = vmatprep.subr.mxu0 0.0
        %1415 = vmatpush1.msra.mxu0 0.0
        %1416 = vmatprep.subr.mxu0 0.0
        %1417 = vmatpush1.msra.mxu0 %v1381
        %1418 = vmatprep.subr.mxu0 0.0
        %1419 = vmatpush2.msra.mxu0 0.0
        %1420 = vmatprep.subr.mxu0 0.0
        %1421 = vmatpush2.msra.mxu0 0.0
        %1422 = vmatprep.subr.mxu0 0.0
        %1423 = vmatpush2.msra.mxu0 0.0
        %1424 = vmatprep.subr.mxu0 0.0
        %1425 = vmatpush2.msra.mxu0 0.0
        %1426 = vmatprep.subr.mxu0 0.0
        %1427 = vmatpush2.msra.mxu0 0.0
        %1428 = vmatprep.subr.mxu0 0.0
        %1429 = vmatpush2.msra.mxu0 0.0
        %1430 = vmatprep.subr.mxu0 0.0
        %1431 = vmatpush2.msra.mxu0 0.0
        %1432 = vmatprep.subr.mxu0 0.0
        %1433 = vmatpush2.msra.mxu0 0.0
        %1434 = vmatprep.subr.mxu0 0.0
        %1435 = vmatpush2.msra.mxu0 0.0
        %1436 = vmatprep.subr.mxu0 0.0
        %1437 = vmatpush2.msra.mxu0 0.0
        %1438 = vmatprep.subr.mxu0 0.0
        %1439 = vmatpush2.msra.mxu0 0.0
        %1440 = vmatprep.subr.mxu0 0.0
        %1441 = vmatpush2.msra.mxu0 0.0
        %1442 = vmatprep.subr.mxu0 0.0
        %1443 = vmatpush2.msra.mxu0 0.0
        %1444 = vmatprep.subr.mxu0 0.0
        %1445 = vmatpush2.msra.mxu0 0.0
        %1446 = vmatprep.subr.mxu0 0.0
        %1447 = vmatpush2.msra.mxu0 0.0
        %1448 = vmatprep.subr.mxu0 0.0
        %1449 = vmatpush2.msra.mxu0 0.0
        %1450 = vmatprep.mubr.f32.mxu0 0.0
        %1451 = vmatmul.mubr.f32.gmra.mxu0 %v1384
        %v1452 = vpop.f32.mrf.mxu0
        %v1453 = vadd.f32 0.0, %v1452
        %v1454 = vpop.f32.mrf.mxu0
        %1455 = vdwg.mxu0
        %v1456 = vrcp.pop %v1378
        %v1457 = vmul.f32 %v1453, %v1456
        %1459 = vrot.lane.b32.xlu0 %v1457, 24
        %v1460 = vpop.permute.xlu0 %1459
        %vm1462 = vcmask 261312
        %1463 = vst.msk [vmem:[#allocation5] sm:$0xff] %vm1462, %v1460
        %v1464 = vld [vmem:[#allocation5] sm:$0xff]
        %v1465 = vld [vmem:[#allocation13] sm:$0xff]
        %v1466 = vld [vmem:[#allocation13 + $0x8] sm:$0xff]
        %v1467 = vld [vmem:[#allocation13 + $0x10] sm:$0xff]
        %v1468 = vld [vmem:[#allocation13 + $0x18] sm:$0xff]
        %v1469 = vld [vmem:[%s9] sm:$0x1]
        %v1471 = vlaneseq
        %v1472 = vshrl.u32 %v1471, 7
        %v1473 = vsub.s32 0, %v1472
        %v1474 = vrot.slane %v1469, %v1473
        %v1477 = vsel %vm522, %v1464, 0
        %1479 = vmatprep.subr.mxu0 0.0
        %1480 = vmatpush1.msra.mxu0 0.0
        %1481 = vmatprep.subr.mxu0 0.0
        %1482 = vmatpush1.msra.mxu0 0.0
        %1483 = vmatprep.subr.mxu0 0.0
        %1484 = vmatpush1.msra.mxu0 0.0
        %1485 = vmatprep.subr.mxu0 0.0
        %1486 = vmatpush1.msra.mxu0 0.0
        %1487 = vmatprep.subr.mxu0 0.0
        %1488 = vmatpush1.msra.mxu0 0.0
        %1489 = vmatprep.subr.mxu0 0.0
        %1490 = vmatpush1.msra.mxu0 0.0
        %1491 = vmatprep.subr.mxu0 0.0
        %1492 = vmatpush1.msra.mxu0 0.0
        %1493 = vmatprep.subr.mxu0 0.0
        %1494 = vmatpush1.msra.mxu0 0.0
        %1495 = vmatprep.subr.mxu0 0.0
        %1496 = vmatpush1.msra.mxu0 0.0
        %1497 = vmatprep.subr.mxu0 0.0
        %1498 = vmatpush1.msra.mxu0 0.0
        %1499 = vmatprep.subr.mxu0 0.0
        %1500 = vmatpush1.msra.mxu0 0.0
        %1501 = vmatprep.subr.mxu0 0.0
        %1502 = vmatpush1.msra.mxu0 0.0
        %1503 = vmatprep.subr.mxu0 0.0
        %1504 = vmatpush1.msra.mxu0 %v1468
        %1505 = vmatprep.subr.mxu0 0.0
        %1506 = vmatpush1.msra.mxu0 %v1467
        %1507 = vmatprep.subr.mxu0 0.0
        %1508 = vmatpush1.msra.mxu0 %v1466
        %1509 = vmatprep.subr.mxu0 0.0
        %1510 = vmatpush1.msra.mxu0 %v1465
        %1511 = vmatprep.subr.mxu0 0.0
        %1512 = vmatpush2.msra.mxu0 0.0
        %1513 = vmatprep.subr.mxu0 0.0
        %1514 = vmatpush2.msra.mxu0 0.0
        %1515 = vmatprep.subr.mxu0 0.0
        %1516 = vmatpush2.msra.mxu0 0.0
        %1517 = vmatprep.subr.mxu0 0.0
        %1518 = vmatpush2.msra.mxu0 0.0
        %1519 = vmatprep.subr.mxu0 0.0
        %1520 = vmatpush2.msra.mxu0 0.0
        %1521 = vmatprep.subr.mxu0 0.0
        %1522 = vmatpush2.msra.mxu0 0.0
        %1523 = vmatprep.subr.mxu0 0.0
        %1524 = vmatpush2.msra.mxu0 0.0
        %1525 = vmatprep.subr.mxu0 0.0
        %1526 = vmatpush2.msra.mxu0 0.0
        %1527 = vmatprep.subr.mxu0 0.0
        %1528 = vmatpush2.msra.mxu0 0.0
        %1529 = vmatprep.subr.mxu0 0.0
        %1530 = vmatpush2.msra.mxu0 0.0
        %1531 = vmatprep.subr.mxu0 0.0
        %1532 = vmatpush2.msra.mxu0 0.0
        %1533 = vmatprep.subr.mxu0 0.0
        %1534 = vmatpush2.msra.mxu0 0.0
        %1535 = vmatprep.subr.mxu0 0.0
        %1536 = vmatpush2.msra.mxu0 0.0
        %1537 = vmatprep.subr.mxu0 0.0
        %1538 = vmatpush2.msra.mxu0 0.0
        %1539 = vmatprep.subr.mxu0 0.0
        %1540 = vmatpush2.msra.mxu0 0.0
        %1541 = vmatprep.subr.mxu0 0.0
        %1542 = vmatpush2.msra.mxu0 0.0
        %1543 = vmatprep.mubr.f32.mxu0 0.0
        %1544 = vmatmul.mubr.f32.gmra.mxu0 %v1477
        %v1545 = vpop.f32.mrf.mxu0
        %v1546 = vadd.f32 %v1474, %v1545
        %v1547 = vpop.f32.mrf.mxu0
        %1548 = vdwg.mxu0
        %v1549 = vadd.f32 %v509, %v1546
        %v1550 = vsel %vm522, %v1549, 0.0
        %1551 = vadd.xlane.f32.xlu0 %v1550
        %v1552 = vpop.xlane.xlu0 %1551
        %v1553 = vrcp.pop 32.0
        %v1554 = vmul.f32 %v1552, %v1553
        %v1555 = vsub.f32 %v1549, %v1554
        %v1556 = vmul.f32 %v1555, %v1555
        %v1557 = vsel %vm522, %v1556, 0.0
        %1558 = vadd.xlane.f32.xlu0 %v1557
        %v1559 = vpop.xlane.xlu0 %1558
        %v1560 = vmul.f32 %v1559, %v1553
        %v1561 = vadd.f32 %v1560, 1e-05
        %v1562 = vrsqrt.pop %v1561
        %v1563 = vmul.f32 %v1555, %v1562
        %v1564 = vld [vmem:[%s10] sm:$0x1]
        %v1566 = vlaneseq
        %v1567 = vshrl.u32 %v1566, 7
        %v1568 = vsub.s32 0, %v1567
        %v1569 = vrot.slane %v1564, %v1568
        %v1571 = vmul.f32 %v1563, %v1569
        %v1572 = vld [vmem:[%s11] sm:$0x1]
        %v1574 = vlaneseq
        %v1575 = vshrl.u32 %v1574, 7
        %v1576 = vsub.s32 0, %v1575
        %v1577 = vrot.slane %v1572, %v1576
        %v1579 = vadd.f32 %v1571, %v1577
        %1580 = vst.msk [vmem:[%s508] sm:$0xff] %vm522, %v1579
        %p1581 = scmp.lt.s32.totalorder %s30, 1
        %s1582 = scalar_select %p1581, %s30, 1
        %s1583 = smul.addr %s1582, 8
        %s1584 = scalar_lea.vmem %s12, %s1583
        // Predicated region
        $region89: #{decoder_layer_forward.3} parent=67 // pred_check
          %p1585 = pneg %p310
        $region90: #{decoder_layer_forward.3} parent=67 // pred_check_branch
          %1587 = sbr.rel (%p1585) target = $region92
        $region91: #{decoder_layer_forward.3} parent=67 // pred_region
          _
        $region92: #{decoder_layer_forward.3} parent=67 // pred_fallthru
          _
      $region68: #{decoder_layer_forward.3} parent=5 // pred_fallthru
        _
      %p1588 = scmp.le.s32.totalorder 2, %s25
      // Predicated region
      $region93: #{decoder_layer_forward.3} parent=5 // pred_check
        %p1589 = pneg %p1588
      $region94: #{decoder_layer_forward.3} parent=5 // pred_check_branch
        %1591 = sbr.rel (%p1589) target = $region96
      $region95: #{decoder_layer_forward.3} parent=5 // pred_region
        %s1592 = ssub.s32 %s25, 2
        // Predicated region
        $region97: #{decoder_layer_forward.3} parent=95 // pred_check
          %p1593 = pneg %p316
        $region98: #{decoder_layer_forward.3} parent=95 // pred_check_branch
          %1595 = sbr.rel (%p1593) target = $region100
        $region99: #{decoder_layer_forward.3} parent=95 // pred_region
          %p1596 = scmp.lt.s32.totalorder %s31, 1
          %s1597 = scalar_select %p1596, %s31, 1
          %s1598 = smul.addr %s1597, 8
          %s1599 = scalar_lea.vmem %s12, %s1598
        $region100: #{decoder_layer_forward.3} parent=95 // pred_fallthru
          _
      $region96: #{decoder_layer_forward.3} parent=5 // pred_fallthru
        _
    $region6: #{decoder_layer_forward.3} parent=1 // loop_footer
      %s29 = sadd.s32 1, %s25
    $region7: #{decoder_layer_forward.3} parent=1 // loop_footer_branch
      %24 = sbr.rel target = $region3
    $region8: #{decoder_layer_forward.3} parent=1 // loop_exit
      _
    %1600 = vsyncpa [#allocation7], 1
    %s1601 = scalar_lea.sflag [#allocation7], 1
    %1602 = vsyncpa %s1601, 1
    %1603 = vsyncpa [#allocation9], 1
    %s1604 = scalar_lea.sflag [#allocation9], 1
    %1605 = vsyncpa %s1604, 1
    %1606 = vsyncpa [#allocation12], 1

</llo_original>
